<compile_context>
chip_gen: v7x
topology: tpu7x:2x2x1
jax: 0.10.0
libtpu: 0.0.40
codegen_flags: <defaults>
</compile_context>

<pallas_src>
import functools

import jax
import jax.numpy as jnp
from jax import lax
from jax.experimental import pallas as pl
from jax.experimental.pallas import tpu as pltpu

EPS = 1e-5


def _round_up(x, m):
    return ((x + m - 1) // m) * m


# ---------------------------------------------------------------------------
# pass 1 / pass 2 kernel:
#   y = conv3x3( mask * maybe_relu(x * scale + bias) )      (pre-BN output)
#   plus per-channel sum / sum-of-squares of y accumulated over the grid.
# ---------------------------------------------------------------------------
def conv3x3_stats_kernel(x_ref, w_ref, scale_ref, bias_ref, mask_ref,
                         y_ref, sum_ref, ssq_ref,
                         pext_ref,
                         *, Wp, lpad, apply_relu, matmul_dtype):
    M = x_ref.shape[1]            # Hp * Wp flat padded rows of one image
    cout = w_ref.shape[2]

    mask = mask_ref[...]          # (M, 1): 1.0 at real pixels, 0.0 on the halo ring

    # Folded-BN affine (+ optional ReLU) applied on the fly to the conv input.
    # The mask keeps the zero-padding ring exactly zero after the affine.
    t = x_ref[0].astype(jnp.float32) * scale_ref[...] + bias_ref[...]
    if apply_relu:
        t = jnp.maximum(t, 0.0)
    t = t * mask

    # One-time init: zero the extension rows of the persistent scratch and the
    # statistics accumulators (scratch / revisited outputs live across steps).
    @pl.when(pl.program_id(0) == 0)
    def _init():
        pext_ref[...] = jnp.zeros_like(pext_ref)
        sum_ref[...] = jnp.zeros_like(sum_ref)
        ssq_ref[...] = jnp.zeros_like(ssq_ref)

    # Zero-extended flat image: [lpad zero rows | image | >= Wp+1 zero rows]
    # (lpad is sublane-aligned so this full-image store is aligned).
    pext_ref[lpad:lpad + M, :] = t

    # 3x3 conv: in flat (row, channel) layout every stencil tap is a constant
    # row shift, so each tap is a row-shifted slice of pext feeding the MXU.
    # Operands go to the MXU in bf16; accumulation stays f32.
    acc = jnp.zeros((M, cout), jnp.float32)
    for kh in range(3):
        for kw in range(3):
            off = lpad - (Wp + 1) + kh * Wp + kw
            lhs = pext_ref[off:off + M, :].astype(matmul_dtype)
            acc = acc + jnp.dot(lhs, w_ref[kh * 3 + kw],
                                preferred_element_type=jnp.float32)
    # TODO(synk): for lane-aligned channel counts (Cin >= 64) pack the 9 taps
    # into one (M, 9*Cin) im2col scratch and issue a single K=9*Cin MXU dot;
    # with Cin=4 the sub-128-lane packing costs more than the fill/drain saved.

    acc = acc * mask              # halo-ring rows hold garbage -> force to zero

    y_ref[0] = acc                # pre-BN conv output (f32)

    # BatchNorm statistics accumulated across the whole grid (all images).
    sum_ref[...] += jnp.sum(acc, axis=0, keepdims=True)
    ssq_ref[...] += jnp.sum(acc * acc, axis=0, keepdims=True)


def _conv3x3_stats(x_flat, w_taps, scale, bias, mask, *, Wp, apply_relu,
                   matmul_dtype):
    N, M, cin = x_flat.shape
    cout = w_taps.shape[-1]
    lpad = _round_up(Wp + 1, 8)   # sublane-aligned start of the image in pext

    kernel = functools.partial(conv3x3_stats_kernel, Wp=Wp, lpad=lpad,
                               apply_relu=apply_relu, matmul_dtype=matmul_dtype)
    return pl.pallas_call(
        kernel,
        grid=(N,),
        in_specs=[
            pl.BlockSpec((1, M, cin), lambda n: (n, 0, 0)),     # one padded image
            pl.BlockSpec((9, cin, cout), lambda n: (0, 0, 0)),  # 3x3 weights (resident)
            pl.BlockSpec((1, cin), lambda n: (0, 0)),           # folded-BN scale
            pl.BlockSpec((1, cin), lambda n: (0, 0)),           # folded-BN bias
            pl.BlockSpec((M, 1), lambda n: (0, 0)),             # interior-pixel mask
        ],
        out_specs=[
            pl.BlockSpec((1, M, cout), lambda n: (n, 0, 0)),    # pre-BN conv output
            pl.BlockSpec((1, cout), lambda n: (0, 0)),          # sum accumulator
            pl.BlockSpec((1, cout), lambda n: (0, 0)),          # sum-of-squares acc
        ],
        out_shape=[
            jax.ShapeDtypeStruct((N, M, cout), jnp.float32),
            jax.ShapeDtypeStruct((1, cout), jnp.float32),
            jax.ShapeDtypeStruct((1, cout), jnp.float32),
        ],
        scratch_shapes=[pltpu.VMEM((M + 2 * lpad, cin), jnp.float32)],
        compiler_params=pltpu.CompilerParams(
            # The batch axis is a reduction axis for the BN statistics, so it
            # must stay "arbitrary" (sequential).  Splitting it across v7x's
            # two TensorCores would require a cross-core stats combine.
            dimension_semantics=("arbitrary",),
            vmem_limit_bytes=32 * 1024 * 1024,
        ),
    )(x_flat, w_taps, scale, bias, mask)


# ---------------------------------------------------------------------------
# pass 3 kernel: out = relu( y2 * scale2 + bias2 + residual )
# ---------------------------------------------------------------------------
def bn_residual_relu_kernel(y_ref, x_ref, scale_ref, bias_ref, out_ref):
    z = y_ref[0] * scale_ref[...] + bias_ref[...] + x_ref[0]
    out_ref[0] = jnp.maximum(z, 0.0)


def _bn_residual_relu(y2, xpad, scale, bias):
    N, M, c = y2.shape
    return pl.pallas_call(
        bn_residual_relu_kernel,
        grid=(N,),
        in_specs=[
            pl.BlockSpec((1, M, c), lambda n: (n, 0, 0)),
            pl.BlockSpec((1, M, c), lambda n: (n, 0, 0)),
            pl.BlockSpec((1, c), lambda n: (0, 0)),
            pl.BlockSpec((1, c), lambda n: (0, 0)),
        ],
        out_specs=pl.BlockSpec((1, M, c), lambda n: (n, 0, 0)),
        out_shape=jax.ShapeDtypeStruct((N, M, c), jnp.float32),
        compiler_params=pltpu.CompilerParams(
            dimension_semantics=("parallel",),   # no cross-step state -> megacore OK
            vmem_limit_bytes=32 * 1024 * 1024,
        ),
    )(y2, xpad, scale, bias)


# ---------------------------------------------------------------------------
# BasicBlock forward
# ---------------------------------------------------------------------------
def basic_block(x_nchw, w1, w2, gamma1, beta1, gamma2, beta2,
                matmul_dtype=jnp.bfloat16):
    """x_nchw: (N, Cin, H, W); w1: (Cout, Cin, 3, 3); w2: (Cout, Cout, 3, 3)."""
    N, Cin, H, W = x_nchw.shape
    Cout = w1.shape[0]
    assert Cin == Cout, "identity residual requires inplanes == planes"
    Hp, Wp = H + 2, W + 2
    M = Hp * Wp

    # glue: layout transposes / padding / weight reshaping in plain JAX
    x_nhwc = jnp.transpose(x_nchw, (0, 2, 3, 1)).astype(jnp.float32)
    xpad = jnp.pad(x_nhwc, ((0, 0), (1, 1), (1, 1), (0, 0))).reshape(N, M, Cin)

    w1t = jnp.transpose(w1, (2, 3, 1, 0)).reshape(9, Cin, Cout).astype(matmul_dtype)
    w2t = jnp.transpose(w2, (2, 3, 1, 0)).reshape(9, Cout, Cout).astype(matmul_dtype)

    # interior-pixel mask in the flat padded layout (1 at real pixels, 0 on ring)
    mask = jnp.pad(jnp.ones((H, W), jnp.float32), ((1, 1), (1, 1))).reshape(M, 1)

    one = jnp.ones((1, Cin), jnp.float32)
    zero = jnp.zeros((1, Cin), jnp.float32)
    cnt = jnp.float32(N * H * W)

    # pass 1: conv1 + batch statistics of its output
    y1, s1, q1 = _conv3x3_stats(xpad, w1t, one, zero, mask, Wp=Wp,
                                apply_relu=False, matmul_dtype=matmul_dtype)
    m1 = s1 / cnt
    v1 = q1 / cnt - m1 * m1                              # one-pass variance (f32)
    scale1 = gamma1.reshape(1, Cout) * lax.rsqrt(v1 + EPS)
    bias1 = beta1.reshape(1, Cout) - m1 * scale1

    # pass 2: conv2( relu(bn1(y1)) ) + batch statistics of conv2 output
    y2, s2, q2 = _conv3x3_stats(y1, w2t, scale1, bias1, mask, Wp=Wp,
                                apply_relu=True, matmul_dtype=matmul_dtype)
    m2 = s2 / cnt
    v2 = q2 / cnt - m2 * m2
    scale2 = gamma2.reshape(1, Cout) * lax.rsqrt(v2 + EPS)
    bias2 = beta2.reshape(1, Cout) - m2 * scale2

    # pass 3: bn2 + identity residual + relu (ring positions are discarded below)
    out_flat = _bn_residual_relu(y2, xpad, scale2, bias2)
    out = out_flat.reshape(N, Hp, Wp, Cout)[:, 1:H + 1, 1:W + 1, :]
    return jnp.transpose(out, (0, 3, 1, 2))              # back to NCHW


# ---------------------------------------------------------------------------
# plain-JAX NCHW reference of the PyTorch forward (training-mode BN)
# ---------------------------------------------------------------------------
def reference(x, w1, w2, g1, b1, g2, b2):
    def conv(a, w):
        return lax.conv_general_dilated(a, w, (1, 1), ((1, 1), (1, 1)),
                                        dimension_numbers=('NCHW', 'OIHW', 'NCHW'))

    def bn(y, g, b):
        m = jnp.mean(y, axis=(0, 2, 3), keepdims=True)
        v = jnp.mean((y - m) ** 2, axis=(0, 2, 3), keepdims=True)
        return (y - m) * lax.rsqrt(v + EPS) * g.reshape(1, -1, 1, 1) + b.reshape(1, -1, 1, 1)

    out = jnp.maximum(bn(conv(x, w1), g1, b1), 0.0)
    out = bn(conv(out, w2), g2, b2)
    return jnp.maximum(out + x, 0.0)


if __name__ == "__main__":
    key = jax.random.PRNGKey(0)
    kx, kw1, kw2 = jax.random.split(key, 3)

    N, C, H, W = 2, 4, 16, 16
    planes = 4  # inplanes == planes, stride=1, downsample=None -> identity residual

    x = jax.random.normal(kx, (N, C, H, W), jnp.float32)
    w1 = jax.random.normal(kw1, (planes, C, 3, 3), jnp.float32) * (2.0 / (C * 9)) ** 0.5
    w2 = jax.random.normal(kw2, (planes, planes, 3, 3), jnp.float32) * (2.0 / (planes * 9)) ** 0.5
    g1 = jnp.ones((planes,), jnp.float32)
    b1 = jnp.zeros((planes,), jnp.float32)
    g2 = jnp.ones((planes,), jnp.float32)
    b2 = jnp.zeros((planes,), jnp.float32)

    ref = reference(x, w1, w2, g1, b1, g2, b2)

    # default path: bf16 MXU operands, f32 accumulation (looser tolerance)
    out = basic_block(x, w1, w2, g1, b1, g2, b2)
    jax.block_until_ready(out)
    assert out.shape == (N, planes, H, W)
    assert jnp.allclose(out, ref, atol=5e-2, rtol=5e-2), "bf16 path mismatch vs reference"

    # f32-operand path validates the kernel structure tightly
    out32 = basic_block(x, w1, w2, g1, b1, g2, b2, matmul_dtype=jnp.float32)
    jax.block_until_ready(out32)
    assert jnp.allclose(out32, ref, atol=1e-4, rtol=1e-4), "f32 path mismatch vs reference"

    print("KERNEL_OK")
</pallas_src>

<mosaic_0001>
module attributes {stable_mosaic.version = 11 : i64} {
  func.func @conv3x3_stats_kernel(%arg0: i32, %arg1: memref<1x324x4xf32, #tpu.memory_space<vmem>>, %arg2: memref<9x4x4xbf16, #tpu.memory_space<vmem>>, %arg3: memref<1x4xf32, #tpu.memory_space<vmem>>, %arg4: memref<1x4xf32, #tpu.memory_space<vmem>>, %arg5: memref<324x1xf32, #tpu.memory_space<vmem>>, %arg6: memref<1x324x4xf32, #tpu.memory_space<vmem>>, %arg7: memref<1x4xf32, #tpu.memory_space<vmem>>, %arg8: memref<1x4xf32, #tpu.memory_space<vmem>>, %arg9: memref<372x4xf32, #tpu.memory_space<vmem>>) attributes {dimension_semantics = [#tpu.dimension_semantics<arbitrary>], iteration_bounds = array<i64: 2>, scalar_prefetch = 0 : i64, scratch_operands = 1 : i64, tpu.core_type = #tpu.core_type<tc>, window_params = [{transform_indices = @transform_0, window_bounds = array<i64: 1, 324, 4>}, {pipeline_mode = #tpu.pipeline_mode<synchronous>, transform_indices = @transform_1, window_bounds = array<i64: 9, 4, 4>}, {pipeline_mode = #tpu.pipeline_mode<synchronous>, transform_indices = @transform_2, window_bounds = array<i64: 1, 4>}, {pipeline_mode = #tpu.pipeline_mode<synchronous>, transform_indices = @transform_3, window_bounds = array<i64: 1, 4>}, {pipeline_mode = #tpu.pipeline_mode<synchronous>, transform_indices = @transform_4, window_bounds = array<i64: 324, 1>}, {transform_indices = @transform_5, window_bounds = array<i64: 1, 324, 4>}, {pipeline_mode = #tpu.pipeline_mode<synchronous>, transform_indices = @transform_6, window_bounds = array<i64: 1, 4>}, {pipeline_mode = #tpu.pipeline_mode<synchronous>, transform_indices = @transform_7, window_bounds = array<i64: 1, 4>}]} {
    %c0 = arith.constant 0 : index
    %c0_0 = arith.constant 0 : index
    %0 = vector.load %arg5[%c0, %c0_0] : memref<324x1xf32, #tpu.memory_space<vmem>>, vector<324x1xf32>
    %c0_1 = arith.constant 0 : index
    %c0_2 = arith.constant 0 : index
    %c0_3 = arith.constant 0 : index
    %1 = vector.load %arg1[%c0_1, %c0_2, %c0_3] : memref<1x324x4xf32, #tpu.memory_space<vmem>>, vector<1x324x4xf32>
    %2 = vector.shape_cast %1 : vector<1x324x4xf32> to vector<324x4xf32>
    %c0_4 = arith.constant 0 : index
    %c0_5 = arith.constant 0 : index
    %3 = vector.load %arg3[%c0_4, %c0_5] : memref<1x4xf32, #tpu.memory_space<vmem>>, vector<1x4xf32>
    %4 = vector.broadcast %3 : vector<1x4xf32> to vector<324x4xf32>
    %5 = arith.mulf %2, %4 : vector<324x4xf32>
    %c0_6 = arith.constant 0 : index
    %c0_7 = arith.constant 0 : index
    %6 = vector.load %arg4[%c0_6, %c0_7] : memref<1x4xf32, #tpu.memory_space<vmem>>, vector<1x4xf32>
    %7 = vector.broadcast %6 : vector<1x4xf32> to vector<324x4xf32>
    %8 = arith.addf %5, %7 : vector<324x4xf32>
    %9 = vector.broadcast %0 : vector<324x1xf32> to vector<324x4xf32>
    %10 = arith.mulf %8, %9 : vector<324x4xf32>
    %c0_i32 = arith.constant 0 : i32
    %11 = arith.cmpi eq, %arg0, %c0_i32 : i32
    %12 = arith.extui %11 : i1 to i32
    %c0_i32_8 = arith.constant 0 : i32
    %13 = arith.cmpi ne, %12, %c0_i32_8 : i32
    scf.if %13 {
      %cst_64 = arith.constant 0.000000e+00 : f32
      %86 = vector.broadcast %cst_64 : f32 to vector<372x4xf32>
      %c0_65 = arith.constant 0 : index
      %c0_66 = arith.constant 0 : index
      %87 = vector.load %arg9[%c0_65, %c0_66] : memref<372x4xf32, #tpu.memory_space<vmem>>, vector<372x4xf32>
      tpu.vector_store %arg9[%c0_65, %c0_66], %86 {strides = array<i32>} : memref<372x4xf32, #tpu.memory_space<vmem>>, vector<372x4xf32>,
      %cst_67 = arith.constant 0.000000e+00 : f32
      %88 = vector.broadcast %cst_67 : f32 to vector<1x4xf32>
      %c0_68 = arith.constant 0 : index
      %c0_69 = arith.constant 0 : index
      %89 = vector.load %arg7[%c0_68, %c0_69] : memref<1x4xf32, #tpu.memory_space<vmem>>, vector<1x4xf32>
      tpu.vector_store %arg7[%c0_68, %c0_69], %88 {strides = array<i32>} : memref<1x4xf32, #tpu.memory_space<vmem>>, vector<1x4xf32>,
      %cst_70 = arith.constant 0.000000e+00 : f32
      %90 = vector.broadcast %cst_70 : f32 to vector<1x4xf32>
      %c0_71 = arith.constant 0 : index
      %c0_72 = arith.constant 0 : index
      %91 = vector.load %arg8[%c0_71, %c0_72] : memref<1x4xf32, #tpu.memory_space<vmem>>, vector<1x4xf32>
      tpu.vector_store %arg8[%c0_71, %c0_72], %90 {strides = array<i32>} : memref<1x4xf32, #tpu.memory_space<vmem>>, vector<1x4xf32>,
    } else {
    }
    %c24 = arith.constant 24 : index
    %c0_9 = arith.constant 0 : index
    %14 = vector.load %arg9[%c24, %c0_9] : memref<372x4xf32, #tpu.memory_space<vmem>>, vector<324x4xf32>
    tpu.vector_store %arg9[%c24, %c0_9], %10 {strides = array<i32>} : memref<372x4xf32, #tpu.memory_space<vmem>>, vector<324x4xf32>,
    %cst = arith.constant 0.000000e+00 : f32
    %15 = vector.broadcast %cst : f32 to vector<324x4xf32>
    %c5 = arith.constant 5 : index
    %c0_10 = arith.constant 0 : index
    %16 = vector.load %arg9[%c5, %c0_10] : memref<372x4xf32, #tpu.memory_space<vmem>>, vector<324x4xf32>
    %17 = arith.truncf %16 : vector<324x4xf32> to vector<324x4xbf16>
    %c0_11 = arith.constant 0 : index
    %c0_12 = arith.constant 0 : index
    %c0_13 = arith.constant 0 : index
    %18 = vector.load %arg2[%c0_11, %c0_12, %c0_13] : memref<9x4x4xbf16, #tpu.memory_space<vmem>>, vector<1x4x4xbf16>
    %19 = vector.shape_cast %18 : vector<1x4x4xbf16> to vector<4x4xbf16>
    %cst_14 = arith.constant dense<0.000000e+00> : vector<324x4xf32>
    %20 = tpu.matmul %17, %19, %cst_14 {dimension_numbers = #tpu.dot_dimension_numbers<[1], [0], [0], [1], [0, 0, 1, 1], [], []>} : vector<324x4xbf16>, vector<4x4xbf16>, vector<324x4xf32> -> vector<324x4xf32>
    %21 = arith.addf %15, %20 : vector<324x4xf32>
    %c6 = arith.constant 6 : index
    %c0_15 = arith.constant 0 : index
    %22 = vector.load %arg9[%c6, %c0_15] : memref<372x4xf32, #tpu.memory_space<vmem>>, vector<324x4xf32>
    %23 = arith.truncf %22 : vector<324x4xf32> to vector<324x4xbf16>
    %c1 = arith.constant 1 : index
    %c0_16 = arith.constant 0 : index
    %c0_17 = arith.constant 0 : index
    %24 = vector.load %arg2[%c1, %c0_16, %c0_17] : memref<9x4x4xbf16, #tpu.memory_space<vmem>>, vector<1x4x4xbf16>
    %25 = vector.shape_cast %24 : vector<1x4x4xbf16> to vector<4x4xbf16>
    %cst_18 = arith.constant dense<0.000000e+00> : vector<324x4xf32>
    %26 = tpu.matmul %23, %25, %cst_18 {dimension_numbers = #tpu.dot_dimension_numbers<[1], [0], [0], [1], [0, 0, 1, 1], [], []>} : vector<324x4xbf16>, vector<4x4xbf16>, vector<324x4xf32> -> vector<324x4xf32>
    %27 = arith.addf %21, %26 : vector<324x4xf32>
    %c7 = arith.constant 7 : index
    %c0_19 = arith.constant 0 : index
    %28 = vector.load %arg9[%c7, %c0_19] : memref<372x4xf32, #tpu.memory_space<vmem>>, vector<324x4xf32>
    %29 = arith.truncf %28 : vector<324x4xf32> to vector<324x4xbf16>
    %c2 = arith.constant 2 : index
    %c0_20 = arith.constant 0 : index
    %c0_21 = arith.constant 0 : index
    %30 = vector.load %arg2[%c2, %c0_20, %c0_21] : memref<9x4x4xbf16, #tpu.memory_space<vmem>>, vector<1x4x4xbf16>
    %31 = vector.shape_cast %30 : vector<1x4x4xbf16> to vector<4x4xbf16>
    %cst_22 = arith.constant dense<0.000000e+00> : vector<324x4xf32>
    %32 = tpu.matmul %29, %31, %cst_22 {dimension_numbers = #tpu.dot_dimension_numbers<[1], [0], [0], [1], [0, 0, 1, 1], [], []>} : vector<324x4xbf16>, vector<4x4xbf16>, vector<324x4xf32> -> vector<324x4xf32>
    %33 = arith.addf %27, %32 : vector<324x4xf32>
    %c23 = arith.constant 23 : index
    %c0_23 = arith.constant 0 : index
    %34 = vector.load %arg9[%c23, %c0_23] : memref<372x4xf32, #tpu.memory_space<vmem>>, vector<324x4xf32>
    %35 = arith.truncf %34 : vector<324x4xf32> to vector<324x4xbf16>
    %c3 = arith.constant 3 : index
    %c0_24 = arith.constant 0 : index
    %c0_25 = arith.constant 0 : index
    %36 = vector.load %arg2[%c3, %c0_24, %c0_25] : memref<9x4x4xbf16, #tpu.memory_space<vmem>>, vector<1x4x4xbf16>
    %37 = vector.shape_cast %36 : vector<1x4x4xbf16> to vector<4x4xbf16>
    %cst_26 = arith.constant dense<0.000000e+00> : vector<324x4xf32>
    %38 = tpu.matmul %35, %37, %cst_26 {dimension_numbers = #tpu.dot_dimension_numbers<[1], [0], [0], [1], [0, 0, 1, 1], [], []>} : vector<324x4xbf16>, vector<4x4xbf16>, vector<324x4xf32> -> vector<324x4xf32>
    %39 = arith.addf %33, %38 : vector<324x4xf32>
    %c24_27 = arith.constant 24 : index
    %c0_28 = arith.constant 0 : index
    %40 = vector.load %arg9[%c24_27, %c0_28] : memref<372x4xf32, #tpu.memory_space<vmem>>, vector<324x4xf32>
    %41 = arith.truncf %40 : vector<324x4xf32> to vector<324x4xbf16>
    %c4 = arith.constant 4 : index
    %c0_29 = arith.constant 0 : index
    %c0_30 = arith.constant 0 : index
    %42 = vector.load %arg2[%c4, %c0_29, %c0_30] : memref<9x4x4xbf16, #tpu.memory_space<vmem>>, vector<1x4x4xbf16>
    %43 = vector.shape_cast %42 : vector<1x4x4xbf16> to vector<4x4xbf16>
    %cst_31 = arith.constant dense<0.000000e+00> : vector<324x4xf32>
    %44 = tpu.matmul %41, %43, %cst_31 {dimension_numbers = #tpu.dot_dimension_numbers<[1], [0], [0], [1], [0, 0, 1, 1], [], []>} : vector<324x4xbf16>, vector<4x4xbf16>, vector<324x4xf32> -> vector<324x4xf32>
    %45 = arith.addf %39, %44 : vector<324x4xf32>
    %c25 = arith.constant 25 : index
    %c0_32 = arith.constant 0 : index
    %46 = vector.load %arg9[%c25, %c0_32] : memref<372x4xf32, #tpu.memory_space<vmem>>, vector<324x4xf32>
    %47 = arith.truncf %46 : vector<324x4xf32> to vector<324x4xbf16>
    %c5_33 = arith.constant 5 : index
    %c0_34 = arith.constant 0 : index
    %c0_35 = arith.constant 0 : index
    %48 = vector.load %arg2[%c5_33, %c0_34, %c0_35] : memref<9x4x4xbf16, #tpu.memory_space<vmem>>, vector<1x4x4xbf16>
    %49 = vector.shape_cast %48 : vector<1x4x4xbf16> to vector<4x4xbf16>
    %cst_36 = arith.constant dense<0.000000e+00> : vector<324x4xf32>
    %50 = tpu.matmul %47, %49, %cst_36 {dimension_numbers = #tpu.dot_dimension_numbers<[1], [0], [0], [1], [0, 0, 1, 1], [], []>} : vector<324x4xbf16>, vector<4x4xbf16>, vector<324x4xf32> -> vector<324x4xf32>
    %51 = arith.addf %45, %50 : vector<324x4xf32>
    %c41 = arith.constant 41 : index
    %c0_37 = arith.constant 0 : index
    %52 = vector.load %arg9[%c41, %c0_37] : memref<372x4xf32, #tpu.memory_space<vmem>>, vector<324x4xf32>
    %53 = arith.truncf %52 : vector<324x4xf32> to vector<324x4xbf16>
    %c6_38 = arith.constant 6 : index
    %c0_39 = arith.constant 0 : index
    %c0_40 = arith.constant 0 : index
    %54 = vector.load %arg2[%c6_38, %c0_39, %c0_40] : memref<9x4x4xbf16, #tpu.memory_space<vmem>>, vector<1x4x4xbf16>
    %55 = vector.shape_cast %54 : vector<1x4x4xbf16> to vector<4x4xbf16>
    %cst_41 = arith.constant dense<0.000000e+00> : vector<324x4xf32>
    %56 = tpu.matmul %53, %55, %cst_41 {dimension_numbers = #tpu.dot_dimension_numbers<[1], [0], [0], [1], [0, 0, 1, 1], [], []>} : vector<324x4xbf16>, vector<4x4xbf16>, vector<324x4xf32> -> vector<324x4xf32>
    %57 = arith.addf %51, %56 : vector<324x4xf32>
    %c42 = arith.constant 42 : index
    %c0_42 = arith.constant 0 : index
    %58 = vector.load %arg9[%c42, %c0_42] : memref<372x4xf32, #tpu.memory_space<vmem>>, vector<324x4xf32>
    %59 = arith.truncf %58 : vector<324x4xf32> to vector<324x4xbf16>
    %c7_43 = arith.constant 7 : index
    %c0_44 = arith.constant 0 : index
    %c0_45 = arith.constant 0 : index
    %60 = vector.load %arg2[%c7_43, %c0_44, %c0_45] : memref<9x4x4xbf16, #tpu.memory_space<vmem>>, vector<1x4x4xbf16>
    %61 = vector.shape_cast %60 : vector<1x4x4xbf16> to vector<4x4xbf16>
    %cst_46 = arith.constant dense<0.000000e+00> : vector<324x4xf32>
    %62 = tpu.matmul %59, %61, %cst_46 {dimension_numbers = #tpu.dot_dimension_numbers<[1], [0], [0], [1], [0, 0, 1, 1], [], []>} : vector<324x4xbf16>, vector<4x4xbf16>, vector<324x4xf32> -> vector<324x4xf32>
    %63 = arith.addf %57, %62 : vector<324x4xf32>
    %c43 = arith.constant 43 : index
    %c0_47 = arith.constant 0 : index
    %64 = vector.load %arg9[%c43, %c0_47] : memref<372x4xf32, #tpu.memory_space<vmem>>, vector<324x4xf32>
    %65 = arith.truncf %64 : vector<324x4xf32> to vector<324x4xbf16>
    %c8 = arith.constant 8 : index
    %c0_48 = arith.constant 0 : index
    %c0_49 = arith.constant 0 : index
    %66 = vector.load %arg2[%c8, %c0_48, %c0_49] : memref<9x4x4xbf16, #tpu.memory_space<vmem>>, vector<1x4x4xbf16>
    %67 = vector.shape_cast %66 : vector<1x4x4xbf16> to vector<4x4xbf16>
    %cst_50 = arith.constant dense<0.000000e+00> : vector<324x4xf32>
    %68 = tpu.matmul %65, %67, %cst_50 {dimension_numbers = #tpu.dot_dimension_numbers<[1], [0], [0], [1], [0, 0, 1, 1], [], []>} : vector<324x4xbf16>, vector<4x4xbf16>, vector<324x4xf32> -> vector<324x4xf32>
    %69 = arith.addf %63, %68 : vector<324x4xf32>
    %70 = vector.broadcast %0 : vector<324x1xf32> to vector<324x4xf32>
    %71 = arith.mulf %69, %70 : vector<324x4xf32>
    %c0_51 = arith.constant 0 : index
    %c0_52 = arith.constant 0 : index
    %c0_53 = arith.constant 0 : index
    %72 = vector.load %arg6[%c0_51, %c0_52, %c0_53] : memref<1x324x4xf32, #tpu.memory_space<vmem>>, vector<1x324x4xf32>
    %73 = vector.shape_cast %72 : vector<1x324x4xf32> to vector<324x4xf32>
    %74 = vector.shape_cast %71 : vector<324x4xf32> to vector<1x324x4xf32>
    tpu.vector_store %arg6[%c0_51, %c0_52, %c0_53], %74 {strides = array<i32>} : memref<1x324x4xf32, #tpu.memory_space<vmem>>, vector<1x324x4xf32>,
    %c0_54 = arith.constant 0 : index
    %c0_55 = arith.constant 0 : index
    %75 = vector.load %arg7[%c0_54, %c0_55] : memref<1x4xf32, #tpu.memory_space<vmem>>, vector<1x4xf32>
    %cst_56 = arith.constant dense<0.000000e+00> : vector<4xf32>
    %76 = vector.multi_reduction <add>, %71, %cst_56 [0] : vector<324x4xf32> to vector<4xf32>
    %77 = vector.shape_cast %76 : vector<4xf32> to vector<1x4xf32>
    %78 = arith.addf %75, %77 : vector<1x4xf32>
    %c0_57 = arith.constant 0 : index
    %c0_58 = arith.constant 0 : index
    %79 = vector.load %arg7[%c0_57, %c0_58] : memref<1x4xf32, #tpu.memory_space<vmem>>, vector<1x4xf32>
    tpu.vector_store %arg7[%c0_57, %c0_58], %78 {strides = array<i32>} : memref<1x4xf32, #tpu.memory_space<vmem>>, vector<1x4xf32>,
    %c0_59 = arith.constant 0 : index
    %c0_60 = arith.constant 0 : index
    %80 = vector.load %arg8[%c0_59, %c0_60] : memref<1x4xf32, #tpu.memory_space<vmem>>, vector<1x4xf32>
    %81 = arith.mulf %71, %71 : vector<324x4xf32>
    %cst_61 = arith.constant dense<0.000000e+00> : vector<4xf32>
    %82 = vector.multi_reduction <add>, %81, %cst_61 [0] : vector<324x4xf32> to vector<4xf32>
    %83 = vector.shape_cast %82 : vector<4xf32> to vector<1x4xf32>
    %84 = arith.addf %80, %83 : vector<1x4xf32>
    %c0_62 = arith.constant 0 : index
    %c0_63 = arith.constant 0 : index
    %85 = vector.load %arg8[%c0_62, %c0_63] : memref<1x4xf32, #tpu.memory_space<vmem>>, vector<1x4xf32>
    tpu.vector_store %arg8[%c0_62, %c0_63], %84 {strides = array<i32>} : memref<1x4xf32, #tpu.memory_space<vmem>>, vector<1x4xf32>,
    return
  }
  func.func @transform_0(%arg0: i32) -> (i32, i32, i32) {
    %c0_i32 = arith.constant 0 : i32
    %c0_i32_0 = arith.constant 0 : i32
    %c0_i32_1 = arith.constant 0 : i32
    return %arg0, %c0_i32, %c0_i32_0 : i32, i32, i32
  }
  func.func @transform_1(%arg0: i32) -> (i32, i32, i32) {
    %c0_i32 = arith.constant 0 : i32
    %c0_i32_0 = arith.constant 0 : i32
    %c0_i32_1 = arith.constant 0 : i32
    %c0_i32_2 = arith.constant 0 : i32
    return %c0_i32, %c0_i32_0, %c0_i32_1 : i32, i32, i32
  }
  func.func @transform_2(%arg0: i32) -> (i32, i32) {
    %c0_i32 = arith.constant 0 : i32
    %c0_i32_0 = arith.constant 0 : i32
    %c0_i32_1 = arith.constant 0 : i32
    return %c0_i32, %c0_i32_0 : i32, i32
  }
  func.func @transform_3(%arg0: i32) -> (i32, i32) {
    %c0_i32 = arith.constant 0 : i32
    %c0_i32_0 = arith.constant 0 : i32
    %c0_i32_1 = arith.constant 0 : i32
    return %c0_i32, %c0_i32_0 : i32, i32
  }
  func.func @transform_4(%arg0: i32) -> (i32, i32) {
    %c0_i32 = arith.constant 0 : i32
    %c0_i32_0 = arith.constant 0 : i32
    %c0_i32_1 = arith.constant 0 : i32
    return %c0_i32, %c0_i32_0 : i32, i32
  }
  func.func @transform_5(%arg0: i32) -> (i32, i32, i32) {
    %c0_i32 = arith.constant 0 : i32
    %c0_i32_0 = arith.constant 0 : i32
    %c0_i32_1 = arith.constant 0 : i32
    return %arg0, %c0_i32, %c0_i32_0 : i32, i32, i32
  }
  func.func @transform_6(%arg0: i32) -> (i32, i32) {
    %c0_i32 = arith.constant 0 : i32
    %c0_i32_0 = arith.constant 0 : i32
    %c0_i32_1 = arith.constant 0 : i32
    return %c0_i32, %c0_i32_0 : i32, i32
  }
  func.func @transform_7(%arg0: i32) -> (i32, i32) {
    %c0_i32 = arith.constant 0 : i32
    %c0_i32_0 = arith.constant 0 : i32
    %c0_i32_1 = arith.constant 0 : i32
    return %c0_i32, %c0_i32_0 : i32, i32
  }
}

</mosaic_0001>

<llo_original>
// kernel: tpu_custom_call.1
$region0: #{tpu_custom_call.1}
  #allocation0 [shape = 'u32[]', space=smem, size = 0x4, offset = 0x4, fixed_abs, tag = 'smem constant byte address 0x4 - core index']
  #allocation1 [shape = 'u32[144,128]{1,0:T(1,128)}', space=vmem, size = 0x12000, scoped, tag = 'internal scratch']
  #allocation2 [shape = 'f32[372,4]{1,0:T(8,128)}', space=vmem, size = 0x2f000, scoped, tag = 'scratch operand']
  %s0 = inlined_call_operand.vmem [shape: f32[2,324,4], index: 0, kind: input, shape index: {}]
  %s1 = inlined_call_operand.vmem [shape: bf16[9,4,4], index: 1, kind: input, shape index: {}]
  %s2 = inlined_call_operand.vmem [shape: f32[1,4], index: 2, kind: input, shape index: {}]
  %s3 = inlined_call_operand.vmem [shape: f32[1,4], index: 3, kind: input, shape index: {}]
  %s4 = inlined_call_operand.vmem [shape: f32[324,1], index: 4, kind: input, shape index: {}]
  %s5 = inlined_call_operand.vmem [shape: f32[2,324,4], index: 5, kind: output, shape index: {0}]
  %s6 = inlined_call_operand.hbm [shape: f32[1,4], index: 6, kind: output, shape index: {1}]
  %s7 = inlined_call_operand.hbm [shape: f32[1,4], index: 7, kind: output, shape index: {2}]
  %8 = xla_tuple %s5, %s6, %s7
  %s9 = sld [smem:[#allocation0]]
  $region73: #{tpu_custom_call.1} parent=0
    _
  %s11 = ssub.s32 1, %s9
  %s12 = scalar_select 0, %s11, %s9
  $region1: #{tpu_custom_call.1} parent=0
    #allocation3 [shape = 'u8[512]{0}', space=vmem, size = 0x400, scoped, tag = 'output window, operand 1, single buffered']
    #allocation4 [shape = 's32[2]{0}', space=sflag, size = 0x8, scoped, tag = 'scoped memory for tpu_custom_call.1']
    #allocation5 [shape = 'u8[512]{0}', space=vmem, size = 0x400, scoped, tag = 'output window, operand 2, single buffered']
    #allocation6 [shape = 's32[1]{0}', space=sflag, size = 0x4, scoped, tag = 'scoped memory for tpu_custom_call.1']
    %13 = vsyncpa [#allocation4], 0
    %14 = vsyncpa [#allocation6], 0
    loop: start=0, step=1, limit=4
    $region2: #{tpu_custom_call.1} parent=1 // loop_pre_header
      _
    $region3: #{tpu_custom_call.1} parent=1 // loop_header
      %s16 = sphi 0, %s20
      %p17 = scmp.ge.s32.totalorder %s16, 4
      %s26 = sphi 0, %s28
      %s29 = sphi 0, %s26
      %s30 = sphi 0, %s29
      %s46 = sphi 0, %s30
      %s50 = sphi 0, %s50
      %s52 = sphi 0, %s50
      %s53 = sphi 0, %s52
      %s67 = sphi 0, %s53
      %s71 = sphi 0, %s71
      %s73 = sphi 0, %s71
      %s74 = sphi 0, %s73
      %s88 = sphi 0, %s74
      %s92 = sphi 0, %s92
      %s94 = sphi 0, %s92
      %s95 = sphi 0, %s94
      %s109 = sphi 0, %s95
      %s113 = sphi 0, %s113
      %s115 = sphi 0, %s113
      %s116 = sphi 0, %s115
      %s130 = sphi 0, %s116
      %s136 = sphi 0, %s138
      %s139 = sphi 0, %s136
      %s140 = sphi 0, %s139
      %s156 = sphi 0, %s140
      %s160 = sphi 0, %s160
      %s162 = sphi 0, %s160
      %s163 = sphi 0, %s162
      %s177 = sphi 0, %s163
      %s181 = sphi 0, %s181
      %s183 = sphi 0, %s181
      %s184 = sphi 0, %s183
      %s198 = sphi 0, %s184
    $region4: #{tpu_custom_call.1} parent=1 // loop_header_branch
      %19 = sbr.rel (%p17) target = $region8
    $region5: #{tpu_custom_call.1} parent=1 // loop_body
      %s21 = ssub.s32 %s16, 1
      %s22 = ssub.s32 %s16, 2
      %s23 = sadd.s32 %s16, 1
      %s24 = ssub.s32 %s16, %s23
      %p25 = scmp.eq.s32.totalorder %s24, 0
      %s27 = sadd.s32 %s26, 1
      %s28 = scalar_select %p25, %s26, %s27
      %p31 = pneg %p25
      %p32 = scmp.eq.s32.totalorder %s16, 1
      %p33 = por %p31, %p32
      %p34 = scmp.ne.s32.totalorder %s26, %s29
      %p35 = scmp.eq.s32.totalorder %s16, 0
      %p36 = por %p34, %p35
      %p37 = scmp.ne.s32.totalorder %s26, %s29
      %p38 = scmp.eq.s32.totalorder %s21, 1
      %p39 = por %p37, %p38
      %p40 = scmp.ne.s32.totalorder %s29, %s30
      %p41 = scmp.eq.s32.totalorder %s21, 0
      %p42 = por %p40, %p41
      %p43 = scmp.ne.s32.totalorder %s29, %s30
      %p44 = scmp.eq.s32.totalorder %s22, 1
      %p45 = por %p43, %p44
      %p47 = scmp.ne.s32.totalorder %s30, %s46
      %p48 = scmp.eq.s32.totalorder %s22, 0
      %p49 = por %p47, %p48
      %s51 = sadd.s32 %s50, 1
      %p54 = scmp.eq.s32.totalorder %s16, 1
      %p55 = scmp.ne.s32.totalorder %s50, %s52
      %p56 = scmp.eq.s32.totalorder %s16, 0
      %p57 = por %p55, %p56
      %p58 = scmp.ne.s32.totalorder %s50, %s52
      %p59 = scmp.eq.s32.totalorder %s21, 1
      %p60 = por %p58, %p59
      %p61 = scmp.ne.s32.totalorder %s52, %s53
      %p62 = scmp.eq.s32.totalorder %s21, 0
      %p63 = por %p61, %p62
      %p64 = scmp.ne.s32.totalorder %s52, %s53
      %p65 = scmp.eq.s32.totalorder %s22, 1
      %p66 = por %p64, %p65
      %p68 = scmp.ne.s32.totalorder %s53, %s67
      %p69 = scmp.eq.s32.totalorder %s22, 0
      %p70 = por %p68, %p69
      %s72 = sadd.s32 %s71, 1
      %p75 = scmp.eq.s32.totalorder %s16, 1
      %p76 = scmp.ne.s32.totalorder %s71, %s73
      %p77 = scmp.eq.s32.totalorder %s16, 0
      %p78 = por %p76, %p77
      %p79 = scmp.ne.s32.totalorder %s71, %s73
      %p80 = scmp.eq.s32.totalorder %s21, 1
      %p81 = por %p79, %p80
      %p82 = scmp.ne.s32.totalorder %s73, %s74
      %p83 = scmp.eq.s32.totalorder %s21, 0
      %p84 = por %p82, %p83
      %p85 = scmp.ne.s32.totalorder %s73, %s74
      %p86 = scmp.eq.s32.totalorder %s22, 1
      %p87 = por %p85, %p86
      %p89 = scmp.ne.s32.totalorder %s74, %s88
      %p90 = scmp.eq.s32.totalorder %s22, 0
      %p91 = por %p89, %p90
      %s93 = sadd.s32 %s92, 1
      %p96 = scmp.eq.s32.totalorder %s16, 1
      %p97 = scmp.ne.s32.totalorder %s92, %s94
      %p98 = scmp.eq.s32.totalorder %s16, 0
      %p99 = por %p97, %p98
      %p100 = scmp.ne.s32.totalorder %s92, %s94
      %p101 = scmp.eq.s32.totalorder %s21, 1
      %p102 = por %p100, %p101
      %p103 = scmp.ne.s32.totalorder %s94, %s95
      %p104 = scmp.eq.s32.totalorder %s21, 0
      %p105 = por %p103, %p104
      %p106 = scmp.ne.s32.totalorder %s94, %s95
      %p107 = scmp.eq.s32.totalorder %s22, 1
      %p108 = por %p106, %p107
      %p110 = scmp.ne.s32.totalorder %s95, %s109
      %p111 = scmp.eq.s32.totalorder %s22, 0
      %p112 = por %p110, %p111
      %s114 = sadd.s32 %s113, 1
      %p117 = scmp.eq.s32.totalorder %s16, 1
      %p118 = scmp.ne.s32.totalorder %s113, %s115
      %p119 = scmp.eq.s32.totalorder %s16, 0
      %p120 = por %p118, %p119
      %p121 = scmp.ne.s32.totalorder %s113, %s115
      %p122 = scmp.eq.s32.totalorder %s21, 1
      %p123 = por %p121, %p122
      %p124 = scmp.ne.s32.totalorder %s115, %s116
      %p125 = scmp.eq.s32.totalorder %s21, 0
      %p126 = por %p124, %p125
      %p127 = scmp.ne.s32.totalorder %s115, %s116
      %p128 = scmp.eq.s32.totalorder %s22, 1
      %p129 = por %p127, %p128
      %p131 = scmp.ne.s32.totalorder %s116, %s130
      %p132 = scmp.eq.s32.totalorder %s22, 0
      %p133 = por %p131, %p132
      %s134 = ssub.s32 %s16, %s23
      %p135 = scmp.eq.s32.totalorder %s134, 0
      %s137 = sadd.s32 %s136, 1
      %s138 = scalar_select %p135, %s136, %s137
      %p141 = pneg %p135
      %p142 = scmp.eq.s32.totalorder %s16, 1
      %p143 = por %p141, %p142
      %p144 = scmp.ne.s32.totalorder %s136, %s139
      %p145 = scmp.eq.s32.totalorder %s16, 0
      %p146 = por %p144, %p145
      %p147 = scmp.ne.s32.totalorder %s136, %s139
      %p148 = scmp.eq.s32.totalorder %s21, 1
      %p149 = por %p147, %p148
      %p150 = scmp.ne.s32.totalorder %s139, %s140
      %p151 = scmp.eq.s32.totalorder %s21, 0
      %p152 = por %p150, %p151
      %p153 = scmp.ne.s32.totalorder %s139, %s140
      %p154 = scmp.eq.s32.totalorder %s22, 1
      %p155 = por %p153, %p154
      %p157 = scmp.ne.s32.totalorder %s140, %s156
      %p158 = scmp.eq.s32.totalorder %s22, 0
      %p159 = por %p157, %p158
      %s161 = sadd.s32 %s160, 1
      %p164 = scmp.eq.s32.totalorder %s16, 1
      %p165 = scmp.ne.s32.totalorder %s160, %s162
      %p166 = scmp.eq.s32.totalorder %s16, 0
      %p167 = por %p165, %p166
      %p168 = scmp.ne.s32.totalorder %s160, %s162
      %p169 = scmp.eq.s32.totalorder %s21, 1
      %p170 = por %p168, %p169
      %p171 = scmp.ne.s32.totalorder %s162, %s163
      %p172 = scmp.eq.s32.totalorder %s21, 0
      %p173 = por %p171, %p172
      %p174 = scmp.ne.s32.totalorder %s162, %s163
      %p175 = scmp.eq.s32.totalorder %s22, 1
      %p176 = por %p174, %p175
      %p178 = scmp.ne.s32.totalorder %s163, %s177
      %p179 = scmp.eq.s32.totalorder %s22, 0
      %p180 = por %p178, %p179
      %s182 = sadd.s32 %s181, 1
      %p185 = scmp.eq.s32.totalorder %s16, 1
      %p186 = scmp.ne.s32.totalorder %s181, %s183
      %p187 = scmp.eq.s32.totalorder %s16, 0
      %p188 = por %p186, %p187
      %p189 = scmp.ne.s32.totalorder %s181, %s183
      %p190 = scmp.eq.s32.totalorder %s21, 1
      %p191 = por %p189, %p190
      %p192 = scmp.ne.s32.totalorder %s183, %s184
      %p193 = scmp.eq.s32.totalorder %s21, 0
      %p194 = por %p192, %p193
      %p195 = scmp.ne.s32.totalorder %s183, %s184
      %p196 = scmp.eq.s32.totalorder %s22, 1
      %p197 = por %p195, %p196
      %p199 = scmp.ne.s32.totalorder %s184, %s198
      %p200 = scmp.eq.s32.totalorder %s22, 0
      %p201 = por %p199, %p200
      %p202 = scmp.le.s32.totalorder 1, %s16
      %p203 = scmp.lt.s32.totalorder %s16, 3
      %p204 = pnand %p202, %p203
      %p205 = pneg %p204
      // Predicated region
      $region9: #{tpu_custom_call.1} parent=5 // pred_check
        _
      $region10: #{tpu_custom_call.1} parent=5 // pred_check_branch
        %207 = sbr.rel (%p204) target = $region12
      $region11: #{tpu_custom_call.1} parent=5 // pred_region
        %s208 = ssub.s32 %s16, 1
        // Predicated region
        $region13: #{tpu_custom_call.1} parent=11 // pred_check
          %p209 = pneg %p63
        $region14: #{tpu_custom_call.1} parent=11 // pred_check_branch
          %211 = sbr.rel (%p209) target = $region16
        $region15: #{tpu_custom_call.1} parent=11 // pred_region
          _
        $region16: #{tpu_custom_call.1} parent=11 // pred_fallthru
          _
        // Predicated region
        $region17: #{tpu_custom_call.1} parent=11 // pred_check
          %p212 = pneg %p84
        $region18: #{tpu_custom_call.1} parent=11 // pred_check_branch
          %214 = sbr.rel (%p212) target = $region20
        $region19: #{tpu_custom_call.1} parent=11 // pred_region
          _
        $region20: #{tpu_custom_call.1} parent=11 // pred_fallthru
          _
        // Predicated region
        $region21: #{tpu_custom_call.1} parent=11 // pred_check
          %p215 = pneg %p105
        $region22: #{tpu_custom_call.1} parent=11 // pred_check_branch
          %217 = sbr.rel (%p215) target = $region24
        $region23: #{tpu_custom_call.1} parent=11 // pred_region
          _
        $region24: #{tpu_custom_call.1} parent=11 // pred_fallthru
          _
        // Predicated region
        $region25: #{tpu_custom_call.1} parent=11 // pred_check
          %p218 = pneg %p126
        $region26: #{tpu_custom_call.1} parent=11 // pred_check_branch
          %220 = sbr.rel (%p218) target = $region28
        $region27: #{tpu_custom_call.1} parent=11 // pred_region
          _
        $region28: #{tpu_custom_call.1} parent=11 // pred_fallthru
          _
      $region12: #{tpu_custom_call.1} parent=5 // pred_fallthru
        _
      %p221 = scmp.lt.s32.totalorder %s16, 2
      // Predicated region
      $region29: #{tpu_custom_call.1} parent=5 // pred_check
        %p222 = pneg %p221
      $region30: #{tpu_custom_call.1} parent=5 // pred_check_branch
        %224 = sbr.rel (%p222) target = $region32
      $region31: #{tpu_custom_call.1} parent=5 // pred_region
        // Predicated region
        $region33: #{tpu_custom_call.1} parent=31 // pred_check
          %p225 = pneg %p36
        $region34: #{tpu_custom_call.1} parent=31 // pred_check_branch
          %227 = sbr.rel (%p225) target = $region36
        $region35: #{tpu_custom_call.1} parent=31 // pred_region
          %p228 = scmp.lt.s32.totalorder %s16, 1
          %s229 = scalar_select %p228, %s16, 1
          %s230 = smul.addr %s229, 41
          %s231 = smul.addr %s230, 8
          %s232 = scalar_lea.vmem %s0, %s231
        $region36: #{tpu_custom_call.1} parent=31 // pred_fallthru
          _
      $region32: #{tpu_custom_call.1} parent=5 // pred_fallthru
        _
      %p233 = scmp.le.s32.totalorder 1, %s16
      %p234 = scmp.lt.s32.totalorder %s16, 3
      %p235 = pnand %p233, %p234
      %p236 = pneg %p235
      // Predicated region
      $region37: #{tpu_custom_call.1} parent=5 // pred_check
        _
      $region38: #{tpu_custom_call.1} parent=5 // pred_check_branch
        %238 = sbr.rel (%p235) target = $region40
      $region39: #{tpu_custom_call.1} parent=5 // pred_region
        %s239 = ssub.s32 %s16, 1
        %p240 = scmp.lt.s32.totalorder %s21, 1
        %s241 = scalar_select %p240, %s21, 1
        %s242 = smul.addr %s241, 41
        %s243 = smul.addr %s242, 8
        %s244 = scalar_lea.vmem %s0, %s243
        %p245 = pneg %p42
        %p246 = pneg %p39
        %p247 = pneg %p63
        %p248 = pneg %p60
        %p249 = pneg %p84
        %p250 = pneg %p81
        %p251 = pneg %p105
        %p252 = pneg %p102
        %p253 = pneg %p126
        %p254 = pneg %p123
        %p255 = pneg %p152
        %p256 = pneg %p149
        %p257 = scmp.lt.s32.totalorder %s21, 1
        %s258 = scalar_select %p257, %s21, 1
        %s259 = smul.addr %s258, 41
        %s260 = smul.addr %s259, 8
        %s261 = scalar_lea.vmem %s5, %s260
        %p262 = pneg %p173
        %p263 = pneg %p170
        %p264 = pneg %p194
        %p265 = pneg %p191
        %p266 = scmp.lt.s32.totalorder %s21, 1
        %s267 = scalar_select %p266, %s21, 1
        %s268 = smul.addr %s267, 41
        %s269 = smul.addr %s268, 8
        %s270 = scalar_lea.vmem %s0, %s269
        %p271 = scmp.lt.s32.totalorder %s21, 1
        %s272 = scalar_select %p271, %s21, 1
        %s273 = smul.addr %s272, 41
        %s274 = smul.addr %s273, 8
        %s275 = scalar_lea.vmem %s5, %s274
        %v277 = vld [vmem:[%s4] sm:$0xff]
        %v278 = vld [vmem:[%s4 + $0x8] sm:$0xff]
        %v279 = vld [vmem:[%s4 + $0x10] sm:$0xff]
        %v280 = vld [vmem:[%s4 + $0x18] sm:$0xff]
        %v281 = vld [vmem:[%s4 + $0x20] sm:$0xff]
        %v282 = vld [vmem:[%s4 + $0x28] sm:$0xff]
        %v283 = vld [vmem:[%s4 + $0x30] sm:$0xff]
        %v284 = vld [vmem:[%s4 + $0x38] sm:$0xff]
        %v285 = vld [vmem:[%s4 + $0x40] sm:$0xff]
        %v286 = vld [vmem:[%s4 + $0x48] sm:$0xff]
        %v287 = vld [vmem:[%s4 + $0x50] sm:$0xff]
        %v288 = vld [vmem:[%s4 + $0x58] sm:$0xff]
        %v289 = vld [vmem:[%s4 + $0x60] sm:$0xff]
        %v290 = vld [vmem:[%s4 + $0x68] sm:$0xff]
        %v291 = vld [vmem:[%s4 + $0x70] sm:$0xff]
        %v292 = vld [vmem:[%s4 + $0x78] sm:$0xff]
        %v293 = vld [vmem:[%s4 + $0x80] sm:$0xff]
        %v294 = vld [vmem:[%s4 + $0x88] sm:$0xff]
        %v295 = vld [vmem:[%s4 + $0x90] sm:$0xff]
        %v296 = vld [vmem:[%s4 + $0x98] sm:$0xff]
        %v297 = vld [vmem:[%s4 + $0xa0] sm:$0xff]
        %v298 = vld [vmem:[%s4 + $0xa8] sm:$0xff]
        %v299 = vld [vmem:[%s4 + $0xb0] sm:$0xff]
        %v300 = vld [vmem:[%s4 + $0xb8] sm:$0xff]
        %v301 = vld [vmem:[%s4 + $0xc0] sm:$0xff]
        %v302 = vld [vmem:[%s4 + $0xc8] sm:$0xff]
        %v303 = vld [vmem:[%s4 + $0xd0] sm:$0xff]
        %v304 = vld [vmem:[%s4 + $0xd8] sm:$0xff]
        %v305 = vld [vmem:[%s4 + $0xe0] sm:$0xff]
        %v306 = vld [vmem:[%s4 + $0xe8] sm:$0xff]
        %v307 = vld [vmem:[%s4 + $0xf0] sm:$0xff]
        %v308 = vld [vmem:[%s4 + $0xf8] sm:$0xff]
        %v309 = vld [vmem:[%s4 + $0x100] sm:$0xff]
        %v310 = vld [vmem:[%s4 + $0x108] sm:$0xff]
        %v311 = vld [vmem:[%s4 + $0x110] sm:$0xff]
        %v312 = vld [vmem:[%s4 + $0x118] sm:$0xff]
        %v313 = vld [vmem:[%s4 + $0x120] sm:$0xff]
        %v314 = vld [vmem:[%s4 + $0x128] sm:$0xff]
        %v315 = vld [vmem:[%s4 + $0x130] sm:$0xff]
        %v316 = vld [vmem:[%s4 + $0x138] sm:$0xff]
        %v317 = vld [vmem:[%s4 + $0x140] sm:$0xf]
        %v318 = vld [vmem:[%s270] sm:$0xff]
        %v319 = vld [vmem:[%s270 + $0x8] sm:$0xff]
        %v320 = vld [vmem:[%s270 + $0x10] sm:$0xff]
        %v321 = vld [vmem:[%s270 + $0x18] sm:$0xff]
        %v322 = vld [vmem:[%s270 + $0x20] sm:$0xff]
        %v323 = vld [vmem:[%s270 + $0x28] sm:$0xff]
        %v324 = vld [vmem:[%s270 + $0x30] sm:$0xff]
        %v325 = vld [vmem:[%s270 + $0x38] sm:$0xff]
        %v326 = vld [vmem:[%s270 + $0x40] sm:$0xff]
        %v327 = vld [vmem:[%s270 + $0x48] sm:$0xff]
        %v328 = vld [vmem:[%s270 + $0x50] sm:$0xff]
        %v329 = vld [vmem:[%s270 + $0x58] sm:$0xff]
        %v330 = vld [vmem:[%s270 + $0x60] sm:$0xff]
        %v331 = vld [vmem:[%s270 + $0x68] sm:$0xff]
        %v332 = vld [vmem:[%s270 + $0x70] sm:$0xff]
        %v333 = vld [vmem:[%s270 + $0x78] sm:$0xff]
        %v334 = vld [vmem:[%s270 + $0x80] sm:$0xff]
        %v335 = vld [vmem:[%s270 + $0x88] sm:$0xff]
        %v336 = vld [vmem:[%s270 + $0x90] sm:$0xff]
        %v337 = vld [vmem:[%s270 + $0x98] sm:$0xff]
        %v338 = vld [vmem:[%s270 + $0xa0] sm:$0xff]
        %v339 = vld [vmem:[%s270 + $0xa8] sm:$0xff]
        %v340 = vld [vmem:[%s270 + $0xb0] sm:$0xff]
        %v341 = vld [vmem:[%s270 + $0xb8] sm:$0xff]
        %v342 = vld [vmem:[%s270 + $0xc0] sm:$0xff]
        %v343 = vld [vmem:[%s270 + $0xc8] sm:$0xff]
        %v344 = vld [vmem:[%s270 + $0xd0] sm:$0xff]
        %v345 = vld [vmem:[%s270 + $0xd8] sm:$0xff]
        %v346 = vld [vmem:[%s270 + $0xe0] sm:$0xff]
        %v347 = vld [vmem:[%s270 + $0xe8] sm:$0xff]
        %v348 = vld [vmem:[%s270 + $0xf0] sm:$0xff]
        %v349 = vld [vmem:[%s270 + $0xf8] sm:$0xff]
        %v350 = vld [vmem:[%s270 + $0x100] sm:$0xff]
        %v351 = vld [vmem:[%s270 + $0x108] sm:$0xff]
        %v352 = vld [vmem:[%s270 + $0x110] sm:$0xff]
        %v353 = vld [vmem:[%s270 + $0x118] sm:$0xff]
        %v354 = vld [vmem:[%s270 + $0x120] sm:$0xff]
        %v355 = vld [vmem:[%s270 + $0x128] sm:$0xff]
        %v356 = vld [vmem:[%s270 + $0x130] sm:$0xff]
        %v357 = vld [vmem:[%s270 + $0x138] sm:$0xff]
        %v358 = vld [vmem:[%s270 + $0x140] sm:$0xf]
        %v359 = vld [vmem:[%s2] sm:$0x1]
        %v361 = vlaneseq
        %v362 = vshrl.u32 %v361, 7
        %v363 = vsub.s32 0, %v362
        %v364 = vrot.slane %v359, %v363
        %v366 = vmul.f32 %v318, %v364
        %v367 = vmul.f32 %v319, %v364
        %v368 = vmul.f32 %v320, %v364
        %v369 = vmul.f32 %v321, %v364
        %v370 = vmul.f32 %v322, %v364
        %v371 = vmul.f32 %v323, %v364
        %v372 = vmul.f32 %v324, %v364
        %v373 = vmul.f32 %v325, %v364
        %v374 = vmul.f32 %v326, %v364
        %v375 = vmul.f32 %v327, %v364
        %v376 = vmul.f32 %v328, %v364
        %v377 = vmul.f32 %v329, %v364
        %v378 = vmul.f32 %v330, %v364
        %v379 = vmul.f32 %v331, %v364
        %v380 = vmul.f32 %v332, %v364
        %v381 = vmul.f32 %v333, %v364
        %v382 = vmul.f32 %v334, %v364
        %v383 = vmul.f32 %v335, %v364
        %v384 = vmul.f32 %v336, %v364
        %v385 = vmul.f32 %v337, %v364
        %v386 = vmul.f32 %v338, %v364
        %v387 = vmul.f32 %v339, %v364
        %v388 = vmul.f32 %v340, %v364
        %v389 = vmul.f32 %v341, %v364
        %v390 = vmul.f32 %v342, %v364
        %v391 = vmul.f32 %v343, %v364
        %v392 = vmul.f32 %v344, %v364
        %v393 = vmul.f32 %v345, %v364
        %v394 = vmul.f32 %v346, %v364
        %v395 = vmul.f32 %v347, %v364
        %v396 = vmul.f32 %v348, %v364
        %v397 = vmul.f32 %v349, %v364
        %v398 = vmul.f32 %v350, %v364
        %v399 = vmul.f32 %v351, %v364
        %v400 = vmul.f32 %v352, %v364
        %v401 = vmul.f32 %v353, %v364
        %v402 = vmul.f32 %v354, %v364
        %v403 = vmul.f32 %v355, %v364
        %v404 = vmul.f32 %v356, %v364
        %v405 = vmul.f32 %v357, %v364
        %v406 = vmul.f32 %v358, %v364
        %v407 = vld [vmem:[%s3] sm:$0x1]
        %v409 = vlaneseq
        %v410 = vshrl.u32 %v409, 7
        %v411 = vsub.s32 0, %v410
        %v412 = vrot.slane %v407, %v411
        %v414 = vadd.f32 %v366, %v412
        %v415 = vadd.f32 %v367, %v412
        %v416 = vadd.f32 %v368, %v412
        %v417 = vadd.f32 %v369, %v412
        %v418 = vadd.f32 %v370, %v412
        %v419 = vadd.f32 %v371, %v412
        %v420 = vadd.f32 %v372, %v412
        %v421 = vadd.f32 %v373, %v412
        %v422 = vadd.f32 %v374, %v412
        %v423 = vadd.f32 %v375, %v412
        %v424 = vadd.f32 %v376, %v412
        %v425 = vadd.f32 %v377, %v412
        %v426 = vadd.f32 %v378, %v412
        %v427 = vadd.f32 %v379, %v412
        %v428 = vadd.f32 %v380, %v412
        %v429 = vadd.f32 %v381, %v412
        %v430 = vadd.f32 %v382, %v412
        %v431 = vadd.f32 %v383, %v412
        %v432 = vadd.f32 %v384, %v412
        %v433 = vadd.f32 %v385, %v412
        %v434 = vadd.f32 %v386, %v412
        %v435 = vadd.f32 %v387, %v412
        %v436 = vadd.f32 %v388, %v412
        %v437 = vadd.f32 %v389, %v412
        %v438 = vadd.f32 %v390, %v412
        %v439 = vadd.f32 %v391, %v412
        %v440 = vadd.f32 %v392, %v412
        %v441 = vadd.f32 %v393, %v412
        %v442 = vadd.f32 %v394, %v412
        %v443 = vadd.f32 %v395, %v412
        %v444 = vadd.f32 %v396, %v412
        %v445 = vadd.f32 %v397, %v412
        %v446 = vadd.f32 %v398, %v412
        %v447 = vadd.f32 %v399, %v412
        %v448 = vadd.f32 %v400, %v412
        %v449 = vadd.f32 %v401, %v412
        %v450 = vadd.f32 %v402, %v412
        %v451 = vadd.f32 %v403, %v412
        %v452 = vadd.f32 %v404, %v412
        %v453 = vadd.f32 %v405, %v412
        %v454 = vadd.f32 %v406, %v412
        %456 = vset.pattern.permute.xlu0 0
        %457 = vperm.xlu0 %456, %v277
        %v458 = vpop.permute.xlu0 %457
        %461 = vset.pattern.permute.xlu0 0
        %462 = vperm.xlu0 %461, %v278
        %v463 = vpop.permute.xlu0 %462
        %466 = vset.pattern.permute.xlu0 0
        %467 = vperm.xlu0 %466, %v279
        %v468 = vpop.permute.xlu0 %467
        %471 = vset.pattern.permute.xlu0 0
        %472 = vperm.xlu0 %471, %v280
        %v473 = vpop.permute.xlu0 %472
        %476 = vset.pattern.permute.xlu0 0
        %477 = vperm.xlu0 %476, %v281
        %v478 = vpop.permute.xlu0 %477
        %481 = vset.pattern.permute.xlu0 0
        %482 = vperm.xlu0 %481, %v282
        %v483 = vpop.permute.xlu0 %482
        %486 = vset.pattern.permute.xlu0 0
        %487 = vperm.xlu0 %486, %v283
        %v488 = vpop.permute.xlu0 %487
        %491 = vset.pattern.permute.xlu0 0
        %492 = vperm.xlu0 %491, %v284
        %v493 = vpop.permute.xlu0 %492
        %496 = vset.pattern.permute.xlu0 0
        %497 = vperm.xlu0 %496, %v285
        %v498 = vpop.permute.xlu0 %497
        %501 = vset.pattern.permute.xlu0 0
        %502 = vperm.xlu0 %501, %v286
        %v503 = vpop.permute.xlu0 %502
        %506 = vset.pattern.permute.xlu0 0
        %507 = vperm.xlu0 %506, %v287
        %v508 = vpop.permute.xlu0 %507
        %511 = vset.pattern.permute.xlu0 0
        %512 = vperm.xlu0 %511, %v288
        %v513 = vpop.permute.xlu0 %512
        %516 = vset.pattern.permute.xlu0 0
        %517 = vperm.xlu0 %516, %v289
        %v518 = vpop.permute.xlu0 %517
        %521 = vset.pattern.permute.xlu0 0
        %522 = vperm.xlu0 %521, %v290
        %v523 = vpop.permute.xlu0 %522
        %526 = vset.pattern.permute.xlu0 0
        %527 = vperm.xlu0 %526, %v291
        %v528 = vpop.permute.xlu0 %527
        %531 = vset.pattern.permute.xlu0 0
        %532 = vperm.xlu0 %531, %v292
        %v533 = vpop.permute.xlu0 %532
        %536 = vset.pattern.permute.xlu0 0
        %537 = vperm.xlu0 %536, %v293
        %v538 = vpop.permute.xlu0 %537
        %541 = vset.pattern.permute.xlu0 0
        %542 = vperm.xlu0 %541, %v294
        %v543 = vpop.permute.xlu0 %542
        %546 = vset.pattern.permute.xlu0 0
        %547 = vperm.xlu0 %546, %v295
        %v548 = vpop.permute.xlu0 %547
        %551 = vset.pattern.permute.xlu0 0
        %552 = vperm.xlu0 %551, %v296
        %v553 = vpop.permute.xlu0 %552
        %556 = vset.pattern.permute.xlu0 0
        %557 = vperm.xlu0 %556, %v297
        %v558 = vpop.permute.xlu0 %557
        %561 = vset.pattern.permute.xlu0 0
        %562 = vperm.xlu0 %561, %v298
        %v563 = vpop.permute.xlu0 %562
        %566 = vset.pattern.permute.xlu0 0
        %567 = vperm.xlu0 %566, %v299
        %v568 = vpop.permute.xlu0 %567
        %571 = vset.pattern.permute.xlu0 0
        %572 = vperm.xlu0 %571, %v300
        %v573 = vpop.permute.xlu0 %572
        %576 = vset.pattern.permute.xlu0 0
        %577 = vperm.xlu0 %576, %v301
        %v578 = vpop.permute.xlu0 %577
        %581 = vset.pattern.permute.xlu0 0
        %582 = vperm.xlu0 %581, %v302
        %v583 = vpop.permute.xlu0 %582
        %586 = vset.pattern.permute.xlu0 0
        %587 = vperm.xlu0 %586, %v303
        %v588 = vpop.permute.xlu0 %587
        %591 = vset.pattern.permute.xlu0 0
        %592 = vperm.xlu0 %591, %v304
        %v593 = vpop.permute.xlu0 %592
        %596 = vset.pattern.permute.xlu0 0
        %597 = vperm.xlu0 %596, %v305
        %v598 = vpop.permute.xlu0 %597
        %601 = vset.pattern.permute.xlu0 0
        %602 = vperm.xlu0 %601, %v306
        %v603 = vpop.permute.xlu0 %602
        %606 = vset.pattern.permute.xlu0 0
        %607 = vperm.xlu0 %606, %v307
        %v608 = vpop.permute.xlu0 %607
        %611 = vset.pattern.permute.xlu0 0
        %612 = vperm.xlu0 %611, %v308
        %v613 = vpop.permute.xlu0 %612
        %616 = vset.pattern.permute.xlu0 0
        %617 = vperm.xlu0 %616, %v309
        %v618 = vpop.permute.xlu0 %617
        %621 = vset.pattern.permute.xlu0 0
        %622 = vperm.xlu0 %621, %v310
        %v623 = vpop.permute.xlu0 %622
        %626 = vset.pattern.permute.xlu0 0
        %627 = vperm.xlu0 %626, %v311
        %v628 = vpop.permute.xlu0 %627
        %631 = vset.pattern.permute.xlu0 0
        %632 = vperm.xlu0 %631, %v312
        %v633 = vpop.permute.xlu0 %632
        %636 = vset.pattern.permute.xlu0 0
        %637 = vperm.xlu0 %636, %v313
        %v638 = vpop.permute.xlu0 %637
        %641 = vset.pattern.permute.xlu0 0
        %642 = vperm.xlu0 %641, %v314
        %v643 = vpop.permute.xlu0 %642
        %646 = vset.pattern.permute.xlu0 0
        %647 = vperm.xlu0 %646, %v315
        %v648 = vpop.permute.xlu0 %647
        %651 = vset.pattern.permute.xlu0 0
        %652 = vperm.xlu0 %651, %v316
        %v653 = vpop.permute.xlu0 %652
        %656 = vset.pattern.permute.xlu0 0
        %657 = vperm.xlu0 %656, %v317
        %v658 = vpop.permute.xlu0 %657
        %v660 = vmul.f32 %v414, %v458
        %v661 = vmul.f32 %v415, %v463
        %v662 = vmul.f32 %v416, %v468
        %v663 = vmul.f32 %v417, %v473
        %v664 = vmul.f32 %v418, %v478
        %v665 = vmul.f32 %v419, %v483
        %v666 = vmul.f32 %v420, %v488
        %v667 = vmul.f32 %v421, %v493
        %v668 = vmul.f32 %v422, %v498
        %v669 = vmul.f32 %v423, %v503
        %v670 = vmul.f32 %v424, %v508
        %v671 = vmul.f32 %v425, %v513
        %v672 = vmul.f32 %v426, %v518
        %v673 = vmul.f32 %v427, %v523
        %v674 = vmul.f32 %v428, %v528
        %v675 = vmul.f32 %v429, %v533
        %v676 = vmul.f32 %v430, %v538
        %v677 = vmul.f32 %v431, %v543
        %v678 = vmul.f32 %v432, %v548
        %v679 = vmul.f32 %v433, %v553
        %v680 = vmul.f32 %v434, %v558
        %v681 = vmul.f32 %v435, %v563
        %v682 = vmul.f32 %v436, %v568
        %v683 = vmul.f32 %v437, %v573
        %v684 = vmul.f32 %v438, %v578
        %v685 = vmul.f32 %v439, %v583
        %v686 = vmul.f32 %v440, %v588
        %v687 = vmul.f32 %v441, %v593
        %v688 = vmul.f32 %v442, %v598
        %v689 = vmul.f32 %v443, %v603
        %v690 = vmul.f32 %v444, %v608
        %v691 = vmul.f32 %v445, %v613
        %v692 = vmul.f32 %v446, %v618
        %v693 = vmul.f32 %v447, %v623
        %v694 = vmul.f32 %v448, %v628
        %v695 = vmul.f32 %v449, %v633
        %v696 = vmul.f32 %v450, %v638
        %v697 = vmul.f32 %v451, %v643
        %v698 = vmul.f32 %v452, %v648
        %v699 = vmul.f32 %v453, %v653
        %v700 = vmul.f32 %v454, %v658
        %p701 = scmp.eq.s32.totalorder %s21, 0
        // Predicated region
        $region41: #{tpu_custom_call.1} parent=39 // pred_check
          %p702 = pneg %p701
        $region42: #{tpu_custom_call.1} parent=39 // pred_check_branch
          %704 = sbr.rel (%p702) target = $region44
        $region43: #{tpu_custom_call.1} parent=39 // pred_region
          %vm705 = vcmask 31744
          %706 = vst.msk [vmem:[#allocation2] sm:$0xff] %vm705, 0.0
          %707 = vst.msk [vmem:[#allocation2 + $0x8] sm:$0xff] %vm705, 0.0
          %708 = vst.msk [vmem:[#allocation2 + $0x10] sm:$0xff] %vm705, 0.0
          %709 = vst.msk [vmem:[#allocation2 + $0x18] sm:$0xff] %vm705, 0.0
          %710 = vst.msk [vmem:[#allocation2 + $0x20] sm:$0xff] %vm705, 0.0
          %711 = vst.msk [vmem:[#allocation2 + $0x28] sm:$0xff] %vm705, 0.0
          %712 = vst.msk [vmem:[#allocation2 + $0x30] sm:$0xff] %vm705, 0.0
          %713 = vst.msk [vmem:[#allocation2 + $0x38] sm:$0xff] %vm705, 0.0
          %714 = vst.msk [vmem:[#allocation2 + $0x40] sm:$0xff] %vm705, 0.0
          %715 = vst.msk [vmem:[#allocation2 + $0x48] sm:$0xff] %vm705, 0.0
          %716 = vst.msk [vmem:[#allocation2 + $0x50] sm:$0xff] %vm705, 0.0
          %717 = vst.msk [vmem:[#allocation2 + $0x58] sm:$0xff] %vm705, 0.0
          %718 = vst.msk [vmem:[#allocation2 + $0x60] sm:$0xff] %vm705, 0.0
          %719 = vst.msk [vmem:[#allocation2 + $0x68] sm:$0xff] %vm705, 0.0
          %720 = vst.msk [vmem:[#allocation2 + $0x70] sm:$0xff] %vm705, 0.0
          %721 = vst.msk [vmem:[#allocation2 + $0x78] sm:$0xff] %vm705, 0.0
          %722 = vst.msk [vmem:[#allocation2 + $0x80] sm:$0xff] %vm705, 0.0
          %723 = vst.msk [vmem:[#allocation2 + $0x88] sm:$0xff] %vm705, 0.0
          %724 = vst.msk [vmem:[#allocation2 + $0x90] sm:$0xff] %vm705, 0.0
          %725 = vst.msk [vmem:[#allocation2 + $0x98] sm:$0xff] %vm705, 0.0
          %726 = vst.msk [vmem:[#allocation2 + $0xa0] sm:$0xff] %vm705, 0.0
          %727 = vst.msk [vmem:[#allocation2 + $0xa8] sm:$0xff] %vm705, 0.0
          %728 = vst.msk [vmem:[#allocation2 + $0xb0] sm:$0xff] %vm705, 0.0
          %729 = vst.msk [vmem:[#allocation2 + $0xb8] sm:$0xff] %vm705, 0.0
          %730 = vst.msk [vmem:[#allocation2 + $0xc0] sm:$0xff] %vm705, 0.0
          %731 = vst.msk [vmem:[#allocation2 + $0xc8] sm:$0xff] %vm705, 0.0
          %732 = vst.msk [vmem:[#allocation2 + $0xd0] sm:$0xff] %vm705, 0.0
          %733 = vst.msk [vmem:[#allocation2 + $0xd8] sm:$0xff] %vm705, 0.0
          %734 = vst.msk [vmem:[#allocation2 + $0xe0] sm:$0xff] %vm705, 0.0
          %735 = vst.msk [vmem:[#allocation2 + $0xe8] sm:$0xff] %vm705, 0.0
          %736 = vst.msk [vmem:[#allocation2 + $0xf0] sm:$0xff] %vm705, 0.0
          %737 = vst.msk [vmem:[#allocation2 + $0xf8] sm:$0xff] %vm705, 0.0
          %738 = vst.msk [vmem:[#allocation2 + $0x100] sm:$0xff] %vm705, 0.0
          %739 = vst.msk [vmem:[#allocation2 + $0x108] sm:$0xff] %vm705, 0.0
          %740 = vst.msk [vmem:[#allocation2 + $0x110] sm:$0xff] %vm705, 0.0
          %741 = vst.msk [vmem:[#allocation2 + $0x118] sm:$0xff] %vm705, 0.0
          %742 = vst.msk [vmem:[#allocation2 + $0x120] sm:$0xff] %vm705, 0.0
          %743 = vst.msk [vmem:[#allocation2 + $0x128] sm:$0xff] %vm705, 0.0
          %744 = vst.msk [vmem:[#allocation2 + $0x130] sm:$0xff] %vm705, 0.0
          %745 = vst.msk [vmem:[#allocation2 + $0x138] sm:$0xff] %vm705, 0.0
          %746 = vst.msk [vmem:[#allocation2 + $0x140] sm:$0xff] %vm705, 0.0
          %747 = vst.msk [vmem:[#allocation2 + $0x148] sm:$0xff] %vm705, 0.0
          %748 = vst.msk [vmem:[#allocation2 + $0x150] sm:$0xff] %vm705, 0.0
          %749 = vst.msk [vmem:[#allocation2 + $0x158] sm:$0xff] %vm705, 0.0
          %750 = vst.msk [vmem:[#allocation2 + $0x160] sm:$0xff] %vm705, 0.0
          %751 = vst.msk [vmem:[#allocation2 + $0x168] sm:$0xff] %vm705, 0.0
          %vm752 = vcmask 27648
          %753 = vst.msk [vmem:[#allocation2 + $0x170] sm:$0xf] %vm752, 0.0
          %vm754 = vcmask 24576
          %755 = vst.msk [vmem:[#allocation3] sm:$0x1] %vm754, 0.0
          %756 = vst.msk [vmem:[#allocation5] sm:$0x1] %vm754, 0.0
        $region44: #{tpu_custom_call.1} parent=39 // pred_fallthru
          _
        %vm757 = vcmask 31744
        %758 = vst.msk [vmem:[#allocation2 + $0x18] sm:$0xff] %vm757, %v660
        %759 = vst.msk [vmem:[#allocation2 + $0x20] sm:$0xff] %vm757, %v661
        %760 = vst.msk [vmem:[#allocation2 + $0x28] sm:$0xff] %vm757, %v662
        %761 = vst.msk [vmem:[#allocation2 + $0x30] sm:$0xff] %vm757, %v663
        %762 = vst.msk [vmem:[#allocation2 + $0x38] sm:$0xff] %vm757, %v664
        %763 = vst.msk [vmem:[#allocation2 + $0x40] sm:$0xff] %vm757, %v665
        %764 = vst.msk [vmem:[#allocation2 + $0x48] sm:$0xff] %vm757, %v666
        %765 = vst.msk [vmem:[#allocation2 + $0x50] sm:$0xff] %vm757, %v667
        %766 = vst.msk [vmem:[#allocation2 + $0x58] sm:$0xff] %vm757, %v668
        %767 = vst.msk [vmem:[#allocation2 + $0x60] sm:$0xff] %vm757, %v669
        %768 = vst.msk [vmem:[#allocation2 + $0x68] sm:$0xff] %vm757, %v670
        %769 = vst.msk [vmem:[#allocation2 + $0x70] sm:$0xff] %vm757, %v671
        %770 = vst.msk [vmem:[#allocation2 + $0x78] sm:$0xff] %vm757, %v672
        %771 = vst.msk [vmem:[#allocation2 + $0x80] sm:$0xff] %vm757, %v673
        %772 = vst.msk [vmem:[#allocation2 + $0x88] sm:$0xff] %vm757, %v674
        %773 = vst.msk [vmem:[#allocation2 + $0x90] sm:$0xff] %vm757, %v675
        %774 = vst.msk [vmem:[#allocation2 + $0x98] sm:$0xff] %vm757, %v676
        %775 = vst.msk [vmem:[#allocation2 + $0xa0] sm:$0xff] %vm757, %v677
        %776 = vst.msk [vmem:[#allocation2 + $0xa8] sm:$0xff] %vm757, %v678
        %777 = vst.msk [vmem:[#allocation2 + $0xb0] sm:$0xff] %vm757, %v679
        %778 = vst.msk [vmem:[#allocation2 + $0xb8] sm:$0xff] %vm757, %v680
        %779 = vst.msk [vmem:[#allocation2 + $0xc0] sm:$0xff] %vm757, %v681
        %780 = vst.msk [vmem:[#allocation2 + $0xc8] sm:$0xff] %vm757, %v682
        %781 = vst.msk [vmem:[#allocation2 + $0xd0] sm:$0xff] %vm757, %v683
        %782 = vst.msk [vmem:[#allocation2 + $0xd8] sm:$0xff] %vm757, %v684
        %783 = vst.msk [vmem:[#allocation2 + $0xe0] sm:$0xff] %vm757, %v685
        %784 = vst.msk [vmem:[#allocation2 + $0xe8] sm:$0xff] %vm757, %v686
        %785 = vst.msk [vmem:[#allocation2 + $0xf0] sm:$0xff] %vm757, %v687
        %786 = vst.msk [vmem:[#allocation2 + $0xf8] sm:$0xff] %vm757, %v688
        %787 = vst.msk [vmem:[#allocation2 + $0x100] sm:$0xff] %vm757, %v689
        %788 = vst.msk [vmem:[#allocation2 + $0x108] sm:$0xff] %vm757, %v690
        %789 = vst.msk [vmem:[#allocation2 + $0x110] sm:$0xff] %vm757, %v691
        %790 = vst.msk [vmem:[#allocation2 + $0x118] sm:$0xff] %vm757, %v692
        %791 = vst.msk [vmem:[#allocation2 + $0x120] sm:$0xff] %vm757, %v693
        %792 = vst.msk [vmem:[#allocation2 + $0x128] sm:$0xff] %vm757, %v694
        %793 = vst.msk [vmem:[#allocation2 + $0x130] sm:$0xff] %vm757, %v695
        %794 = vst.msk [vmem:[#allocation2 + $0x138] sm:$0xff] %vm757, %v696
        %795 = vst.msk [vmem:[#allocation2 + $0x140] sm:$0xff] %vm757, %v697
        %796 = vst.msk [vmem:[#allocation2 + $0x148] sm:$0xff] %vm757, %v698
        %797 = vst.msk [vmem:[#allocation2 + $0x150] sm:$0xff] %vm757, %v699
        %vm798 = vcmask 27648
        %799 = vst.msk [vmem:[#allocation2 + $0x158] sm:$0xf] %vm798, %v700
        %v800 = vld [vmem:[#allocation2 + $0x5] sm:$0xff]
        %v801 = vld [vmem:[#allocation2 + $0xd] sm:$0xff]
        %v802 = vld [vmem:[#allocation2 + $0x15] sm:$0xff]
        %v803 = vld [vmem:[#allocation2 + $0x1d] sm:$0xff]
        %v804 = vld [vmem:[#allocation2 + $0x25] sm:$0xff]
        %v805 = vld [vmem:[#allocation2 + $0x2d] sm:$0xff]
        %v806 = vld [vmem:[#allocation2 + $0x35] sm:$0xff]
        %v807 = vld [vmem:[#allocation2 + $0x3d] sm:$0xff]
        %v808 = vld [vmem:[#allocation2 + $0x45] sm:$0xff]
        %v809 = vld [vmem:[#allocation2 + $0x4d] sm:$0xff]
        %v810 = vld [vmem:[#allocation2 + $0x55] sm:$0xff]
        %v811 = vld [vmem:[#allocation2 + $0x5d] sm:$0xff]
        %v812 = vld [vmem:[#allocation2 + $0x65] sm:$0xff]
        %v813 = vld [vmem:[#allocation2 + $0x6d] sm:$0xff]
        %v814 = vld [vmem:[#allocation2 + $0x75] sm:$0xff]
        %v815 = vld [vmem:[#allocation2 + $0x7d] sm:$0xff]
        %v816 = vld [vmem:[#allocation2 + $0x85] sm:$0xff]
        %v817 = vld [vmem:[#allocation2 + $0x8d] sm:$0xff]
        %v818 = vld [vmem:[#allocation2 + $0x95] sm:$0xff]
        %v819 = vld [vmem:[#allocation2 + $0x9d] sm:$0xff]
        %v820 = vld [vmem:[#allocation2 + $0xa5] sm:$0xff]
        %v821 = vld [vmem:[#allocation2 + $0xad] sm:$0xff]
        %v822 = vld [vmem:[#allocation2 + $0xb5] sm:$0xff]
        %v823 = vld [vmem:[#allocation2 + $0xbd] sm:$0xff]
        %v824 = vld [vmem:[#allocation2 + $0xc5] sm:$0xff]
        %v825 = vld [vmem:[#allocation2 + $0xcd] sm:$0xff]
        %v826 = vld [vmem:[#allocation2 + $0xd5] sm:$0xff]
        %v827 = vld [vmem:[#allocation2 + $0xdd] sm:$0xff]
        %v828 = vld [vmem:[#allocation2 + $0xe5] sm:$0xff]
        %v829 = vld [vmem:[#allocation2 + $0xed] sm:$0xff]
        %v830 = vld [vmem:[#allocation2 + $0xf5] sm:$0xff]
        %v831 = vld [vmem:[#allocation2 + $0xfd] sm:$0xff]
        %v832 = vld [vmem:[#allocation2 + $0x105] sm:$0xff]
        %v833 = vld [vmem:[#allocation2 + $0x10d] sm:$0xff]
        %v834 = vld [vmem:[#allocation2 + $0x115] sm:$0xff]
        %v835 = vld [vmem:[#allocation2 + $0x11d] sm:$0xff]
        %v836 = vld [vmem:[#allocation2 + $0x125] sm:$0xff]
        %v837 = vld [vmem:[#allocation2 + $0x12d] sm:$0xff]
        %v838 = vld [vmem:[#allocation2 + $0x135] sm:$0xff]
        %v839 = vld [vmem:[#allocation2 + $0x13d] sm:$0xff]
        %v840 = vld [vmem:[#allocation2 + $0x145] sm:$0xf]
        %v841 = vpack.c.bf16 %v801, %v800
        %v842 = vpack.c.bf16 %v803, %v802
        %v843 = vpack.c.bf16 %v805, %v804
        %v844 = vpack.c.bf16 %v807, %v806
        %v845 = vpack.c.bf16 %v809, %v808
        %v846 = vpack.c.bf16 %v811, %v810
        %v847 = vpack.c.bf16 %v813, %v812
        %v848 = vpack.c.bf16 %v815, %v814
        %v849 = vpack.c.bf16 %v817, %v816
        %v850 = vpack.c.bf16 %v819, %v818
        %v851 = vpack.c.bf16 %v821, %v820
        %v852 = vpack.c.bf16 %v823, %v822
        %v853 = vpack.c.bf16 %v825, %v824
        %v854 = vpack.c.bf16 %v827, %v826
        %v855 = vpack.c.bf16 %v829, %v828
        %v856 = vpack.c.bf16 %v831, %v830
        %v857 = vpack.c.bf16 %v833, %v832
        %v858 = vpack.c.bf16 %v835, %v834
        %v859 = vpack.c.bf16 %v837, %v836
        %v860 = vpack.c.bf16 %v839, %v838
        %v861 = vpack.c.bf16 %v840, %v840
        %v862 = vld [vmem:[%s1] sm:$0x3]
        %v863 = vld [vmem:[#allocation2 + $0x6] sm:$0xff]
        %v864 = vld [vmem:[#allocation2 + $0xe] sm:$0xff]
        %v865 = vld [vmem:[#allocation2 + $0x16] sm:$0xff]
        %v866 = vld [vmem:[#allocation2 + $0x1e] sm:$0xff]
        %v867 = vld [vmem:[#allocation2 + $0x26] sm:$0xff]
        %v868 = vld [vmem:[#allocation2 + $0x2e] sm:$0xff]
        %v869 = vld [vmem:[#allocation2 + $0x36] sm:$0xff]
        %v870 = vld [vmem:[#allocation2 + $0x3e] sm:$0xff]
        %v871 = vld [vmem:[#allocation2 + $0x46] sm:$0xff]
        %v872 = vld [vmem:[#allocation2 + $0x4e] sm:$0xff]
        %v873 = vld [vmem:[#allocation2 + $0x56] sm:$0xff]
        %v874 = vld [vmem:[#allocation2 + $0x5e] sm:$0xff]
        %v875 = vld [vmem:[#allocation2 + $0x66] sm:$0xff]
        %v876 = vld [vmem:[#allocation2 + $0x6e] sm:$0xff]
        %v877 = vld [vmem:[#allocation2 + $0x76] sm:$0xff]
        %v878 = vld [vmem:[#allocation2 + $0x7e] sm:$0xff]
        %v879 = vld [vmem:[#allocation2 + $0x86] sm:$0xff]
        %v880 = vld [vmem:[#allocation2 + $0x8e] sm:$0xff]
        %v881 = vld [vmem:[#allocation2 + $0x96] sm:$0xff]
        %v882 = vld [vmem:[#allocation2 + $0x9e] sm:$0xff]
        %v883 = vld [vmem:[#allocation2 + $0xa6] sm:$0xff]
        %v884 = vld [vmem:[#allocation2 + $0xae] sm:$0xff]
        %v885 = vld [vmem:[#allocation2 + $0xb6] sm:$0xff]
        %v886 = vld [vmem:[#allocation2 + $0xbe] sm:$0xff]
        %v887 = vld [vmem:[#allocation2 + $0xc6] sm:$0xff]
        %v888 = vld [vmem:[#allocation2 + $0xce] sm:$0xff]
        %v889 = vld [vmem:[#allocation2 + $0xd6] sm:$0xff]
        %v890 = vld [vmem:[#allocation2 + $0xde] sm:$0xff]
        %v891 = vld [vmem:[#allocation2 + $0xe6] sm:$0xff]
        %v892 = vld [vmem:[#allocation2 + $0xee] sm:$0xff]
        %v893 = vld [vmem:[#allocation2 + $0xf6] sm:$0xff]
        %v894 = vld [vmem:[#allocation2 + $0xfe] sm:$0xff]
        %v895 = vld [vmem:[#allocation2 + $0x106] sm:$0xff]
        %v896 = vld [vmem:[#allocation2 + $0x10e] sm:$0xff]
        %v897 = vld [vmem:[#allocation2 + $0x116] sm:$0xff]
        %v898 = vld [vmem:[#allocation2 + $0x11e] sm:$0xff]
        %v899 = vld [vmem:[#allocation2 + $0x126] sm:$0xff]
        %v900 = vld [vmem:[#allocation2 + $0x12e] sm:$0xff]
        %v901 = vld [vmem:[#allocation2 + $0x136] sm:$0xff]
        %v902 = vld [vmem:[#allocation2 + $0x13e] sm:$0xff]
        %v903 = vld [vmem:[#allocation2 + $0x146] sm:$0xf]
        %v904 = vpack.c.bf16 %v864, %v863
        %v905 = vpack.c.bf16 %v866, %v865
        %v906 = vpack.c.bf16 %v868, %v867
        %v907 = vpack.c.bf16 %v870, %v869
        %v908 = vpack.c.bf16 %v872, %v871
        %v909 = vpack.c.bf16 %v874, %v873
        %v910 = vpack.c.bf16 %v876, %v875
        %v911 = vpack.c.bf16 %v878, %v877
        %v912 = vpack.c.bf16 %v880, %v879
        %v913 = vpack.c.bf16 %v882, %v881
        %v914 = vpack.c.bf16 %v884, %v883
        %v915 = vpack.c.bf16 %v886, %v885
        %v916 = vpack.c.bf16 %v888, %v887
        %v917 = vpack.c.bf16 %v890, %v889
        %v918 = vpack.c.bf16 %v892, %v891
        %v919 = vpack.c.bf16 %v894, %v893
        %v920 = vpack.c.bf16 %v896, %v895
        %v921 = vpack.c.bf16 %v898, %v897
        %v922 = vpack.c.bf16 %v900, %v899
        %v923 = vpack.c.bf16 %v902, %v901
        %v924 = vpack.c.bf16 %v903, %v903
        %s925 = scalar_lea.vmem %s1, 2
        %v926 = vld [vmem:[%s925] sm:$0x3]
        %v928 = vsel %vm757, %v904, 0
        %v931 = vsel %vm757, %v905, 0
        %v934 = vsel %vm757, %v906, 0
        %v937 = vsel %vm757, %v907, 0
        %v940 = vsel %vm757, %v908, 0
        %v943 = vsel %vm757, %v909, 0
        %v946 = vsel %vm757, %v910, 0
        %v949 = vsel %vm757, %v911, 0
        %v952 = vsel %vm757, %v912, 0
        %v955 = vsel %vm757, %v913, 0
        %v958 = vsel %vm757, %v914, 0
        %v961 = vsel %vm757, %v915, 0
        %v964 = vsel %vm757, %v916, 0
        %v967 = vsel %vm757, %v917, 0
        %v970 = vsel %vm757, %v918, 0
        %v973 = vsel %vm757, %v919, 0
        %v976 = vsel %vm757, %v920, 0
        %v979 = vsel %vm757, %v921, 0
        %v982 = vsel %vm757, %v922, 0
        %v985 = vsel %vm757, %v923, 0
        %v988 = vsel %vm757, %v924, 0
        %vm990 = vcmask 1041408
        %v992 = vsel %vm990, %v926, 0
        %994 = vmatprep.subr.bf16.mxu0 0
        %995 = vmatpush1.bf16.msra.mxu0 %v992
        %996 = vmatprep.subr.bf16.mxu0 0
        %997 = vmatpush1.bf16.msra.mxu0 0
        %998 = vmatprep.subr.bf16.mxu0 0
        %999 = vmatpush1.bf16.msra.mxu0 0
        %1000 = vmatprep.subr.bf16.mxu0 0
        %1001 = vmatpush1.bf16.msra.mxu0 0
        %1002 = vmatprep.subr.bf16.mxu0 0
        %1003 = vmatpush1.bf16.msra.mxu0 0
        %1004 = vmatprep.subr.bf16.mxu0 0
        %1005 = vmatpush1.bf16.msra.mxu0 0
        %1006 = vmatprep.subr.bf16.mxu0 0
        %1007 = vmatpush1.bf16.msra.mxu0 0
        %1008 = vmatprep.subr.bf16.mxu0 0
        %1009 = vmatpush1.bf16.msra.mxu0 0
        %1010 = vmatprep.subr.bf16.mxu0 0
        %1011 = vmatpush1.bf16.msra.mxu0 0
        %1012 = vmatprep.subr.bf16.mxu0 0
        %1013 = vmatpush1.bf16.msra.mxu0 0
        %1014 = vmatprep.subr.bf16.mxu0 0
        %1015 = vmatpush1.bf16.msra.mxu0 0
        %1016 = vmatprep.subr.bf16.mxu0 0
        %1017 = vmatpush1.bf16.msra.mxu0 0
        %1018 = vmatprep.subr.bf16.mxu0 0
        %1019 = vmatpush1.bf16.msra.mxu0 0
        %1020 = vmatprep.subr.bf16.mxu0 0
        %1021 = vmatpush1.bf16.msra.mxu0 0
        %1022 = vmatprep.subr.bf16.mxu0 0
        %1023 = vmatpush1.bf16.msra.mxu0 0
        %1024 = vmatprep.subr.bf16.mxu0 0
        %1025 = vmatpush1.bf16.msra.mxu0 0
        %1026 = vmatprep.mubr.bf16.mxu0 0
        %1027 = vmatmul.mubr.bf16.gmra.mrb[0].mxu0 %v928
        %v1028 = vpop.f32.mrb[0].mxu0
        %v1029 = vadd.f32 0.0, %v1028
        %v1030 = vpop.f32.mrb[0].mxu0
        %v1031 = vpop.f32.mrb[0].mxu0
        %v1032 = vadd.f32 0.0, %v1031
        %v1033 = vpop.f32.mrb[0].mxu0
        %1034 = vmatprep.mubr.bf16.mxu0 0
        %1035 = vmatmul.mubr.bf16.gmra.mrb[0].mxu0 %v931
        %v1036 = vpop.f32.mrb[0].mxu0
        %v1037 = vadd.f32 0.0, %v1036
        %v1038 = vpop.f32.mrb[0].mxu0
        %v1039 = vpop.f32.mrb[0].mxu0
        %v1040 = vadd.f32 0.0, %v1039
        %v1041 = vpop.f32.mrb[0].mxu0
        %1042 = vmatprep.mubr.bf16.mxu0 0
        %1043 = vmatmul.mubr.bf16.gmra.mrb[0].mxu0 %v934
        %v1044 = vpop.f32.mrb[0].mxu0
        %v1045 = vadd.f32 0.0, %v1044
        %v1046 = vpop.f32.mrb[0].mxu0
        %v1047 = vpop.f32.mrb[0].mxu0
        %v1048 = vadd.f32 0.0, %v1047
        %v1049 = vpop.f32.mrb[0].mxu0
        %1050 = vmatprep.mubr.bf16.mxu0 0
        %1051 = vmatmul.mubr.bf16.gmra.mrb[0].mxu0 %v937
        %v1052 = vpop.f32.mrb[0].mxu0
        %v1053 = vadd.f32 0.0, %v1052
        %v1054 = vpop.f32.mrb[0].mxu0
        %v1055 = vpop.f32.mrb[0].mxu0
        %v1056 = vadd.f32 0.0, %v1055
        %v1057 = vpop.f32.mrb[0].mxu0
        %1058 = vmatprep.mubr.bf16.mxu0 0
        %1059 = vmatmul.mubr.bf16.gmra.mrb[0].mxu0 %v940
        %v1060 = vpop.f32.mrb[0].mxu0
        %v1061 = vadd.f32 0.0, %v1060
        %v1062 = vpop.f32.mrb[0].mxu0
        %v1063 = vpop.f32.mrb[0].mxu0
        %v1064 = vadd.f32 0.0, %v1063
        %v1065 = vpop.f32.mrb[0].mxu0
        %1066 = vmatprep.mubr.bf16.mxu0 0
        %1067 = vmatmul.mubr.bf16.gmra.mrb[0].mxu0 %v943
        %v1068 = vpop.f32.mrb[0].mxu0
        %v1069 = vadd.f32 0.0, %v1068
        %v1070 = vpop.f32.mrb[0].mxu0
        %v1071 = vpop.f32.mrb[0].mxu0
        %v1072 = vadd.f32 0.0, %v1071
        %v1073 = vpop.f32.mrb[0].mxu0
        %1074 = vmatprep.mubr.bf16.mxu0 0
        %1075 = vmatmul.mubr.bf16.gmra.mrb[0].mxu0 %v946
        %v1076 = vpop.f32.mrb[0].mxu0
        %v1077 = vadd.f32 0.0, %v1076
        %v1078 = vpop.f32.mrb[0].mxu0
        %v1079 = vpop.f32.mrb[0].mxu0
        %v1080 = vadd.f32 0.0, %v1079
        %v1081 = vpop.f32.mrb[0].mxu0
        %1082 = vmatprep.mubr.bf16.mxu0 0
        %1083 = vmatmul.mubr.bf16.gmra.mrb[0].mxu0 %v949
        %v1084 = vpop.f32.mrb[0].mxu0
        %v1085 = vadd.f32 0.0, %v1084
        %v1086 = vpop.f32.mrb[0].mxu0
        %v1087 = vpop.f32.mrb[0].mxu0
        %v1088 = vadd.f32 0.0, %v1087
        %v1089 = vpop.f32.mrb[0].mxu0
        %1090 = vmatprep.mubr.bf16.mxu0 0
        %1091 = vmatmul.mubr.bf16.gmra.mrb[0].mxu0 %v952
        %v1092 = vpop.f32.mrb[0].mxu0
        %v1093 = vadd.f32 0.0, %v1092
        %v1094 = vpop.f32.mrb[0].mxu0
        %v1095 = vpop.f32.mrb[0].mxu0
        %v1096 = vadd.f32 0.0, %v1095
        %v1097 = vpop.f32.mrb[0].mxu0
        %1098 = vmatprep.mubr.bf16.mxu0 0
        %1099 = vmatmul.mubr.bf16.gmra.mrb[0].mxu0 %v955
        %v1100 = vpop.f32.mrb[0].mxu0
        %v1101 = vadd.f32 0.0, %v1100
        %v1102 = vpop.f32.mrb[0].mxu0
        %v1103 = vpop.f32.mrb[0].mxu0
        %v1104 = vadd.f32 0.0, %v1103
        %v1105 = vpop.f32.mrb[0].mxu0
        %1106 = vmatprep.mubr.bf16.mxu0 0
        %1107 = vmatmul.mubr.bf16.gmra.mrb[0].mxu0 %v958
        %v1108 = vpop.f32.mrb[0].mxu0
        %v1109 = vadd.f32 0.0, %v1108
        %v1110 = vpop.f32.mrb[0].mxu0
        %v1111 = vpop.f32.mrb[0].mxu0
        %v1112 = vadd.f32 0.0, %v1111
        %v1113 = vpop.f32.mrb[0].mxu0
        %1114 = vmatprep.mubr.bf16.mxu0 0
        %1115 = vmatmul.mubr.bf16.gmra.mrb[0].mxu0 %v961
        %v1116 = vpop.f32.mrb[0].mxu0
        %v1117 = vadd.f32 0.0, %v1116
        %v1118 = vpop.f32.mrb[0].mxu0
        %v1119 = vpop.f32.mrb[0].mxu0
        %v1120 = vadd.f32 0.0, %v1119
        %v1121 = vpop.f32.mrb[0].mxu0
        %1122 = vmatprep.mubr.bf16.mxu0 0
        %1123 = vmatmul.mubr.bf16.gmra.mrb[0].mxu0 %v964
        %v1124 = vpop.f32.mrb[0].mxu0
        %v1125 = vadd.f32 0.0, %v1124
        %v1126 = vpop.f32.mrb[0].mxu0
        %v1127 = vpop.f32.mrb[0].mxu0
        %v1128 = vadd.f32 0.0, %v1127
        %v1129 = vpop.f32.mrb[0].mxu0
        %1130 = vmatprep.mubr.bf16.mxu0 0
        %1131 = vmatmul.mubr.bf16.gmra.mrb[0].mxu0 %v967
        %v1132 = vpop.f32.mrb[0].mxu0
        %v1133 = vadd.f32 0.0, %v1132
        %v1134 = vpop.f32.mrb[0].mxu0
        %v1135 = vpop.f32.mrb[0].mxu0
        %v1136 = vadd.f32 0.0, %v1135
        %v1137 = vpop.f32.mrb[0].mxu0
        %1138 = vmatprep.mubr.bf16.mxu0 0
        %1139 = vmatmul.mubr.bf16.gmra.mrb[0].mxu0 %v970
        %v1140 = vpop.f32.mrb[0].mxu0
        %v1141 = vadd.f32 0.0, %v1140
        %v1142 = vpop.f32.mrb[0].mxu0
        %v1143 = vpop.f32.mrb[0].mxu0
        %v1144 = vadd.f32 0.0, %v1143
        %v1145 = vpop.f32.mrb[0].mxu0
        %1146 = vmatprep.mubr.bf16.mxu0 0
        %1147 = vmatmul.mubr.bf16.gmra.mrb[0].mxu0 %v973
        %v1148 = vpop.f32.mrb[0].mxu0
        %v1149 = vadd.f32 0.0, %v1148
        %v1150 = vpop.f32.mrb[0].mxu0
        %v1151 = vpop.f32.mrb[0].mxu0
        %v1152 = vadd.f32 0.0, %v1151
        %v1153 = vpop.f32.mrb[0].mxu0
        %1154 = vmatprep.mubr.bf16.mxu0 0
        %1155 = vmatmul.mubr.bf16.gmra.mrb[0].mxu0 %v976
        %v1156 = vpop.f32.mrb[0].mxu0
        %v1157 = vadd.f32 0.0, %v1156
        %v1158 = vpop.f32.mrb[0].mxu0
        %v1159 = vpop.f32.mrb[0].mxu0
        %v1160 = vadd.f32 0.0, %v1159
        %v1161 = vpop.f32.mrb[0].mxu0
        %1162 = vmatprep.mubr.bf16.mxu0 0
        %1163 = vmatmul.mubr.bf16.gmra.mrb[0].mxu0 %v979
        %v1164 = vpop.f32.mrb[0].mxu0
        %v1165 = vadd.f32 0.0, %v1164
        %v1166 = vpop.f32.mrb[0].mxu0
        %v1167 = vpop.f32.mrb[0].mxu0
        %v1168 = vadd.f32 0.0, %v1167
        %v1169 = vpop.f32.mrb[0].mxu0
        %1170 = vmatprep.mubr.bf16.mxu0 0
        %1171 = vmatmul.mubr.bf16.gmra.mrb[0].mxu0 %v982
        %v1172 = vpop.f32.mrb[0].mxu0
        %v1173 = vadd.f32 0.0, %v1172
        %v1174 = vpop.f32.mrb[0].mxu0
        %v1175 = vpop.f32.mrb[0].mxu0
        %v1176 = vadd.f32 0.0, %v1175
        %v1177 = vpop.f32.mrb[0].mxu0
        %1178 = vmatprep.mubr.bf16.mxu0 0
        %1179 = vmatmul.mubr.bf16.gmra.mrb[0].mxu0 %v985
        %v1180 = vpop.f32.mrb[0].mxu0
        %v1181 = vadd.f32 0.0, %v1180
        %v1182 = vpop.f32.mrb[0].mxu0
        %v1183 = vpop.f32.mrb[0].mxu0
        %v1184 = vadd.f32 0.0, %v1183
        %v1185 = vpop.f32.mrb[0].mxu0
        %1186 = vmatprep.mubr.bf16.mxu0 0
        %1187 = vmatmul.mubr.bf16.gmra.mrb[0].mxu0 %v988
        %v1188 = vpop.f32.mrb[0].mxu0
        %v1189 = vadd.f32 0.0, %v1188
        %v1190 = vpop.f32.mrb[0].mxu0
        %v1191 = vpop.f32.mrb[0].mxu0
        %v1192 = vpop.f32.mrb[0].mxu0
        %1193 = vdwg.mxu0
        %v1195 = vsel %vm757, %v841, 0
        %v1198 = vsel %vm757, %v842, 0
        %v1201 = vsel %vm757, %v843, 0
        %v1204 = vsel %vm757, %v844, 0
        %v1207 = vsel %vm757, %v845, 0
        %v1210 = vsel %vm757, %v846, 0
        %v1213 = vsel %vm757, %v847, 0
        %v1216 = vsel %vm757, %v848, 0
        %v1219 = vsel %vm757, %v849, 0
        %v1222 = vsel %vm757, %v850, 0
        %v1225 = vsel %vm757, %v851, 0
        %v1228 = vsel %vm757, %v852, 0
        %v1231 = vsel %vm757, %v853, 0
        %v1234 = vsel %vm757, %v854, 0
        %v1237 = vsel %vm757, %v855, 0
        %v1240 = vsel %vm757, %v856, 0
        %v1243 = vsel %vm757, %v857, 0
        %v1246 = vsel %vm757, %v858, 0
        %v1249 = vsel %vm757, %v859, 0
        %v1252 = vsel %vm757, %v860, 0
        %v1255 = vsel %vm757, %v861, 0
        %v1258 = vsel %vm990, %v862, 0
        %1260 = vmatprep.subr.bf16.mxu0 0
        %1261 = vmatpush1.bf16.msra.mxu0 %v1258
        %1262 = vmatprep.subr.bf16.mxu0 0
        %1263 = vmatpush1.bf16.msra.mxu0 0
        %1264 = vmatprep.subr.bf16.mxu0 0
        %1265 = vmatpush1.bf16.msra.mxu0 0
        %1266 = vmatprep.subr.bf16.mxu0 0
        %1267 = vmatpush1.bf16.msra.mxu0 0
        %1268 = vmatprep.subr.bf16.mxu0 0
        %1269 = vmatpush1.bf16.msra.mxu0 0
        %1270 = vmatprep.subr.bf16.mxu0 0
        %1271 = vmatpush1.bf16.msra.mxu0 0
        %1272 = vmatprep.subr.bf16.mxu0 0
        %1273 = vmatpush1.bf16.msra.mxu0 0
        %1274 = vmatprep.subr.bf16.mxu0 0
        %1275 = vmatpush1.bf16.msra.mxu0 0
        %1276 = vmatprep.subr.bf16.mxu0 0
        %1277 = vmatpush1.bf16.msra.mxu0 0
        %1278 = vmatprep.subr.bf16.mxu0 0
        %1279 = vmatpush1.bf16.msra.mxu0 0
        %1280 = vmatprep.subr.bf16.mxu0 0
        %1281 = vmatpush1.bf16.msra.mxu0 0
        %1282 = vmatprep.subr.bf16.mxu0 0
        %1283 = vmatpush1.bf16.msra.mxu0 0
        %1284 = vmatprep.subr.bf16.mxu0 0
        %1285 = vmatpush1.bf16.msra.mxu0 0
        %1286 = vmatprep.subr.bf16.mxu0 0
        %1287 = vmatpush1.bf16.msra.mxu0 0
        %1288 = vmatprep.subr.bf16.mxu0 0
        %1289 = vmatpush1.bf16.msra.mxu0 0
        %1290 = vmatprep.subr.bf16.mxu0 0
        %1291 = vmatpush1.bf16.msra.mxu0 0
        %1292 = vmatprep.mubr.bf16.mxu0 0
        %1293 = vmatmul.mubr.bf16.gmra.mrb[0].mxu0 %v1195
        %v1294 = vpop.f32.mrb[0].mxu0
        %v1295 = vadd.f32 %v1029, %v1294
        %v1296 = vpop.f32.mrb[0].mxu0
        %v1297 = vpop.f32.mrb[0].mxu0
        %v1298 = vadd.f32 %v1032, %v1297
        %v1299 = vpop.f32.mrb[0].mxu0
        %1300 = vmatprep.mubr.bf16.mxu0 0
        %1301 = vmatmul.mubr.bf16.gmra.mrb[0].mxu0 %v1198
        %v1302 = vpop.f32.mrb[0].mxu0
        %v1303 = vadd.f32 %v1037, %v1302
        %v1304 = vpop.f32.mrb[0].mxu0
        %v1305 = vpop.f32.mrb[0].mxu0
        %v1306 = vadd.f32 %v1040, %v1305
        %v1307 = vpop.f32.mrb[0].mxu0
        %1308 = vmatprep.mubr.bf16.mxu0 0
        %1309 = vmatmul.mubr.bf16.gmra.mrb[0].mxu0 %v1201
        %v1310 = vpop.f32.mrb[0].mxu0
        %v1311 = vadd.f32 %v1045, %v1310
        %v1312 = vpop.f32.mrb[0].mxu0
        %v1313 = vpop.f32.mrb[0].mxu0
        %v1314 = vadd.f32 %v1048, %v1313
        %v1315 = vpop.f32.mrb[0].mxu0
        %1316 = vmatprep.mubr.bf16.mxu0 0
        %1317 = vmatmul.mubr.bf16.gmra.mrb[0].mxu0 %v1204
        %v1318 = vpop.f32.mrb[0].mxu0
        %v1319 = vadd.f32 %v1053, %v1318
        %v1320 = vpop.f32.mrb[0].mxu0
        %v1321 = vpop.f32.mrb[0].mxu0
        %v1322 = vadd.f32 %v1056, %v1321
        %v1323 = vpop.f32.mrb[0].mxu0
        %1324 = vmatprep.mubr.bf16.mxu0 0
        %1325 = vmatmul.mubr.bf16.gmra.mrb[0].mxu0 %v1207
        %v1326 = vpop.f32.mrb[0].mxu0
        %v1327 = vadd.f32 %v1061, %v1326
        %v1328 = vpop.f32.mrb[0].mxu0
        %v1329 = vpop.f32.mrb[0].mxu0
        %v1330 = vadd.f32 %v1064, %v1329
        %v1331 = vpop.f32.mrb[0].mxu0
        %1332 = vmatprep.mubr.bf16.mxu0 0
        %1333 = vmatmul.mubr.bf16.gmra.mrb[0].mxu0 %v1210
        %v1334 = vpop.f32.mrb[0].mxu0
        %v1335 = vadd.f32 %v1069, %v1334
        %v1336 = vpop.f32.mrb[0].mxu0
        %v1337 = vpop.f32.mrb[0].mxu0
        %v1338 = vadd.f32 %v1072, %v1337
        %v1339 = vpop.f32.mrb[0].mxu0
        %1340 = vmatprep.mubr.bf16.mxu0 0
        %1341 = vmatmul.mubr.bf16.gmra.mrb[0].mxu0 %v1213
        %v1342 = vpop.f32.mrb[0].mxu0
        %v1343 = vadd.f32 %v1077, %v1342
        %v1344 = vpop.f32.mrb[0].mxu0
        %v1345 = vpop.f32.mrb[0].mxu0
        %v1346 = vadd.f32 %v1080, %v1345
        %v1347 = vpop.f32.mrb[0].mxu0
        %1348 = vmatprep.mubr.bf16.mxu0 0
        %1349 = vmatmul.mubr.bf16.gmra.mrb[0].mxu0 %v1216
        %v1350 = vpop.f32.mrb[0].mxu0
        %v1351 = vadd.f32 %v1085, %v1350
        %v1352 = vpop.f32.mrb[0].mxu0
        %v1353 = vpop.f32.mrb[0].mxu0
        %v1354 = vadd.f32 %v1088, %v1353
        %v1355 = vpop.f32.mrb[0].mxu0
        %1356 = vmatprep.mubr.bf16.mxu0 0
        %1357 = vmatmul.mubr.bf16.gmra.mrb[0].mxu0 %v1219
        %v1358 = vpop.f32.mrb[0].mxu0
        %v1359 = vadd.f32 %v1093, %v1358
        %v1360 = vpop.f32.mrb[0].mxu0
        %v1361 = vpop.f32.mrb[0].mxu0
        %v1362 = vadd.f32 %v1096, %v1361
        %v1363 = vpop.f32.mrb[0].mxu0
        %1364 = vmatprep.mubr.bf16.mxu0 0
        %1365 = vmatmul.mubr.bf16.gmra.mrb[0].mxu0 %v1222
        %v1366 = vpop.f32.mrb[0].mxu0
        %v1367 = vadd.f32 %v1101, %v1366
        %v1368 = vpop.f32.mrb[0].mxu0
        %v1369 = vpop.f32.mrb[0].mxu0
        %v1370 = vadd.f32 %v1104, %v1369
        %v1371 = vpop.f32.mrb[0].mxu0
        %1372 = vmatprep.mubr.bf16.mxu0 0
        %1373 = vmatmul.mubr.bf16.gmra.mrb[0].mxu0 %v1225
        %v1374 = vpop.f32.mrb[0].mxu0
        %v1375 = vadd.f32 %v1109, %v1374
        %v1376 = vpop.f32.mrb[0].mxu0
        %v1377 = vpop.f32.mrb[0].mxu0
        %v1378 = vadd.f32 %v1112, %v1377
        %v1379 = vpop.f32.mrb[0].mxu0
        %1380 = vmatprep.mubr.bf16.mxu0 0
        %1381 = vmatmul.mubr.bf16.gmra.mrb[0].mxu0 %v1228
        %v1382 = vpop.f32.mrb[0].mxu0
        %v1383 = vadd.f32 %v1117, %v1382
        %v1384 = vpop.f32.mrb[0].mxu0
        %v1385 = vpop.f32.mrb[0].mxu0
        %v1386 = vadd.f32 %v1120, %v1385
        %v1387 = vpop.f32.mrb[0].mxu0
        %1388 = vmatprep.mubr.bf16.mxu0 0
        %1389 = vmatmul.mubr.bf16.gmra.mrb[0].mxu0 %v1231
        %v1390 = vpop.f32.mrb[0].mxu0
        %v1391 = vadd.f32 %v1125, %v1390
        %v1392 = vpop.f32.mrb[0].mxu0
        %v1393 = vpop.f32.mrb[0].mxu0
        %v1394 = vadd.f32 %v1128, %v1393
        %v1395 = vpop.f32.mrb[0].mxu0
        %1396 = vmatprep.mubr.bf16.mxu0 0
        %1397 = vmatmul.mubr.bf16.gmra.mrb[0].mxu0 %v1234
        %v1398 = vpop.f32.mrb[0].mxu0
        %v1399 = vadd.f32 %v1133, %v1398
        %v1400 = vpop.f32.mrb[0].mxu0
        %v1401 = vpop.f32.mrb[0].mxu0
        %v1402 = vadd.f32 %v1136, %v1401
        %v1403 = vpop.f32.mrb[0].mxu0
        %1404 = vmatprep.mubr.bf16.mxu0 0
        %1405 = vmatmul.mubr.bf16.gmra.mrb[0].mxu0 %v1237
        %v1406 = vpop.f32.mrb[0].mxu0
        %v1407 = vadd.f32 %v1141, %v1406
        %v1408 = vpop.f32.mrb[0].mxu0
        %v1409 = vpop.f32.mrb[0].mxu0
        %v1410 = vadd.f32 %v1144, %v1409
        %v1411 = vpop.f32.mrb[0].mxu0
        %1412 = vmatprep.mubr.bf16.mxu0 0
        %1413 = vmatmul.mubr.bf16.gmra.mrb[0].mxu0 %v1240
        %v1414 = vpop.f32.mrb[0].mxu0
        %v1415 = vadd.f32 %v1149, %v1414
        %v1416 = vpop.f32.mrb[0].mxu0
        %v1417 = vpop.f32.mrb[0].mxu0
        %v1418 = vadd.f32 %v1152, %v1417
        %v1419 = vpop.f32.mrb[0].mxu0
        %1420 = vmatprep.mubr.bf16.mxu0 0
        %1421 = vmatmul.mubr.bf16.gmra.mrb[0].mxu0 %v1243
        %v1422 = vpop.f32.mrb[0].mxu0
        %v1423 = vadd.f32 %v1157, %v1422
        %v1424 = vpop.f32.mrb[0].mxu0
        %v1425 = vpop.f32.mrb[0].mxu0
        %v1426 = vadd.f32 %v1160, %v1425
        %v1427 = vpop.f32.mrb[0].mxu0
        %1428 = vmatprep.mubr.bf16.mxu0 0
        %1429 = vmatmul.mubr.bf16.gmra.mrb[0].mxu0 %v1246
        %v1430 = vpop.f32.mrb[0].mxu0
        %v1431 = vadd.f32 %v1165, %v1430
        %v1432 = vpop.f32.mrb[0].mxu0
        %v1433 = vpop.f32.mrb[0].mxu0
        %v1434 = vadd.f32 %v1168, %v1433
        %v1435 = vpop.f32.mrb[0].mxu0
        %1436 = vmatprep.mubr.bf16.mxu0 0
        %1437 = vmatmul.mubr.bf16.gmra.mrb[0].mxu0 %v1249
        %v1438 = vpop.f32.mrb[0].mxu0
        %v1439 = vadd.f32 %v1173, %v1438
        %v1440 = vpop.f32.mrb[0].mxu0
        %v1441 = vpop.f32.mrb[0].mxu0
        %v1442 = vadd.f32 %v1176, %v1441
        %v1443 = vpop.f32.mrb[0].mxu0
        %1444 = vmatprep.mubr.bf16.mxu0 0
        %1445 = vmatmul.mubr.bf16.gmra.mrb[0].mxu0 %v1252
        %v1446 = vpop.f32.mrb[0].mxu0
        %v1447 = vadd.f32 %v1181, %v1446
        %v1448 = vpop.f32.mrb[0].mxu0
        %v1449 = vpop.f32.mrb[0].mxu0
        %v1450 = vadd.f32 %v1184, %v1449
        %v1451 = vpop.f32.mrb[0].mxu0
        %1452 = vmatprep.mubr.bf16.mxu0 0
        %1453 = vmatmul.mubr.bf16.gmra.mrb[0].mxu0 %v1255
        %v1454 = vpop.f32.mrb[0].mxu0
        %v1455 = vadd.f32 %v1189, %v1454
        %v1456 = vpop.f32.mrb[0].mxu0
        %v1457 = vpop.f32.mrb[0].mxu0
        %v1458 = vpop.f32.mrb[0].mxu0
        %1459 = vdwg.mxu0
        %v1460 = vld [vmem:[#allocation2 + $0x7] sm:$0xff]
        %v1461 = vld [vmem:[#allocation2 + $0xf] sm:$0xff]
        %v1462 = vld [vmem:[#allocation2 + $0x17] sm:$0xff]
        %v1463 = vld [vmem:[#allocation2 + $0x1f] sm:$0xff]
        %v1464 = vld [vmem:[#allocation2 + $0x27] sm:$0xff]
        %v1465 = vld [vmem:[#allocation2 + $0x2f] sm:$0xff]
        %v1466 = vld [vmem:[#allocation2 + $0x37] sm:$0xff]
        %v1467 = vld [vmem:[#allocation2 + $0x3f] sm:$0xff]
        %v1468 = vld [vmem:[#allocation2 + $0x47] sm:$0xff]
        %v1469 = vld [vmem:[#allocation2 + $0x4f] sm:$0xff]
        %v1470 = vld [vmem:[#allocation2 + $0x57] sm:$0xff]
        %v1471 = vld [vmem:[#allocation2 + $0x5f] sm:$0xff]
        %v1472 = vld [vmem:[#allocation2 + $0x67] sm:$0xff]
        %v1473 = vld [vmem:[#allocation2 + $0x6f] sm:$0xff]
        %v1474 = vld [vmem:[#allocation2 + $0x77] sm:$0xff]
        %v1475 = vld [vmem:[#allocation2 + $0x7f] sm:$0xff]
        %v1476 = vld [vmem:[#allocation2 + $0x87] sm:$0xff]
        %v1477 = vld [vmem:[#allocation2 + $0x8f] sm:$0xff]
        %v1478 = vld [vmem:[#allocation2 + $0x97] sm:$0xff]
        %v1479 = vld [vmem:[#allocation2 + $0x9f] sm:$0xff]
        %v1480 = vld [vmem:[#allocation2 + $0xa7] sm:$0xff]
        %v1481 = vld [vmem:[#allocation2 + $0xaf] sm:$0xff]
        %v1482 = vld [vmem:[#allocation2 + $0xb7] sm:$0xff]
        %v1483 = vld [vmem:[#allocation2 + $0xbf] sm:$0xff]
        %v1484 = vld [vmem:[#allocation2 + $0xc7] sm:$0xff]
        %v1485 = vld [vmem:[#allocation2 + $0xcf] sm:$0xff]
        %v1486 = vld [vmem:[#allocation2 + $0xd7] sm:$0xff]
        %v1487 = vld [vmem:[#allocation2 + $0xdf] sm:$0xff]
        %v1488 = vld [vmem:[#allocation2 + $0xe7] sm:$0xff]
        %v1489 = vld [vmem:[#allocation2 + $0xef] sm:$0xff]
        %v1490 = vld [vmem:[#allocation2 + $0xf7] sm:$0xff]
        %v1491 = vld [vmem:[#allocation2 + $0xff] sm:$0xff]
        %v1492 = vld [vmem:[#allocation2 + $0x107] sm:$0xff]
        %v1493 = vld [vmem:[#allocation2 + $0x10f] sm:$0xff]
        %v1494 = vld [vmem:[#allocation2 + $0x117] sm:$0xff]
        %v1495 = vld [vmem:[#allocation2 + $0x11f] sm:$0xff]
        %v1496 = vld [vmem:[#allocation2 + $0x127] sm:$0xff]
        %v1497 = vld [vmem:[#allocation2 + $0x12f] sm:$0xff]
        %v1498 = vld [vmem:[#allocation2 + $0x137] sm:$0xff]
        %v1499 = vld [vmem:[#allocation2 + $0x13f] sm:$0xff]
        %v1500 = vld [vmem:[#allocation2 + $0x147] sm:$0xf]
        %v1501 = vpack.c.bf16 %v1461, %v1460
        %v1502 = vpack.c.bf16 %v1463, %v1462
        %v1503 = vpack.c.bf16 %v1465, %v1464
        %v1504 = vpack.c.bf16 %v1467, %v1466
        %v1505 = vpack.c.bf16 %v1469, %v1468
        %v1506 = vpack.c.bf16 %v1471, %v1470
        %v1507 = vpack.c.bf16 %v1473, %v1472
        %v1508 = vpack.c.bf16 %v1475, %v1474
        %v1509 = vpack.c.bf16 %v1477, %v1476
        %v1510 = vpack.c.bf16 %v1479, %v1478
        %v1511 = vpack.c.bf16 %v1481, %v1480
        %v1512 = vpack.c.bf16 %v1483, %v1482
        %v1513 = vpack.c.bf16 %v1485, %v1484
        %v1514 = vpack.c.bf16 %v1487, %v1486
        %v1515 = vpack.c.bf16 %v1489, %v1488
        %v1516 = vpack.c.bf16 %v1491, %v1490
        %v1517 = vpack.c.bf16 %v1493, %v1492
        %v1518 = vpack.c.bf16 %v1495, %v1494
        %v1519 = vpack.c.bf16 %v1497, %v1496
        %v1520 = vpack.c.bf16 %v1499, %v1498
        %v1521 = vpack.c.bf16 %v1500, %v1500
        %s1522 = scalar_lea.vmem %s1, 4
        %v1523 = vld [vmem:[%s1522] sm:$0x3]
        %v1525 = vsel %vm757, %v1501, 0
        %v1528 = vsel %vm757, %v1502, 0
        %v1531 = vsel %vm757, %v1503, 0
        %v1534 = vsel %vm757, %v1504, 0
        %v1537 = vsel %vm757, %v1505, 0
        %v1540 = vsel %vm757, %v1506, 0
        %v1543 = vsel %vm757, %v1507, 0
        %v1546 = vsel %vm757, %v1508, 0
        %v1549 = vsel %vm757, %v1509, 0
        %v1552 = vsel %vm757, %v1510, 0
        %v1555 = vsel %vm757, %v1511, 0
        %v1558 = vsel %vm757, %v1512, 0
        %v1561 = vsel %vm757, %v1513, 0
        %v1564 = vsel %vm757, %v1514, 0
        %v1567 = vsel %vm757, %v1515, 0
        %v1570 = vsel %vm757, %v1516, 0
        %v1573 = vsel %vm757, %v1517, 0
        %v1576 = vsel %vm757, %v1518, 0
        %v1579 = vsel %vm757, %v1519, 0
        %v1582 = vsel %vm757, %v1520, 0
        %v1585 = vsel %vm757, %v1521, 0
        %v1588 = vsel %vm990, %v1523, 0
        %1590 = vmatprep.subr.bf16.mxu0 0
        %1591 = vmatpush1.bf16.msra.mxu0 %v1588
        %1592 = vmatprep.subr.bf16.mxu0 0
        %1593 = vmatpush1.bf16.msra.mxu0 0
        %1594 = vmatprep.subr.bf16.mxu0 0
        %1595 = vmatpush1.bf16.msra.mxu0 0
        %1596 = vmatprep.subr.bf16.mxu0 0
        %1597 = vmatpush1.bf16.msra.mxu0 0
        %1598 = vmatprep.subr.bf16.mxu0 0
        %1599 = vmatpush1.bf16.msra.mxu0 0
        %1600 = vmatprep.subr.bf16.mxu0 0
        %1601 = vmatpush1.bf16.msra.mxu0 0
        %1602 = vmatprep.subr.bf16.mxu0 0
        %1603 = vmatpush1.bf16.msra.mxu0 0
        %1604 = vmatprep.subr.bf16.mxu0 0
        %1605 = vmatpush1.bf16.msra.mxu0 0
        %1606 = vmatprep.subr.bf16.mxu0 0
        %1607 = vmatpush1.bf16.msra.mxu0 0
        %1608 = vmatprep.subr.bf16.mxu0 0
        %1609 = vmatpush1.bf16.msra.mxu0 0
        %1610 = vmatprep.subr.bf16.mxu0 0
        %1611 = vmatpush1.bf16.msra.mxu0 0
        %1612 = vmatprep.subr.bf16.mxu0 0
        %1613 = vmatpush1.bf16.msra.mxu0 0
        %1614 = vmatprep.subr.bf16.mxu0 0
        %1615 = vmatpush1.bf16.msra.mxu0 0
        %1616 = vmatprep.subr.bf16.mxu0 0
        %1617 = vmatpush1.bf16.msra.mxu0 0
        %1618 = vmatprep.subr.bf16.mxu0 0
        %1619 = vmatpush1.bf16.msra.mxu0 0
        %1620 = vmatprep.subr.bf16.mxu0 0
        %1621 = vmatpush1.bf16.msra.mxu0 0
        %1622 = vmatprep.mubr.bf16.mxu0 0
        %1623 = vmatmul.mubr.bf16.gmra.mrb[0].mxu0 %v1525
        %v1624 = vpop.f32.mrb[0].mxu0
        %v1625 = vadd.f32 0.0, %v1624
        %v1626 = vpop.f32.mrb[0].mxu0
        %v1627 = vpop.f32.mrb[0].mxu0
        %v1628 = vadd.f32 0.0, %v1627
        %v1629 = vpop.f32.mrb[0].mxu0
        %1630 = vmatprep.mubr.bf16.mxu0 0
        %1631 = vmatmul.mubr.bf16.gmra.mrb[0].mxu0 %v1528
        %v1632 = vpop.f32.mrb[0].mxu0
        %v1633 = vadd.f32 0.0, %v1632
        %v1634 = vpop.f32.mrb[0].mxu0
        %v1635 = vpop.f32.mrb[0].mxu0
        %v1636 = vadd.f32 0.0, %v1635
        %v1637 = vpop.f32.mrb[0].mxu0
        %1638 = vmatprep.mubr.bf16.mxu0 0
        %1639 = vmatmul.mubr.bf16.gmra.mrb[0].mxu0 %v1531
        %v1640 = vpop.f32.mrb[0].mxu0
        %v1641 = vadd.f32 0.0, %v1640
        %v1642 = vpop.f32.mrb[0].mxu0
        %v1643 = vpop.f32.mrb[0].mxu0
        %v1644 = vadd.f32 0.0, %v1643
        %v1645 = vpop.f32.mrb[0].mxu0
        %1646 = vmatprep.mubr.bf16.mxu0 0
        %1647 = vmatmul.mubr.bf16.gmra.mrb[0].mxu0 %v1534
        %v1648 = vpop.f32.mrb[0].mxu0
        %v1649 = vadd.f32 0.0, %v1648
        %v1650 = vpop.f32.mrb[0].mxu0
        %v1651 = vpop.f32.mrb[0].mxu0
        %v1652 = vadd.f32 0.0, %v1651
        %v1653 = vpop.f32.mrb[0].mxu0
        %1654 = vmatprep.mubr.bf16.mxu0 0
        %1655 = vmatmul.mubr.bf16.gmra.mrb[0].mxu0 %v1537
        %v1656 = vpop.f32.mrb[0].mxu0
        %v1657 = vadd.f32 0.0, %v1656
        %v1658 = vpop.f32.mrb[0].mxu0
        %v1659 = vpop.f32.mrb[0].mxu0
        %v1660 = vadd.f32 0.0, %v1659
        %v1661 = vpop.f32.mrb[0].mxu0
        %1662 = vmatprep.mubr.bf16.mxu0 0
        %1663 = vmatmul.mubr.bf16.gmra.mrb[0].mxu0 %v1540
        %v1664 = vpop.f32.mrb[0].mxu0
        %v1665 = vadd.f32 0.0, %v1664
        %v1666 = vpop.f32.mrb[0].mxu0
        %v1667 = vpop.f32.mrb[0].mxu0
        %v1668 = vadd.f32 0.0, %v1667
        %v1669 = vpop.f32.mrb[0].mxu0
        %1670 = vmatprep.mubr.bf16.mxu0 0
        %1671 = vmatmul.mubr.bf16.gmra.mrb[0].mxu0 %v1543
        %v1672 = vpop.f32.mrb[0].mxu0
        %v1673 = vadd.f32 0.0, %v1672
        %v1674 = vpop.f32.mrb[0].mxu0
        %v1675 = vpop.f32.mrb[0].mxu0
        %v1676 = vadd.f32 0.0, %v1675
        %v1677 = vpop.f32.mrb[0].mxu0
        %1678 = vmatprep.mubr.bf16.mxu0 0
        %1679 = vmatmul.mubr.bf16.gmra.mrb[0].mxu0 %v1546
        %v1680 = vpop.f32.mrb[0].mxu0
        %v1681 = vadd.f32 0.0, %v1680
        %v1682 = vpop.f32.mrb[0].mxu0
        %v1683 = vpop.f32.mrb[0].mxu0
        %v1684 = vadd.f32 0.0, %v1683
        %v1685 = vpop.f32.mrb[0].mxu0
        %1686 = vmatprep.mubr.bf16.mxu0 0
        %1687 = vmatmul.mubr.bf16.gmra.mrb[0].mxu0 %v1549
        %v1688 = vpop.f32.mrb[0].mxu0
        %v1689 = vadd.f32 0.0, %v1688
        %v1690 = vpop.f32.mrb[0].mxu0
        %v1691 = vpop.f32.mrb[0].mxu0
        %v1692 = vadd.f32 0.0, %v1691
        %v1693 = vpop.f32.mrb[0].mxu0
        %1694 = vmatprep.mubr.bf16.mxu0 0
        %1695 = vmatmul.mubr.bf16.gmra.mrb[0].mxu0 %v1552
        %v1696 = vpop.f32.mrb[0].mxu0
        %v1697 = vadd.f32 0.0, %v1696
        %v1698 = vpop.f32.mrb[0].mxu0
        %v1699 = vpop.f32.mrb[0].mxu0
        %v1700 = vadd.f32 0.0, %v1699
        %v1701 = vpop.f32.mrb[0].mxu0
        %1702 = vmatprep.mubr.bf16.mxu0 0
        %1703 = vmatmul.mubr.bf16.gmra.mrb[0].mxu0 %v1555
        %v1704 = vpop.f32.mrb[0].mxu0
        %v1705 = vadd.f32 0.0, %v1704
        %v1706 = vpop.f32.mrb[0].mxu0
        %v1707 = vpop.f32.mrb[0].mxu0
        %v1708 = vadd.f32 0.0, %v1707
        %v1709 = vpop.f32.mrb[0].mxu0
        %1710 = vmatprep.mubr.bf16.mxu0 0
        %1711 = vmatmul.mubr.bf16.gmra.mrb[0].mxu0 %v1558
        %v1712 = vpop.f32.mrb[0].mxu0
        %v1713 = vadd.f32 0.0, %v1712
        %v1714 = vpop.f32.mrb[0].mxu0
        %v1715 = vpop.f32.mrb[0].mxu0
        %v1716 = vadd.f32 0.0, %v1715
        %v1717 = vpop.f32.mrb[0].mxu0
        %1718 = vmatprep.mubr.bf16.mxu0 0
        %1719 = vmatmul.mubr.bf16.gmra.mrb[0].mxu0 %v1561
        %v1720 = vpop.f32.mrb[0].mxu0
        %v1721 = vadd.f32 0.0, %v1720
        %v1722 = vpop.f32.mrb[0].mxu0
        %v1723 = vpop.f32.mrb[0].mxu0
        %v1724 = vadd.f32 0.0, %v1723
        %v1725 = vpop.f32.mrb[0].mxu0
        %1726 = vmatprep.mubr.bf16.mxu0 0
        %1727 = vmatmul.mubr.bf16.gmra.mrb[0].mxu0 %v1564
        %v1728 = vpop.f32.mrb[0].mxu0
        %v1729 = vadd.f32 0.0, %v1728
        %v1730 = vpop.f32.mrb[0].mxu0
        %v1731 = vpop.f32.mrb[0].mxu0
        %v1732 = vadd.f32 0.0, %v1731
        %v1733 = vpop.f32.mrb[0].mxu0
        %1734 = vmatprep.mubr.bf16.mxu0 0
        %1735 = vmatmul.mubr.bf16.gmra.mrb[0].mxu0 %v1567
        %v1736 = vpop.f32.mrb[0].mxu0
        %v1737 = vadd.f32 0.0, %v1736
        %v1738 = vpop.f32.mrb[0].mxu0
        %v1739 = vpop.f32.mrb[0].mxu0
        %v1740 = vadd.f32 0.0, %v1739
        %v1741 = vpop.f32.mrb[0].mxu0
        %1742 = vmatprep.mubr.bf16.mxu0 0
        %1743 = vmatmul.mubr.bf16.gmra.mrb[0].mxu0 %v1570
        %v1744 = vpop.f32.mrb[0].mxu0
        %v1745 = vadd.f32 0.0, %v1744
        %v1746 = vpop.f32.mrb[0].mxu0
        %v1747 = vpop.f32.mrb[0].mxu0
        %v1748 = vadd.f32 0.0, %v1747
        %v1749 = vpop.f32.mrb[0].mxu0
        %1750 = vmatprep.mubr.bf16.mxu0 0
        %1751 = vmatmul.mubr.bf16.gmra.mrb[0].mxu0 %v1573
        %v1752 = vpop.f32.mrb[0].mxu0
        %v1753 = vadd.f32 0.0, %v1752
        %v1754 = vpop.f32.mrb[0].mxu0
        %v1755 = vpop.f32.mrb[0].mxu0
        %v1756 = vadd.f32 0.0, %v1755
        %v1757 = vpop.f32.mrb[0].mxu0
        %1758 = vmatprep.mubr.bf16.mxu0 0
        %1759 = vmatmul.mubr.bf16.gmra.mrb[0].mxu0 %v1576
        %v1760 = vpop.f32.mrb[0].mxu0
        %v1761 = vadd.f32 0.0, %v1760
        %v1762 = vpop.f32.mrb[0].mxu0
        %v1763 = vpop.f32.mrb[0].mxu0
        %v1764 = vadd.f32 0.0, %v1763
        %v1765 = vpop.f32.mrb[0].mxu0
        %1766 = vmatprep.mubr.bf16.mxu0 0
        %1767 = vmatmul.mubr.bf16.gmra.mrb[0].mxu0 %v1579
        %v1768 = vpop.f32.mrb[0].mxu0
        %v1769 = vadd.f32 0.0, %v1768
        %v1770 = vpop.f32.mrb[0].mxu0
        %v1771 = vpop.f32.mrb[0].mxu0
        %v1772 = vadd.f32 0.0, %v1771
        %v1773 = vpop.f32.mrb[0].mxu0
        %1774 = vmatprep.mubr.bf16.mxu0 0
        %1775 = vmatmul.mubr.bf16.gmra.mrb[0].mxu0 %v1582
        %v1776 = vpop.f32.mrb[0].mxu0
        %v1777 = vadd.f32 0.0, %v1776
        %v1778 = vpop.f32.mrb[0].mxu0
        %v1779 = vpop.f32.mrb[0].mxu0
        %v1780 = vadd.f32 0.0, %v1779
        %v1781 = vpop.f32.mrb[0].mxu0
        %1782 = vmatprep.mubr.bf16.mxu0 0
        %1783 = vmatmul.mubr.bf16.gmra.mrb[0].mxu0 %v1585
        %v1784 = vpop.f32.mrb[0].mxu0
        %v1785 = vadd.f32 0.0, %v1784
        %v1786 = vpop.f32.mrb[0].mxu0
        %v1787 = vpop.f32.mrb[0].mxu0
        %v1788 = vpop.f32.mrb[0].mxu0
        %1789 = vdwg.mxu0
        %v1790 = vadd.f32 %v1295, %v1625
        %v1791 = vadd.f32 %v1298, %v1628
        %v1792 = vadd.f32 %v1303, %v1633
        %v1793 = vadd.f32 %v1306, %v1636
        %v1794 = vadd.f32 %v1311, %v1641
        %v1795 = vadd.f32 %v1314, %v1644
        %v1796 = vadd.f32 %v1319, %v1649
        %v1797 = vadd.f32 %v1322, %v1652
        %v1798 = vadd.f32 %v1327, %v1657
        %v1799 = vadd.f32 %v1330, %v1660
        %v1800 = vadd.f32 %v1335, %v1665
        %v1801 = vadd.f32 %v1338, %v1668
        %v1802 = vadd.f32 %v1343, %v1673
        %v1803 = vadd.f32 %v1346, %v1676
        %v1804 = vadd.f32 %v1351, %v1681
        %v1805 = vadd.f32 %v1354, %v1684
        %v1806 = vadd.f32 %v1359, %v1689
        %v1807 = vadd.f32 %v1362, %v1692
        %v1808 = vadd.f32 %v1367, %v1697
        %v1809 = vadd.f32 %v1370, %v1700
        %v1810 = vadd.f32 %v1375, %v1705
        %v1811 = vadd.f32 %v1378, %v1708
        %v1812 = vadd.f32 %v1383, %v1713
        %v1813 = vadd.f32 %v1386, %v1716
        %v1814 = vadd.f32 %v1391, %v1721
        %v1815 = vadd.f32 %v1394, %v1724
        %v1816 = vadd.f32 %v1399, %v1729
        %v1817 = vadd.f32 %v1402, %v1732
        %v1818 = vadd.f32 %v1407, %v1737
        %v1819 = vadd.f32 %v1410, %v1740
        %v1820 = vadd.f32 %v1415, %v1745
        %v1821 = vadd.f32 %v1418, %v1748
        %v1822 = vadd.f32 %v1423, %v1753
        %v1823 = vadd.f32 %v1426, %v1756
        %v1824 = vadd.f32 %v1431, %v1761
        %v1825 = vadd.f32 %v1434, %v1764
        %v1826 = vadd.f32 %v1439, %v1769
        %v1827 = vadd.f32 %v1442, %v1772
        %v1828 = vadd.f32 %v1447, %v1777
        %v1829 = vadd.f32 %v1450, %v1780
        %v1830 = vadd.f32 %v1455, %v1785
        %v1831 = vld [vmem:[#allocation2 + $0x17] sm:$0xff]
        %v1832 = vld [vmem:[#allocation2 + $0x1f] sm:$0xff]
        %v1833 = vld [vmem:[#allocation2 + $0x27] sm:$0xff]
        %v1834 = vld [vmem:[#allocation2 + $0x2f] sm:$0xff]
        %v1835 = vld [vmem:[#allocation2 + $0x37] sm:$0xff]
        %v1836 = vld [vmem:[#allocation2 + $0x3f] sm:$0xff]
        %v1837 = vld [vmem:[#allocation2 + $0x47] sm:$0xff]
        %v1838 = vld [vmem:[#allocation2 + $0x4f] sm:$0xff]
        %v1839 = vld [vmem:[#allocation2 + $0x57] sm:$0xff]
        %v1840 = vld [vmem:[#allocation2 + $0x5f] sm:$0xff]
        %v1841 = vld [vmem:[#allocation2 + $0x67] sm:$0xff]
        %v1842 = vld [vmem:[#allocation2 + $0x6f] sm:$0xff]
        %v1843 = vld [vmem:[#allocation2 + $0x77] sm:$0xff]
        %v1844 = vld [vmem:[#allocation2 + $0x7f] sm:$0xff]
        %v1845 = vld [vmem:[#allocation2 + $0x87] sm:$0xff]
        %v1846 = vld [vmem:[#allocation2 + $0x8f] sm:$0xff]
        %v1847 = vld [vmem:[#allocation2 + $0x97] sm:$0xff]
        %v1848 = vld [vmem:[#allocation2 + $0x9f] sm:$0xff]
        %v1849 = vld [vmem:[#allocation2 + $0xa7] sm:$0xff]
        %v1850 = vld [vmem:[#allocation2 + $0xaf] sm:$0xff]
        %v1851 = vld [vmem:[#allocation2 + $0xb7] sm:$0xff]
        %v1852 = vld [vmem:[#allocation2 + $0xbf] sm:$0xff]
        %v1853 = vld [vmem:[#allocation2 + $0xc7] sm:$0xff]
        %v1854 = vld [vmem:[#allocation2 + $0xcf] sm:$0xff]
        %v1855 = vld [vmem:[#allocation2 + $0xd7] sm:$0xff]
        %v1856 = vld [vmem:[#allocation2 + $0xdf] sm:$0xff]
        %v1857 = vld [vmem:[#allocation2 + $0xe7] sm:$0xff]
        %v1858 = vld [vmem:[#allocation2 + $0xef] sm:$0xff]
        %v1859 = vld [vmem:[#allocation2 + $0xf7] sm:$0xff]
        %v1860 = vld [vmem:[#allocation2 + $0xff] sm:$0xff]
        %v1861 = vld [vmem:[#allocation2 + $0x107] sm:$0xff]
        %v1862 = vld [vmem:[#allocation2 + $0x10f] sm:$0xff]
        %v1863 = vld [vmem:[#allocation2 + $0x117] sm:$0xff]
        %v1864 = vld [vmem:[#allocation2 + $0x11f] sm:$0xff]
        %v1865 = vld [vmem:[#allocation2 + $0x127] sm:$0xff]
        %v1866 = vld [vmem:[#allocation2 + $0x12f] sm:$0xff]
        %v1867 = vld [vmem:[#allocation2 + $0x137] sm:$0xff]
        %v1868 = vld [vmem:[#allocation2 + $0x13f] sm:$0xff]
        %v1869 = vld [vmem:[#allocation2 + $0x147] sm:$0xff]
        %v1870 = vld [vmem:[#allocation2 + $0x14f] sm:$0xff]
        %v1871 = vld [vmem:[#allocation2 + $0x157] sm:$0xf]
        %v1872 = vpack.c.bf16 %v1832, %v1831
        %v1873 = vpack.c.bf16 %v1834, %v1833
        %v1874 = vpack.c.bf16 %v1836, %v1835
        %v1875 = vpack.c.bf16 %v1838, %v1837
        %v1876 = vpack.c.bf16 %v1840, %v1839
        %v1877 = vpack.c.bf16 %v1842, %v1841
        %v1878 = vpack.c.bf16 %v1844, %v1843
        %v1879 = vpack.c.bf16 %v1846, %v1845
        %v1880 = vpack.c.bf16 %v1848, %v1847
        %v1881 = vpack.c.bf16 %v1850, %v1849
        %v1882 = vpack.c.bf16 %v1852, %v1851
        %v1883 = vpack.c.bf16 %v1854, %v1853
        %v1884 = vpack.c.bf16 %v1856, %v1855
        %v1885 = vpack.c.bf16 %v1858, %v1857
        %v1886 = vpack.c.bf16 %v1860, %v1859
        %v1887 = vpack.c.bf16 %v1862, %v1861
        %v1888 = vpack.c.bf16 %v1864, %v1863
        %v1889 = vpack.c.bf16 %v1866, %v1865
        %v1890 = vpack.c.bf16 %v1868, %v1867
        %v1891 = vpack.c.bf16 %v1870, %v1869
        %v1892 = vpack.c.bf16 %v1871, %v1871
        %s1893 = scalar_lea.vmem %s1, 6
        %v1894 = vld [vmem:[%s1893] sm:$0x3]
        %v1896 = vsel %vm757, %v1872, 0
        %v1899 = vsel %vm757, %v1873, 0
        %v1902 = vsel %vm757, %v1874, 0
        %v1905 = vsel %vm757, %v1875, 0
        %v1908 = vsel %vm757, %v1876, 0
        %v1911 = vsel %vm757, %v1877, 0
        %v1914 = vsel %vm757, %v1878, 0
        %v1917 = vsel %vm757, %v1879, 0
        %v1920 = vsel %vm757, %v1880, 0
        %v1923 = vsel %vm757, %v1881, 0
        %v1926 = vsel %vm757, %v1882, 0
        %v1929 = vsel %vm757, %v1883, 0
        %v1932 = vsel %vm757, %v1884, 0
        %v1935 = vsel %vm757, %v1885, 0
        %v1938 = vsel %vm757, %v1886, 0
        %v1941 = vsel %vm757, %v1887, 0
        %v1944 = vsel %vm757, %v1888, 0
        %v1947 = vsel %vm757, %v1889, 0
        %v1950 = vsel %vm757, %v1890, 0
        %v1953 = vsel %vm757, %v1891, 0
        %v1956 = vsel %vm757, %v1892, 0
        %v1959 = vsel %vm990, %v1894, 0
        %1961 = vmatprep.subr.bf16.mxu0 0
        %1962 = vmatpush1.bf16.msra.mxu0 %v1959
        %1963 = vmatprep.subr.bf16.mxu0 0
        %1964 = vmatpush1.bf16.msra.mxu0 0
        %1965 = vmatprep.subr.bf16.mxu0 0
        %1966 = vmatpush1.bf16.msra.mxu0 0
        %1967 = vmatprep.subr.bf16.mxu0 0
        %1968 = vmatpush1.bf16.msra.mxu0 0
        %1969 = vmatprep.subr.bf16.mxu0 0
        %1970 = vmatpush1.bf16.msra.mxu0 0
        %1971 = vmatprep.subr.bf16.mxu0 0
        %1972 = vmatpush1.bf16.msra.mxu0 0
        %1973 = vmatprep.subr.bf16.mxu0 0
        %1974 = vmatpush1.bf16.msra.mxu0 0
        %1975 = vmatprep.subr.bf16.mxu0 0
        %1976 = vmatpush1.bf16.msra.mxu0 0
        %1977 = vmatprep.subr.bf16.mxu0 0
        %1978 = vmatpush1.bf16.msra.mxu0 0
        %1979 = vmatprep.subr.bf16.mxu0 0
        %1980 = vmatpush1.bf16.msra.mxu0 0
        %1981 = vmatprep.subr.bf16.mxu0 0
        %1982 = vmatpush1.bf16.msra.mxu0 0
        %1983 = vmatprep.subr.bf16.mxu0 0
        %1984 = vmatpush1.bf16.msra.mxu0 0
        %1985 = vmatprep.subr.bf16.mxu0 0
        %1986 = vmatpush1.bf16.msra.mxu0 0
        %1987 = vmatprep.subr.bf16.mxu0 0
        %1988 = vmatpush1.bf16.msra.mxu0 0
        %1989 = vmatprep.subr.bf16.mxu0 0
        %1990 = vmatpush1.bf16.msra.mxu0 0
        %1991 = vmatprep.subr.bf16.mxu0 0
        %1992 = vmatpush1.bf16.msra.mxu0 0
        %1993 = vmatprep.mubr.bf16.mxu0 0
        %1994 = vmatmul.mubr.bf16.gmra.mrb[0].mxu0 %v1896
        %v1995 = vpop.f32.mrb[0].mxu0
        %v1996 = vadd.f32 0.0, %v1995
        %v1997 = vpop.f32.mrb[0].mxu0
        %v1998 = vpop.f32.mrb[0].mxu0
        %v1999 = vadd.f32 0.0, %v1998
        %v2000 = vpop.f32.mrb[0].mxu0
        %2001 = vmatprep.mubr.bf16.mxu0 0
        %2002 = vmatmul.mubr.bf16.gmra.mrb[0].mxu0 %v1899
        %v2003 = vpop.f32.mrb[0].mxu0
        %v2004 = vadd.f32 0.0, %v2003
        %v2005 = vpop.f32.mrb[0].mxu0
        %v2006 = vpop.f32.mrb[0].mxu0
        %v2007 = vadd.f32 0.0, %v2006
        %v2008 = vpop.f32.mrb[0].mxu0
        %2009 = vmatprep.mubr.bf16.mxu0 0
        %2010 = vmatmul.mubr.bf16.gmra.mrb[0].mxu0 %v1902
        %v2011 = vpop.f32.mrb[0].mxu0
        %v2012 = vadd.f32 0.0, %v2011
        %v2013 = vpop.f32.mrb[0].mxu0
        %v2014 = vpop.f32.mrb[0].mxu0
        %v2015 = vadd.f32 0.0, %v2014
        %v2016 = vpop.f32.mrb[0].mxu0
        %2017 = vmatprep.mubr.bf16.mxu0 0
        %2018 = vmatmul.mubr.bf16.gmra.mrb[0].mxu0 %v1905
        %v2019 = vpop.f32.mrb[0].mxu0
        %v2020 = vadd.f32 0.0, %v2019
        %v2021 = vpop.f32.mrb[0].mxu0
        %v2022 = vpop.f32.mrb[0].mxu0
        %v2023 = vadd.f32 0.0, %v2022
        %v2024 = vpop.f32.mrb[0].mxu0
        %2025 = vmatprep.mubr.bf16.mxu0 0
        %2026 = vmatmul.mubr.bf16.gmra.mrb[0].mxu0 %v1908
        %v2027 = vpop.f32.mrb[0].mxu0
        %v2028 = vadd.f32 0.0, %v2027
        %v2029 = vpop.f32.mrb[0].mxu0
        %v2030 = vpop.f32.mrb[0].mxu0
        %v2031 = vadd.f32 0.0, %v2030
        %v2032 = vpop.f32.mrb[0].mxu0
        %2033 = vmatprep.mubr.bf16.mxu0 0
        %2034 = vmatmul.mubr.bf16.gmra.mrb[0].mxu0 %v1911
        %v2035 = vpop.f32.mrb[0].mxu0
        %v2036 = vadd.f32 0.0, %v2035
        %v2037 = vpop.f32.mrb[0].mxu0
        %v2038 = vpop.f32.mrb[0].mxu0
        %v2039 = vadd.f32 0.0, %v2038
        %v2040 = vpop.f32.mrb[0].mxu0
        %2041 = vmatprep.mubr.bf16.mxu0 0
        %2042 = vmatmul.mubr.bf16.gmra.mrb[0].mxu0 %v1914
        %v2043 = vpop.f32.mrb[0].mxu0
        %v2044 = vadd.f32 0.0, %v2043
        %v2045 = vpop.f32.mrb[0].mxu0
        %v2046 = vpop.f32.mrb[0].mxu0
        %v2047 = vadd.f32 0.0, %v2046
        %v2048 = vpop.f32.mrb[0].mxu0
        %2049 = vmatprep.mubr.bf16.mxu0 0
        %2050 = vmatmul.mubr.bf16.gmra.mrb[0].mxu0 %v1917
        %v2051 = vpop.f32.mrb[0].mxu0
        %v2052 = vadd.f32 0.0, %v2051
        %v2053 = vpop.f32.mrb[0].mxu0
        %v2054 = vpop.f32.mrb[0].mxu0
        %v2055 = vadd.f32 0.0, %v2054
        %v2056 = vpop.f32.mrb[0].mxu0
        %2057 = vmatprep.mubr.bf16.mxu0 0
        %2058 = vmatmul.mubr.bf16.gmra.mrb[0].mxu0 %v1920
        %v2059 = vpop.f32.mrb[0].mxu0
        %v2060 = vadd.f32 0.0, %v2059
        %v2061 = vpop.f32.mrb[0].mxu0
        %v2062 = vpop.f32.mrb[0].mxu0
        %v2063 = vadd.f32 0.0, %v2062
        %v2064 = vpop.f32.mrb[0].mxu0
        %2065 = vmatprep.mubr.bf16.mxu0 0
        %2066 = vmatmul.mubr.bf16.gmra.mrb[0].mxu0 %v1923
        %v2067 = vpop.f32.mrb[0].mxu0
        %v2068 = vadd.f32 0.0, %v2067
        %v2069 = vpop.f32.mrb[0].mxu0
        %v2070 = vpop.f32.mrb[0].mxu0
        %v2071 = vadd.f32 0.0, %v2070
        %v2072 = vpop.f32.mrb[0].mxu0
        %2073 = vmatprep.mubr.bf16.mxu0 0
        %2074 = vmatmul.mubr.bf16.gmra.mrb[0].mxu0 %v1926
        %v2075 = vpop.f32.mrb[0].mxu0
        %v2076 = vadd.f32 0.0, %v2075
        %v2077 = vpop.f32.mrb[0].mxu0
        %v2078 = vpop.f32.mrb[0].mxu0
        %v2079 = vadd.f32 0.0, %v2078
        %v2080 = vpop.f32.mrb[0].mxu0
        %2081 = vmatprep.mubr.bf16.mxu0 0
        %2082 = vmatmul.mubr.bf16.gmra.mrb[0].mxu0 %v1929
        %v2083 = vpop.f32.mrb[0].mxu0
        %v2084 = vadd.f32 0.0, %v2083
        %v2085 = vpop.f32.mrb[0].mxu0
        %v2086 = vpop.f32.mrb[0].mxu0
        %v2087 = vadd.f32 0.0, %v2086
        %v2088 = vpop.f32.mrb[0].mxu0
        %2089 = vmatprep.mubr.bf16.mxu0 0
        %2090 = vmatmul.mubr.bf16.gmra.mrb[0].mxu0 %v1932
        %v2091 = vpop.f32.mrb[0].mxu0
        %v2092 = vadd.f32 0.0, %v2091
        %v2093 = vpop.f32.mrb[0].mxu0
        %v2094 = vpop.f32.mrb[0].mxu0
        %v2095 = vadd.f32 0.0, %v2094
        %v2096 = vpop.f32.mrb[0].mxu0
        %2097 = vmatprep.mubr.bf16.mxu0 0
        %2098 = vmatmul.mubr.bf16.gmra.mrb[0].mxu0 %v1935
        %v2099 = vpop.f32.mrb[0].mxu0
        %v2100 = vadd.f32 0.0, %v2099
        %v2101 = vpop.f32.mrb[0].mxu0
        %v2102 = vpop.f32.mrb[0].mxu0
        %v2103 = vadd.f32 0.0, %v2102
        %v2104 = vpop.f32.mrb[0].mxu0
        %2105 = vmatprep.mubr.bf16.mxu0 0
        %2106 = vmatmul.mubr.bf16.gmra.mrb[0].mxu0 %v1938
        %v2107 = vpop.f32.mrb[0].mxu0
        %v2108 = vadd.f32 0.0, %v2107
        %v2109 = vpop.f32.mrb[0].mxu0
        %v2110 = vpop.f32.mrb[0].mxu0
        %v2111 = vadd.f32 0.0, %v2110
        %v2112 = vpop.f32.mrb[0].mxu0
        %2113 = vmatprep.mubr.bf16.mxu0 0
        %2114 = vmatmul.mubr.bf16.gmra.mrb[0].mxu0 %v1941
        %v2115 = vpop.f32.mrb[0].mxu0
        %v2116 = vadd.f32 0.0, %v2115
        %v2117 = vpop.f32.mrb[0].mxu0
        %v2118 = vpop.f32.mrb[0].mxu0
        %v2119 = vadd.f32 0.0, %v2118
        %v2120 = vpop.f32.mrb[0].mxu0
        %2121 = vmatprep.mubr.bf16.mxu0 0
        %2122 = vmatmul.mubr.bf16.gmra.mrb[0].mxu0 %v1944
        %v2123 = vpop.f32.mrb[0].mxu0
        %v2124 = vadd.f32 0.0, %v2123
        %v2125 = vpop.f32.mrb[0].mxu0
        %v2126 = vpop.f32.mrb[0].mxu0
        %v2127 = vadd.f32 0.0, %v2126
        %v2128 = vpop.f32.mrb[0].mxu0
        %2129 = vmatprep.mubr.bf16.mxu0 0
        %2130 = vmatmul.mubr.bf16.gmra.mrb[0].mxu0 %v1947
        %v2131 = vpop.f32.mrb[0].mxu0
        %v2132 = vadd.f32 0.0, %v2131
        %v2133 = vpop.f32.mrb[0].mxu0
        %v2134 = vpop.f32.mrb[0].mxu0
        %v2135 = vadd.f32 0.0, %v2134
        %v2136 = vpop.f32.mrb[0].mxu0
        %2137 = vmatprep.mubr.bf16.mxu0 0
        %2138 = vmatmul.mubr.bf16.gmra.mrb[0].mxu0 %v1950
        %v2139 = vpop.f32.mrb[0].mxu0
        %v2140 = vadd.f32 0.0, %v2139
        %v2141 = vpop.f32.mrb[0].mxu0
        %v2142 = vpop.f32.mrb[0].mxu0
        %v2143 = vadd.f32 0.0, %v2142
        %v2144 = vpop.f32.mrb[0].mxu0
        %2145 = vmatprep.mubr.bf16.mxu0 0
        %2146 = vmatmul.mubr.bf16.gmra.mrb[0].mxu0 %v1953
        %v2147 = vpop.f32.mrb[0].mxu0
        %v2148 = vadd.f32 0.0, %v2147
        %v2149 = vpop.f32.mrb[0].mxu0
        %v2150 = vpop.f32.mrb[0].mxu0
        %v2151 = vadd.f32 0.0, %v2150
        %v2152 = vpop.f32.mrb[0].mxu0
        %2153 = vmatprep.mubr.bf16.mxu0 0
        %2154 = vmatmul.mubr.bf16.gmra.mrb[0].mxu0 %v1956
        %v2155 = vpop.f32.mrb[0].mxu0
        %v2156 = vadd.f32 0.0, %v2155
        %v2157 = vpop.f32.mrb[0].mxu0
        %v2158 = vpop.f32.mrb[0].mxu0
        %v2159 = vpop.f32.mrb[0].mxu0
        %2160 = vdwg.mxu0
        %v2161 = vadd.f32 %v1790, %v1996
        %v2162 = vadd.f32 %v1791, %v1999
        %v2163 = vadd.f32 %v1792, %v2004
        %v2164 = vadd.f32 %v1793, %v2007
        %v2165 = vadd.f32 %v1794, %v2012
        %v2166 = vadd.f32 %v1795, %v2015
        %v2167 = vadd.f32 %v1796, %v2020
        %v2168 = vadd.f32 %v1797, %v2023
        %v2169 = vadd.f32 %v1798, %v2028
        %v2170 = vadd.f32 %v1799, %v2031
        %v2171 = vadd.f32 %v1800, %v2036
        %v2172 = vadd.f32 %v1801, %v2039
        %v2173 = vadd.f32 %v1802, %v2044
        %v2174 = vadd.f32 %v1803, %v2047
        %v2175 = vadd.f32 %v1804, %v2052
        %v2176 = vadd.f32 %v1805, %v2055
        %v2177 = vadd.f32 %v1806, %v2060
        %v2178 = vadd.f32 %v1807, %v2063
        %v2179 = vadd.f32 %v1808, %v2068
        %v2180 = vadd.f32 %v1809, %v2071
        %v2181 = vadd.f32 %v1810, %v2076
        %v2182 = vadd.f32 %v1811, %v2079
        %v2183 = vadd.f32 %v1812, %v2084
        %v2184 = vadd.f32 %v1813, %v2087
        %v2185 = vadd.f32 %v1814, %v2092
        %v2186 = vadd.f32 %v1815, %v2095
        %v2187 = vadd.f32 %v1816, %v2100
        %v2188 = vadd.f32 %v1817, %v2103
        %v2189 = vadd.f32 %v1818, %v2108
        %v2190 = vadd.f32 %v1819, %v2111
        %v2191 = vadd.f32 %v1820, %v2116
        %v2192 = vadd.f32 %v1821, %v2119
        %v2193 = vadd.f32 %v1822, %v2124
        %v2194 = vadd.f32 %v1823, %v2127
        %v2195 = vadd.f32 %v1824, %v2132
        %v2196 = vadd.f32 %v1825, %v2135
        %v2197 = vadd.f32 %v1826, %v2140
        %v2198 = vadd.f32 %v1827, %v2143
        %v2199 = vadd.f32 %v1828, %v2148
        %v2200 = vadd.f32 %v1829, %v2151
        %v2201 = vadd.f32 %v1830, %v2156
        %v2202 = vld [vmem:[#allocation2 + $0x18] sm:$0xff]
        %v2203 = vld [vmem:[#allocation2 + $0x20] sm:$0xff]
        %v2204 = vld [vmem:[#allocation2 + $0x28] sm:$0xff]
        %v2205 = vld [vmem:[#allocation2 + $0x30] sm:$0xff]
        %v2206 = vld [vmem:[#allocation2 + $0x38] sm:$0xff]
        %v2207 = vld [vmem:[#allocation2 + $0x40] sm:$0xff]
        %v2208 = vld [vmem:[#allocation2 + $0x48] sm:$0xff]
        %v2209 = vld [vmem:[#allocation2 + $0x50] sm:$0xff]
        %v2210 = vld [vmem:[#allocation2 + $0x58] sm:$0xff]
        %v2211 = vld [vmem:[#allocation2 + $0x60] sm:$0xff]
        %v2212 = vld [vmem:[#allocation2 + $0x68] sm:$0xff]
        %v2213 = vld [vmem:[#allocation2 + $0x70] sm:$0xff]
        %v2214 = vld [vmem:[#allocation2 + $0x78] sm:$0xff]
        %v2215 = vld [vmem:[#allocation2 + $0x80] sm:$0xff]
        %v2216 = vld [vmem:[#allocation2 + $0x88] sm:$0xff]
        %v2217 = vld [vmem:[#allocation2 + $0x90] sm:$0xff]
        %v2218 = vld [vmem:[#allocation2 + $0x98] sm:$0xff]
        %v2219 = vld [vmem:[#allocation2 + $0xa0] sm:$0xff]
        %v2220 = vld [vmem:[#allocation2 + $0xa8] sm:$0xff]
        %v2221 = vld [vmem:[#allocation2 + $0xb0] sm:$0xff]
        %v2222 = vld [vmem:[#allocation2 + $0xb8] sm:$0xff]
        %v2223 = vld [vmem:[#allocation2 + $0xc0] sm:$0xff]
        %v2224 = vld [vmem:[#allocation2 + $0xc8] sm:$0xff]
        %v2225 = vld [vmem:[#allocation2 + $0xd0] sm:$0xff]
        %v2226 = vld [vmem:[#allocation2 + $0xd8] sm:$0xff]
        %v2227 = vld [vmem:[#allocation2 + $0xe0] sm:$0xff]
        %v2228 = vld [vmem:[#allocation2 + $0xe8] sm:$0xff]
        %v2229 = vld [vmem:[#allocation2 + $0xf0] sm:$0xff]
        %v2230 = vld [vmem:[#allocation2 + $0xf8] sm:$0xff]
        %v2231 = vld [vmem:[#allocation2 + $0x100] sm:$0xff]
        %v2232 = vld [vmem:[#allocation2 + $0x108] sm:$0xff]
        %v2233 = vld [vmem:[#allocation2 + $0x110] sm:$0xff]
        %v2234 = vld [vmem:[#allocation2 + $0x118] sm:$0xff]
        %v2235 = vld [vmem:[#allocation2 + $0x120] sm:$0xff]
        %v2236 = vld [vmem:[#allocation2 + $0x128] sm:$0xff]
        %v2237 = vld [vmem:[#allocation2 + $0x130] sm:$0xff]
        %v2238 = vld [vmem:[#allocation2 + $0x138] sm:$0xff]
        %v2239 = vld [vmem:[#allocation2 + $0x140] sm:$0xff]
        %v2240 = vld [vmem:[#allocation2 + $0x148] sm:$0xff]
        %v2241 = vld [vmem:[#allocation2 + $0x150] sm:$0xff]
        %v2242 = vld [vmem:[#allocation2 + $0x158] sm:$0xf]
        %v2243 = vpack.c.bf16 %v2203, %v2202
        %v2244 = vpack.c.bf16 %v2205, %v2204
        %v2245 = vpack.c.bf16 %v2207, %v2206
        %v2246 = vpack.c.bf16 %v2209, %v2208
        %v2247 = vpack.c.bf16 %v2211, %v2210
        %v2248 = vpack.c.bf16 %v2213, %v2212
        %v2249 = vpack.c.bf16 %v2215, %v2214
        %v2250 = vpack.c.bf16 %v2217, %v2216
        %v2251 = vpack.c.bf16 %v2219, %v2218
        %v2252 = vpack.c.bf16 %v2221, %v2220
        %v2253 = vpack.c.bf16 %v2223, %v2222
        %v2254 = vpack.c.bf16 %v2225, %v2224
        %v2255 = vpack.c.bf16 %v2227, %v2226
        %v2256 = vpack.c.bf16 %v2229, %v2228
        %v2257 = vpack.c.bf16 %v2231, %v2230
        %v2258 = vpack.c.bf16 %v2233, %v2232
        %v2259 = vpack.c.bf16 %v2235, %v2234
        %v2260 = vpack.c.bf16 %v2237, %v2236
        %v2261 = vpack.c.bf16 %v2239, %v2238
        %v2262 = vpack.c.bf16 %v2241, %v2240
        %v2263 = vpack.c.bf16 %v2242, %v2242
        %s2264 = scalar_lea.vmem %s1, 8
        %v2265 = vld [vmem:[%s2264] sm:$0x3]
        %v2267 = vsel %vm757, %v2243, 0
        %v2270 = vsel %vm757, %v2244, 0
        %v2273 = vsel %vm757, %v2245, 0
        %v2276 = vsel %vm757, %v2246, 0
        %v2279 = vsel %vm757, %v2247, 0
        %v2282 = vsel %vm757, %v2248, 0
        %v2285 = vsel %vm757, %v2249, 0
        %v2288 = vsel %vm757, %v2250, 0
        %v2291 = vsel %vm757, %v2251, 0
        %v2294 = vsel %vm757, %v2252, 0
        %v2297 = vsel %vm757, %v2253, 0
        %v2300 = vsel %vm757, %v2254, 0
        %v2303 = vsel %vm757, %v2255, 0
        %v2306 = vsel %vm757, %v2256, 0
        %v2309 = vsel %vm757, %v2257, 0
        %v2312 = vsel %vm757, %v2258, 0
        %v2315 = vsel %vm757, %v2259, 0
        %v2318 = vsel %vm757, %v2260, 0
        %v2321 = vsel %vm757, %v2261, 0
        %v2324 = vsel %vm757, %v2262, 0
        %v2327 = vsel %vm757, %v2263, 0
        %v2330 = vsel %vm990, %v2265, 0
        %2332 = vmatprep.subr.bf16.mxu0 0
        %2333 = vmatpush1.bf16.msra.mxu0 %v2330
        %2334 = vmatprep.subr.bf16.mxu0 0
        %2335 = vmatpush1.bf16.msra.mxu0 0
        %2336 = vmatprep.subr.bf16.mxu0 0
        %2337 = vmatpush1.bf16.msra.mxu0 0
        %2338 = vmatprep.subr.bf16.mxu0 0
        %2339 = vmatpush1.bf16.msra.mxu0 0
        %2340 = vmatprep.subr.bf16.mxu0 0
        %2341 = vmatpush1.bf16.msra.mxu0 0
        %2342 = vmatprep.subr.bf16.mxu0 0
        %2343 = vmatpush1.bf16.msra.mxu0 0
        %2344 = vmatprep.subr.bf16.mxu0 0
        %2345 = vmatpush1.bf16.msra.mxu0 0
        %2346 = vmatprep.subr.bf16.mxu0 0
        %2347 = vmatpush1.bf16.msra.mxu0 0
        %2348 = vmatprep.subr.bf16.mxu0 0
        %2349 = vmatpush1.bf16.msra.mxu0 0
        %2350 = vmatprep.subr.bf16.mxu0 0
        %2351 = vmatpush1.bf16.msra.mxu0 0
        %2352 = vmatprep.subr.bf16.mxu0 0
        %2353 = vmatpush1.bf16.msra.mxu0 0
        %2354 = vmatprep.subr.bf16.mxu0 0
        %2355 = vmatpush1.bf16.msra.mxu0 0
        %2356 = vmatprep.subr.bf16.mxu0 0
        %2357 = vmatpush1.bf16.msra.mxu0 0
        %2358 = vmatprep.subr.bf16.mxu0 0
        %2359 = vmatpush1.bf16.msra.mxu0 0
        %2360 = vmatprep.subr.bf16.mxu0 0
        %2361 = vmatpush1.bf16.msra.mxu0 0
        %2362 = vmatprep.subr.bf16.mxu0 0
        %2363 = vmatpush1.bf16.msra.mxu0 0
        %2364 = vmatprep.mubr.bf16.mxu0 0
        %2365 = vmatmul.mubr.bf16.gmra.mrb[0].mxu0 %v2267
        %v2366 = vpop.f32.mrb[0].mxu0
        %v2367 = vadd.f32 0.0, %v2366
        %v2368 = vpop.f32.mrb[0].mxu0
        %v2369 = vpop.f32.mrb[0].mxu0
        %v2370 = vadd.f32 0.0, %v2369
        %v2371 = vpop.f32.mrb[0].mxu0
        %2372 = vmatprep.mubr.bf16.mxu0 0
        %2373 = vmatmul.mubr.bf16.gmra.mrb[0].mxu0 %v2270
        %v2374 = vpop.f32.mrb[0].mxu0
        %v2375 = vadd.f32 0.0, %v2374
        %v2376 = vpop.f32.mrb[0].mxu0
        %v2377 = vpop.f32.mrb[0].mxu0
        %v2378 = vadd.f32 0.0, %v2377
        %v2379 = vpop.f32.mrb[0].mxu0
        %2380 = vmatprep.mubr.bf16.mxu0 0
        %2381 = vmatmul.mubr.bf16.gmra.mrb[0].mxu0 %v2273
        %v2382 = vpop.f32.mrb[0].mxu0
        %v2383 = vadd.f32 0.0, %v2382
        %v2384 = vpop.f32.mrb[0].mxu0
        %v2385 = vpop.f32.mrb[0].mxu0
        %v2386 = vadd.f32 0.0, %v2385
        %v2387 = vpop.f32.mrb[0].mxu0
        %2388 = vmatprep.mubr.bf16.mxu0 0
        %2389 = vmatmul.mubr.bf16.gmra.mrb[0].mxu0 %v2276
        %v2390 = vpop.f32.mrb[0].mxu0
        %v2391 = vadd.f32 0.0, %v2390
        %v2392 = vpop.f32.mrb[0].mxu0
        %v2393 = vpop.f32.mrb[0].mxu0
        %v2394 = vadd.f32 0.0, %v2393
        %v2395 = vpop.f32.mrb[0].mxu0
        %2396 = vmatprep.mubr.bf16.mxu0 0
        %2397 = vmatmul.mubr.bf16.gmra.mrb[0].mxu0 %v2279
        %v2398 = vpop.f32.mrb[0].mxu0
        %v2399 = vadd.f32 0.0, %v2398
        %v2400 = vpop.f32.mrb[0].mxu0
        %v2401 = vpop.f32.mrb[0].mxu0
        %v2402 = vadd.f32 0.0, %v2401
        %v2403 = vpop.f32.mrb[0].mxu0
        %2404 = vmatprep.mubr.bf16.mxu0 0
        %2405 = vmatmul.mubr.bf16.gmra.mrb[0].mxu0 %v2282
        %v2406 = vpop.f32.mrb[0].mxu0
        %v2407 = vadd.f32 0.0, %v2406
        %v2408 = vpop.f32.mrb[0].mxu0
        %v2409 = vpop.f32.mrb[0].mxu0
        %v2410 = vadd.f32 0.0, %v2409
        %v2411 = vpop.f32.mrb[0].mxu0
        %2412 = vmatprep.mubr.bf16.mxu0 0
        %2413 = vmatmul.mubr.bf16.gmra.mrb[0].mxu0 %v2285
        %v2414 = vpop.f32.mrb[0].mxu0
        %v2415 = vadd.f32 0.0, %v2414
        %v2416 = vpop.f32.mrb[0].mxu0
        %v2417 = vpop.f32.mrb[0].mxu0
        %v2418 = vadd.f32 0.0, %v2417
        %v2419 = vpop.f32.mrb[0].mxu0
        %2420 = vmatprep.mubr.bf16.mxu0 0
        %2421 = vmatmul.mubr.bf16.gmra.mrb[0].mxu0 %v2288
        %v2422 = vpop.f32.mrb[0].mxu0
        %v2423 = vadd.f32 0.0, %v2422
        %v2424 = vpop.f32.mrb[0].mxu0
        %v2425 = vpop.f32.mrb[0].mxu0
        %v2426 = vadd.f32 0.0, %v2425
        %v2427 = vpop.f32.mrb[0].mxu0
        %2428 = vmatprep.mubr.bf16.mxu0 0
        %2429 = vmatmul.mubr.bf16.gmra.mrb[0].mxu0 %v2291
        %v2430 = vpop.f32.mrb[0].mxu0
        %v2431 = vadd.f32 0.0, %v2430
        %v2432 = vpop.f32.mrb[0].mxu0
        %v2433 = vpop.f32.mrb[0].mxu0
        %v2434 = vadd.f32 0.0, %v2433
        %v2435 = vpop.f32.mrb[0].mxu0
        %2436 = vmatprep.mubr.bf16.mxu0 0
        %2437 = vmatmul.mubr.bf16.gmra.mrb[0].mxu0 %v2294
        %v2438 = vpop.f32.mrb[0].mxu0
        %v2439 = vadd.f32 0.0, %v2438
        %v2440 = vpop.f32.mrb[0].mxu0
        %v2441 = vpop.f32.mrb[0].mxu0
        %v2442 = vadd.f32 0.0, %v2441
        %v2443 = vpop.f32.mrb[0].mxu0
        %2444 = vmatprep.mubr.bf16.mxu0 0
        %2445 = vmatmul.mubr.bf16.gmra.mrb[0].mxu0 %v2297
        %v2446 = vpop.f32.mrb[0].mxu0
        %v2447 = vadd.f32 0.0, %v2446
        %v2448 = vpop.f32.mrb[0].mxu0
        %v2449 = vpop.f32.mrb[0].mxu0
        %v2450 = vadd.f32 0.0, %v2449
        %v2451 = vpop.f32.mrb[0].mxu0
        %2452 = vmatprep.mubr.bf16.mxu0 0
        %2453 = vmatmul.mubr.bf16.gmra.mrb[0].mxu0 %v2300
        %v2454 = vpop.f32.mrb[0].mxu0
        %v2455 = vadd.f32 0.0, %v2454
        %v2456 = vpop.f32.mrb[0].mxu0
        %v2457 = vpop.f32.mrb[0].mxu0
        %v2458 = vadd.f32 0.0, %v2457
        %v2459 = vpop.f32.mrb[0].mxu0
        %2460 = vmatprep.mubr.bf16.mxu0 0
        %2461 = vmatmul.mubr.bf16.gmra.mrb[0].mxu0 %v2303
        %v2462 = vpop.f32.mrb[0].mxu0
        %v2463 = vadd.f32 0.0, %v2462
        %v2464 = vpop.f32.mrb[0].mxu0
        %v2465 = vpop.f32.mrb[0].mxu0
        %v2466 = vadd.f32 0.0, %v2465
        %v2467 = vpop.f32.mrb[0].mxu0
        %2468 = vmatprep.mubr.bf16.mxu0 0
        %2469 = vmatmul.mubr.bf16.gmra.mrb[0].mxu0 %v2306
        %v2470 = vpop.f32.mrb[0].mxu0
        %v2471 = vadd.f32 0.0, %v2470
        %v2472 = vpop.f32.mrb[0].mxu0
        %v2473 = vpop.f32.mrb[0].mxu0
        %v2474 = vadd.f32 0.0, %v2473
        %v2475 = vpop.f32.mrb[0].mxu0
        %2476 = vmatprep.mubr.bf16.mxu0 0
        %2477 = vmatmul.mubr.bf16.gmra.mrb[0].mxu0 %v2309
        %v2478 = vpop.f32.mrb[0].mxu0
        %v2479 = vadd.f32 0.0, %v2478
        %v2480 = vpop.f32.mrb[0].mxu0
        %v2481 = vpop.f32.mrb[0].mxu0
        %v2482 = vadd.f32 0.0, %v2481
        %v2483 = vpop.f32.mrb[0].mxu0
        %2484 = vmatprep.mubr.bf16.mxu0 0
        %2485 = vmatmul.mubr.bf16.gmra.mrb[0].mxu0 %v2312
        %v2486 = vpop.f32.mrb[0].mxu0
        %v2487 = vadd.f32 0.0, %v2486
        %v2488 = vpop.f32.mrb[0].mxu0
        %v2489 = vpop.f32.mrb[0].mxu0
        %v2490 = vadd.f32 0.0, %v2489
        %v2491 = vpop.f32.mrb[0].mxu0
        %2492 = vmatprep.mubr.bf16.mxu0 0
        %2493 = vmatmul.mubr.bf16.gmra.mrb[0].mxu0 %v2315
        %v2494 = vpop.f32.mrb[0].mxu0
        %v2495 = vadd.f32 0.0, %v2494
        %v2496 = vpop.f32.mrb[0].mxu0
        %v2497 = vpop.f32.mrb[0].mxu0
        %v2498 = vadd.f32 0.0, %v2497
        %v2499 = vpop.f32.mrb[0].mxu0
        %2500 = vmatprep.mubr.bf16.mxu0 0
        %2501 = vmatmul.mubr.bf16.gmra.mrb[0].mxu0 %v2318
        %v2502 = vpop.f32.mrb[0].mxu0
        %v2503 = vadd.f32 0.0, %v2502
        %v2504 = vpop.f32.mrb[0].mxu0
        %v2505 = vpop.f32.mrb[0].mxu0
        %v2506 = vadd.f32 0.0, %v2505
        %v2507 = vpop.f32.mrb[0].mxu0
        %2508 = vmatprep.mubr.bf16.mxu0 0
        %2509 = vmatmul.mubr.bf16.gmra.mrb[0].mxu0 %v2321
        %v2510 = vpop.f32.mrb[0].mxu0
        %v2511 = vadd.f32 0.0, %v2510
        %v2512 = vpop.f32.mrb[0].mxu0
        %v2513 = vpop.f32.mrb[0].mxu0
        %v2514 = vadd.f32 0.0, %v2513
        %v2515 = vpop.f32.mrb[0].mxu0
        %2516 = vmatprep.mubr.bf16.mxu0 0
        %2517 = vmatmul.mubr.bf16.gmra.mrb[0].mxu0 %v2324
        %v2518 = vpop.f32.mrb[0].mxu0
        %v2519 = vadd.f32 0.0, %v2518
        %v2520 = vpop.f32.mrb[0].mxu0
        %v2521 = vpop.f32.mrb[0].mxu0
        %v2522 = vadd.f32 0.0, %v2521
        %v2523 = vpop.f32.mrb[0].mxu0
        %2524 = vmatprep.mubr.bf16.mxu0 0
        %2525 = vmatmul.mubr.bf16.gmra.mrb[0].mxu0 %v2327
        %v2526 = vpop.f32.mrb[0].mxu0
        %v2527 = vadd.f32 0.0, %v2526
        %v2528 = vpop.f32.mrb[0].mxu0
        %v2529 = vpop.f32.mrb[0].mxu0
        %v2530 = vpop.f32.mrb[0].mxu0
        %2531 = vdwg.mxu0
        %v2532 = vadd.f32 %v2161, %v2367
        %v2533 = vadd.f32 %v2162, %v2370
        %v2534 = vadd.f32 %v2163, %v2375
        %v2535 = vadd.f32 %v2164, %v2378
        %v2536 = vadd.f32 %v2165, %v2383
        %v2537 = vadd.f32 %v2166, %v2386
        %v2538 = vadd.f32 %v2167, %v2391
        %v2539 = vadd.f32 %v2168, %v2394
        %v2540 = vadd.f32 %v2169, %v2399
        %v2541 = vadd.f32 %v2170, %v2402
        %v2542 = vadd.f32 %v2171, %v2407
        %v2543 = vadd.f32 %v2172, %v2410
        %v2544 = vadd.f32 %v2173, %v2415
        %v2545 = vadd.f32 %v2174, %v2418
        %v2546 = vadd.f32 %v2175, %v2423
        %v2547 = vadd.f32 %v2176, %v2426
        %v2548 = vadd.f32 %v2177, %v2431
        %v2549 = vadd.f32 %v2178, %v2434
        %v2550 = vadd.f32 %v2179, %v2439
        %v2551 = vadd.f32 %v2180, %v2442
        %v2552 = vadd.f32 %v2181, %v2447
        %v2553 = vadd.f32 %v2182, %v2450
        %v2554 = vadd.f32 %v2183, %v2455
        %v2555 = vadd.f32 %v2184, %v2458
        %v2556 = vadd.f32 %v2185, %v2463
        %v2557 = vadd.f32 %v2186, %v2466
        %v2558 = vadd.f32 %v2187, %v2471
        %v2559 = vadd.f32 %v2188, %v2474
        %v2560 = vadd.f32 %v2189, %v2479
        %v2561 = vadd.f32 %v2190, %v2482
        %v2562 = vadd.f32 %v2191, %v2487
        %v2563 = vadd.f32 %v2192, %v2490
        %v2564 = vadd.f32 %v2193, %v2495
        %v2565 = vadd.f32 %v2194, %v2498
        %v2566 = vadd.f32 %v2195, %v2503
        %v2567 = vadd.f32 %v2196, %v2506
        %v2568 = vadd.f32 %v2197, %v2511
        %v2569 = vadd.f32 %v2198, %v2514
        %v2570 = vadd.f32 %v2199, %v2519
        %v2571 = vadd.f32 %v2200, %v2522
        %v2572 = vadd.f32 %v2201, %v2527
        %v2573 = vld [vmem:[#allocation2 + $0x19] sm:$0xff]
        %v2574 = vld [vmem:[#allocation2 + $0x21] sm:$0xff]
        %v2575 = vld [vmem:[#allocation2 + $0x29] sm:$0xff]
        %v2576 = vld [vmem:[#allocation2 + $0x31] sm:$0xff]
        %v2577 = vld [vmem:[#allocation2 + $0x39] sm:$0xff]
        %v2578 = vld [vmem:[#allocation2 + $0x41] sm:$0xff]
        %v2579 = vld [vmem:[#allocation2 + $0x49] sm:$0xff]
        %v2580 = vld [vmem:[#allocation2 + $0x51] sm:$0xff]
        %v2581 = vld [vmem:[#allocation2 + $0x59] sm:$0xff]
        %v2582 = vld [vmem:[#allocation2 + $0x61] sm:$0xff]
        %v2583 = vld [vmem:[#allocation2 + $0x69] sm:$0xff]
        %v2584 = vld [vmem:[#allocation2 + $0x71] sm:$0xff]
        %v2585 = vld [vmem:[#allocation2 + $0x79] sm:$0xff]
        %v2586 = vld [vmem:[#allocation2 + $0x81] sm:$0xff]
        %v2587 = vld [vmem:[#allocation2 + $0x89] sm:$0xff]
        %v2588 = vld [vmem:[#allocation2 + $0x91] sm:$0xff]
        %v2589 = vld [vmem:[#allocation2 + $0x99] sm:$0xff]
        %v2590 = vld [vmem:[#allocation2 + $0xa1] sm:$0xff]
        %v2591 = vld [vmem:[#allocation2 + $0xa9] sm:$0xff]
        %v2592 = vld [vmem:[#allocation2 + $0xb1] sm:$0xff]
        %v2593 = vld [vmem:[#allocation2 + $0xb9] sm:$0xff]
        %v2594 = vld [vmem:[#allocation2 + $0xc1] sm:$0xff]
        %v2595 = vld [vmem:[#allocation2 + $0xc9] sm:$0xff]
        %v2596 = vld [vmem:[#allocation2 + $0xd1] sm:$0xff]
        %v2597 = vld [vmem:[#allocation2 + $0xd9] sm:$0xff]
        %v2598 = vld [vmem:[#allocation2 + $0xe1] sm:$0xff]
        %v2599 = vld [vmem:[#allocation2 + $0xe9] sm:$0xff]
        %v2600 = vld [vmem:[#allocation2 + $0xf1] sm:$0xff]
        %v2601 = vld [vmem:[#allocation2 + $0xf9] sm:$0xff]
        %v2602 = vld [vmem:[#allocation2 + $0x101] sm:$0xff]
        %v2603 = vld [vmem:[#allocation2 + $0x109] sm:$0xff]
        %v2604 = vld [vmem:[#allocation2 + $0x111] sm:$0xff]
        %v2605 = vld [vmem:[#allocation2 + $0x119] sm:$0xff]
        %v2606 = vld [vmem:[#allocation2 + $0x121] sm:$0xff]
        %v2607 = vld [vmem:[#allocation2 + $0x129] sm:$0xff]
        %v2608 = vld [vmem:[#allocation2 + $0x131] sm:$0xff]
        %v2609 = vld [vmem:[#allocation2 + $0x139] sm:$0xff]
        %v2610 = vld [vmem:[#allocation2 + $0x141] sm:$0xff]
        %v2611 = vld [vmem:[#allocation2 + $0x149] sm:$0xff]
        %v2612 = vld [vmem:[#allocation2 + $0x151] sm:$0xff]
        %v2613 = vld [vmem:[#allocation2 + $0x159] sm:$0xf]
        %v2614 = vpack.c.bf16 %v2574, %v2573
        %v2615 = vpack.c.bf16 %v2576, %v2575
        %v2616 = vpack.c.bf16 %v2578, %v2577
        %v2617 = vpack.c.bf16 %v2580, %v2579
        %v2618 = vpack.c.bf16 %v2582, %v2581
        %v2619 = vpack.c.bf16 %v2584, %v2583
        %v2620 = vpack.c.bf16 %v2586, %v2585
        %v2621 = vpack.c.bf16 %v2588, %v2587
        %v2622 = vpack.c.bf16 %v2590, %v2589
        %v2623 = vpack.c.bf16 %v2592, %v2591
        %v2624 = vpack.c.bf16 %v2594, %v2593
        %v2625 = vpack.c.bf16 %v2596, %v2595
        %v2626 = vpack.c.bf16 %v2598, %v2597
        %v2627 = vpack.c.bf16 %v2600, %v2599
        %v2628 = vpack.c.bf16 %v2602, %v2601
        %v2629 = vpack.c.bf16 %v2604, %v2603
        %v2630 = vpack.c.bf16 %v2606, %v2605
        %v2631 = vpack.c.bf16 %v2608, %v2607
        %v2632 = vpack.c.bf16 %v2610, %v2609
        %v2633 = vpack.c.bf16 %v2612, %v2611
        %v2634 = vpack.c.bf16 %v2613, %v2613
        %s2635 = scalar_lea.vmem %s1, 10
        %v2636 = vld [vmem:[%s2635] sm:$0x3]
        %v2638 = vsel %vm757, %v2614, 0
        %v2641 = vsel %vm757, %v2615, 0
        %v2644 = vsel %vm757, %v2616, 0
        %v2647 = vsel %vm757, %v2617, 0
        %v2650 = vsel %vm757, %v2618, 0
        %v2653 = vsel %vm757, %v2619, 0
        %v2656 = vsel %vm757, %v2620, 0
        %v2659 = vsel %vm757, %v2621, 0
        %v2662 = vsel %vm757, %v2622, 0
        %v2665 = vsel %vm757, %v2623, 0
        %v2668 = vsel %vm757, %v2624, 0
        %v2671 = vsel %vm757, %v2625, 0
        %v2674 = vsel %vm757, %v2626, 0
        %v2677 = vsel %vm757, %v2627, 0
        %v2680 = vsel %vm757, %v2628, 0
        %v2683 = vsel %vm757, %v2629, 0
        %v2686 = vsel %vm757, %v2630, 0
        %v2689 = vsel %vm757, %v2631, 0
        %v2692 = vsel %vm757, %v2632, 0
        %v2695 = vsel %vm757, %v2633, 0
        %v2698 = vsel %vm757, %v2634, 0
        %v2701 = vsel %vm990, %v2636, 0
        %2703 = vmatprep.subr.bf16.mxu0 0
        %2704 = vmatpush1.bf16.msra.mxu0 %v2701
        %2705 = vmatprep.subr.bf16.mxu0 0
        %2706 = vmatpush1.bf16.msra.mxu0 0
        %2707 = vmatprep.subr.bf16.mxu0 0
        %2708 = vmatpush1.bf16.msra.mxu0 0
        %2709 = vmatprep.subr.bf16.mxu0 0
        %2710 = vmatpush1.bf16.msra.mxu0 0
        %2711 = vmatprep.subr.bf16.mxu0 0
        %2712 = vmatpush1.bf16.msra.mxu0 0
        %2713 = vmatprep.subr.bf16.mxu0 0
        %2714 = vmatpush1.bf16.msra.mxu0 0
        %2715 = vmatprep.subr.bf16.mxu0 0
        %2716 = vmatpush1.bf16.msra.mxu0 0
        %2717 = vmatprep.subr.bf16.mxu0 0
        %2718 = vmatpush1.bf16.msra.mxu0 0
        %2719 = vmatprep.subr.bf16.mxu0 0
        %2720 = vmatpush1.bf16.msra.mxu0 0
        %2721 = vmatprep.subr.bf16.mxu0 0
        %2722 = vmatpush1.bf16.msra.mxu0 0
        %2723 = vmatprep.subr.bf16.mxu0 0
        %2724 = vmatpush1.bf16.msra.mxu0 0
        %2725 = vmatprep.subr.bf16.mxu0 0
        %2726 = vmatpush1.bf16.msra.mxu0 0
        %2727 = vmatprep.subr.bf16.mxu0 0
        %2728 = vmatpush1.bf16.msra.mxu0 0
        %2729 = vmatprep.subr.bf16.mxu0 0
        %2730 = vmatpush1.bf16.msra.mxu0 0
        %2731 = vmatprep.subr.bf16.mxu0 0
        %2732 = vmatpush1.bf16.msra.mxu0 0
        %2733 = vmatprep.subr.bf16.mxu0 0
        %2734 = vmatpush1.bf16.msra.mxu0 0
        %2735 = vmatprep.mubr.bf16.mxu0 0
        %2736 = vmatmul.mubr.bf16.gmra.mrb[0].mxu0 %v2638
        %v2737 = vpop.f32.mrb[0].mxu0
        %v2738 = vadd.f32 0.0, %v2737
        %v2739 = vpop.f32.mrb[0].mxu0
        %v2740 = vpop.f32.mrb[0].mxu0
        %v2741 = vadd.f32 0.0, %v2740
        %v2742 = vpop.f32.mrb[0].mxu0
        %2743 = vmatprep.mubr.bf16.mxu0 0
        %2744 = vmatmul.mubr.bf16.gmra.mrb[0].mxu0 %v2641
        %v2745 = vpop.f32.mrb[0].mxu0
        %v2746 = vadd.f32 0.0, %v2745
        %v2747 = vpop.f32.mrb[0].mxu0
        %v2748 = vpop.f32.mrb[0].mxu0
        %v2749 = vadd.f32 0.0, %v2748
        %v2750 = vpop.f32.mrb[0].mxu0
        %2751 = vmatprep.mubr.bf16.mxu0 0
        %2752 = vmatmul.mubr.bf16.gmra.mrb[0].mxu0 %v2644
        %v2753 = vpop.f32.mrb[0].mxu0
        %v2754 = vadd.f32 0.0, %v2753
        %v2755 = vpop.f32.mrb[0].mxu0
        %v2756 = vpop.f32.mrb[0].mxu0
        %v2757 = vadd.f32 0.0, %v2756
        %v2758 = vpop.f32.mrb[0].mxu0
        %2759 = vmatprep.mubr.bf16.mxu0 0
        %2760 = vmatmul.mubr.bf16.gmra.mrb[0].mxu0 %v2647
        %v2761 = vpop.f32.mrb[0].mxu0
        %v2762 = vadd.f32 0.0, %v2761
        %v2763 = vpop.f32.mrb[0].mxu0
        %v2764 = vpop.f32.mrb[0].mxu0
        %v2765 = vadd.f32 0.0, %v2764
        %v2766 = vpop.f32.mrb[0].mxu0
        %2767 = vmatprep.mubr.bf16.mxu0 0
        %2768 = vmatmul.mubr.bf16.gmra.mrb[0].mxu0 %v2650
        %v2769 = vpop.f32.mrb[0].mxu0
        %v2770 = vadd.f32 0.0, %v2769
        %v2771 = vpop.f32.mrb[0].mxu0
        %v2772 = vpop.f32.mrb[0].mxu0
        %v2773 = vadd.f32 0.0, %v2772
        %v2774 = vpop.f32.mrb[0].mxu0
        %2775 = vmatprep.mubr.bf16.mxu0 0
        %2776 = vmatmul.mubr.bf16.gmra.mrb[0].mxu0 %v2653
        %v2777 = vpop.f32.mrb[0].mxu0
        %v2778 = vadd.f32 0.0, %v2777
        %v2779 = vpop.f32.mrb[0].mxu0
        %v2780 = vpop.f32.mrb[0].mxu0
        %v2781 = vadd.f32 0.0, %v2780
        %v2782 = vpop.f32.mrb[0].mxu0
        %2783 = vmatprep.mubr.bf16.mxu0 0
        %2784 = vmatmul.mubr.bf16.gmra.mrb[0].mxu0 %v2656
        %v2785 = vpop.f32.mrb[0].mxu0
        %v2786 = vadd.f32 0.0, %v2785
        %v2787 = vpop.f32.mrb[0].mxu0
        %v2788 = vpop.f32.mrb[0].mxu0
        %v2789 = vadd.f32 0.0, %v2788
        %v2790 = vpop.f32.mrb[0].mxu0
        %2791 = vmatprep.mubr.bf16.mxu0 0
        %2792 = vmatmul.mubr.bf16.gmra.mrb[0].mxu0 %v2659
        %v2793 = vpop.f32.mrb[0].mxu0
        %v2794 = vadd.f32 0.0, %v2793
        %v2795 = vpop.f32.mrb[0].mxu0
        %v2796 = vpop.f32.mrb[0].mxu0
        %v2797 = vadd.f32 0.0, %v2796
        %v2798 = vpop.f32.mrb[0].mxu0
        %2799 = vmatprep.mubr.bf16.mxu0 0
        %2800 = vmatmul.mubr.bf16.gmra.mrb[0].mxu0 %v2662
        %v2801 = vpop.f32.mrb[0].mxu0
        %v2802 = vadd.f32 0.0, %v2801
        %v2803 = vpop.f32.mrb[0].mxu0
        %v2804 = vpop.f32.mrb[0].mxu0
        %v2805 = vadd.f32 0.0, %v2804
        %v2806 = vpop.f32.mrb[0].mxu0
        %2807 = vmatprep.mubr.bf16.mxu0 0
        %2808 = vmatmul.mubr.bf16.gmra.mrb[0].mxu0 %v2665
        %v2809 = vpop.f32.mrb[0].mxu0
        %v2810 = vadd.f32 0.0, %v2809
        %v2811 = vpop.f32.mrb[0].mxu0
        %v2812 = vpop.f32.mrb[0].mxu0
        %v2813 = vadd.f32 0.0, %v2812
        %v2814 = vpop.f32.mrb[0].mxu0
        %2815 = vmatprep.mubr.bf16.mxu0 0
        %2816 = vmatmul.mubr.bf16.gmra.mrb[0].mxu0 %v2668
        %v2817 = vpop.f32.mrb[0].mxu0
        %v2818 = vadd.f32 0.0, %v2817
        %v2819 = vpop.f32.mrb[0].mxu0
        %v2820 = vpop.f32.mrb[0].mxu0
        %v2821 = vadd.f32 0.0, %v2820
        %v2822 = vpop.f32.mrb[0].mxu0
        %2823 = vmatprep.mubr.bf16.mxu0 0
        %2824 = vmatmul.mubr.bf16.gmra.mrb[0].mxu0 %v2671
        %v2825 = vpop.f32.mrb[0].mxu0
        %v2826 = vadd.f32 0.0, %v2825
        %v2827 = vpop.f32.mrb[0].mxu0
        %v2828 = vpop.f32.mrb[0].mxu0
        %v2829 = vadd.f32 0.0, %v2828
        %v2830 = vpop.f32.mrb[0].mxu0
        %2831 = vmatprep.mubr.bf16.mxu0 0
        %2832 = vmatmul.mubr.bf16.gmra.mrb[0].mxu0 %v2674
        %v2833 = vpop.f32.mrb[0].mxu0
        %v2834 = vadd.f32 0.0, %v2833
        %v2835 = vpop.f32.mrb[0].mxu0
        %v2836 = vpop.f32.mrb[0].mxu0
        %v2837 = vadd.f32 0.0, %v2836
        %v2838 = vpop.f32.mrb[0].mxu0
        %2839 = vmatprep.mubr.bf16.mxu0 0
        %2840 = vmatmul.mubr.bf16.gmra.mrb[0].mxu0 %v2677
        %v2841 = vpop.f32.mrb[0].mxu0
        %v2842 = vadd.f32 0.0, %v2841
        %v2843 = vpop.f32.mrb[0].mxu0
        %v2844 = vpop.f32.mrb[0].mxu0
        %v2845 = vadd.f32 0.0, %v2844
        %v2846 = vpop.f32.mrb[0].mxu0
        %2847 = vmatprep.mubr.bf16.mxu0 0
        %2848 = vmatmul.mubr.bf16.gmra.mrb[0].mxu0 %v2680
        %v2849 = vpop.f32.mrb[0].mxu0
        %v2850 = vadd.f32 0.0, %v2849
        %v2851 = vpop.f32.mrb[0].mxu0
        %v2852 = vpop.f32.mrb[0].mxu0
        %v2853 = vadd.f32 0.0, %v2852
        %v2854 = vpop.f32.mrb[0].mxu0
        %2855 = vmatprep.mubr.bf16.mxu0 0
        %2856 = vmatmul.mubr.bf16.gmra.mrb[0].mxu0 %v2683
        %v2857 = vpop.f32.mrb[0].mxu0
        %v2858 = vadd.f32 0.0, %v2857
        %v2859 = vpop.f32.mrb[0].mxu0
        %v2860 = vpop.f32.mrb[0].mxu0
        %v2861 = vadd.f32 0.0, %v2860
        %v2862 = vpop.f32.mrb[0].mxu0
        %2863 = vmatprep.mubr.bf16.mxu0 0
        %2864 = vmatmul.mubr.bf16.gmra.mrb[0].mxu0 %v2686
        %v2865 = vpop.f32.mrb[0].mxu0
        %v2866 = vadd.f32 0.0, %v2865
        %v2867 = vpop.f32.mrb[0].mxu0
        %v2868 = vpop.f32.mrb[0].mxu0
        %v2869 = vadd.f32 0.0, %v2868
        %v2870 = vpop.f32.mrb[0].mxu0
        %2871 = vmatprep.mubr.bf16.mxu0 0
        %2872 = vmatmul.mubr.bf16.gmra.mrb[0].mxu0 %v2689
        %v2873 = vpop.f32.mrb[0].mxu0
        %v2874 = vadd.f32 0.0, %v2873
        %v2875 = vpop.f32.mrb[0].mxu0
        %v2876 = vpop.f32.mrb[0].mxu0
        %v2877 = vadd.f32 0.0, %v2876
        %v2878 = vpop.f32.mrb[0].mxu0
        %2879 = vmatprep.mubr.bf16.mxu0 0
        %2880 = vmatmul.mubr.bf16.gmra.mrb[0].mxu0 %v2692
        %v2881 = vpop.f32.mrb[0].mxu0
        %v2882 = vadd.f32 0.0, %v2881
        %v2883 = vpop.f32.mrb[0].mxu0
        %v2884 = vpop.f32.mrb[0].mxu0
        %v2885 = vadd.f32 0.0, %v2884
        %v2886 = vpop.f32.mrb[0].mxu0
        %2887 = vmatprep.mubr.bf16.mxu0 0
        %2888 = vmatmul.mubr.bf16.gmra.mrb[0].mxu0 %v2695
        %v2889 = vpop.f32.mrb[0].mxu0
        %v2890 = vadd.f32 0.0, %v2889
        %v2891 = vpop.f32.mrb[0].mxu0
        %v2892 = vpop.f32.mrb[0].mxu0
        %v2893 = vadd.f32 0.0, %v2892
        %v2894 = vpop.f32.mrb[0].mxu0
        %2895 = vmatprep.mubr.bf16.mxu0 0
        %2896 = vmatmul.mubr.bf16.gmra.mrb[0].mxu0 %v2698
        %v2897 = vpop.f32.mrb[0].mxu0
        %v2898 = vadd.f32 0.0, %v2897
        %v2899 = vpop.f32.mrb[0].mxu0
        %v2900 = vpop.f32.mrb[0].mxu0
        %v2901 = vpop.f32.mrb[0].mxu0
        %2902 = vdwg.mxu0
        %v2903 = vadd.f32 %v2532, %v2738
        %v2904 = vadd.f32 %v2533, %v2741
        %v2905 = vadd.f32 %v2534, %v2746
        %v2906 = vadd.f32 %v2535, %v2749
        %v2907 = vadd.f32 %v2536, %v2754
        %v2908 = vadd.f32 %v2537, %v2757
        %v2909 = vadd.f32 %v2538, %v2762
        %v2910 = vadd.f32 %v2539, %v2765
        %v2911 = vadd.f32 %v2540, %v2770
        %v2912 = vadd.f32 %v2541, %v2773
        %v2913 = vadd.f32 %v2542, %v2778
        %v2914 = vadd.f32 %v2543, %v2781
        %v2915 = vadd.f32 %v2544, %v2786
        %v2916 = vadd.f32 %v2545, %v2789
        %v2917 = vadd.f32 %v2546, %v2794
        %v2918 = vadd.f32 %v2547, %v2797
        %v2919 = vadd.f32 %v2548, %v2802
        %v2920 = vadd.f32 %v2549, %v2805
        %v2921 = vadd.f32 %v2550, %v2810
        %v2922 = vadd.f32 %v2551, %v2813
        %v2923 = vadd.f32 %v2552, %v2818
        %v2924 = vadd.f32 %v2553, %v2821
        %v2925 = vadd.f32 %v2554, %v2826
        %v2926 = vadd.f32 %v2555, %v2829
        %v2927 = vadd.f32 %v2556, %v2834
        %v2928 = vadd.f32 %v2557, %v2837
        %v2929 = vadd.f32 %v2558, %v2842
        %v2930 = vadd.f32 %v2559, %v2845
        %v2931 = vadd.f32 %v2560, %v2850
        %v2932 = vadd.f32 %v2561, %v2853
        %v2933 = vadd.f32 %v2562, %v2858
        %v2934 = vadd.f32 %v2563, %v2861
        %v2935 = vadd.f32 %v2564, %v2866
        %v2936 = vadd.f32 %v2565, %v2869
        %v2937 = vadd.f32 %v2566, %v2874
        %v2938 = vadd.f32 %v2567, %v2877
        %v2939 = vadd.f32 %v2568, %v2882
        %v2940 = vadd.f32 %v2569, %v2885
        %v2941 = vadd.f32 %v2570, %v2890
        %v2942 = vadd.f32 %v2571, %v2893
        %v2943 = vadd.f32 %v2572, %v2898
        %v2944 = vld [vmem:[#allocation2 + $0x29] sm:$0xff]
        %v2945 = vld [vmem:[#allocation2 + $0x31] sm:$0xff]
        %v2946 = vld [vmem:[#allocation2 + $0x39] sm:$0xff]
        %v2947 = vld [vmem:[#allocation2 + $0x41] sm:$0xff]
        %v2948 = vld [vmem:[#allocation2 + $0x49] sm:$0xff]
        %v2949 = vld [vmem:[#allocation2 + $0x51] sm:$0xff]
        %v2950 = vld [vmem:[#allocation2 + $0x59] sm:$0xff]
        %v2951 = vld [vmem:[#allocation2 + $0x61] sm:$0xff]
        %v2952 = vld [vmem:[#allocation2 + $0x69] sm:$0xff]
        %v2953 = vld [vmem:[#allocation2 + $0x71] sm:$0xff]
        %v2954 = vld [vmem:[#allocation2 + $0x79] sm:$0xff]
        %v2955 = vld [vmem:[#allocation2 + $0x81] sm:$0xff]
        %v2956 = vld [vmem:[#allocation2 + $0x89] sm:$0xff]
        %v2957 = vld [vmem:[#allocation2 + $0x91] sm:$0xff]
        %v2958 = vld [vmem:[#allocation2 + $0x99] sm:$0xff]
        %v2959 = vld [vmem:[#allocation2 + $0xa1] sm:$0xff]
        %v2960 = vld [vmem:[#allocation2 + $0xa9] sm:$0xff]
        %v2961 = vld [vmem:[#allocation2 + $0xb1] sm:$0xff]
        %v2962 = vld [vmem:[#allocation2 + $0xb9] sm:$0xff]
        %v2963 = vld [vmem:[#allocation2 + $0xc1] sm:$0xff]
        %v2964 = vld [vmem:[#allocation2 + $0xc9] sm:$0xff]
        %v2965 = vld [vmem:[#allocation2 + $0xd1] sm:$0xff]
        %v2966 = vld [vmem:[#allocation2 + $0xd9] sm:$0xff]
        %v2967 = vld [vmem:[#allocation2 + $0xe1] sm:$0xff]
        %v2968 = vld [vmem:[#allocation2 + $0xe9] sm:$0xff]
        %v2969 = vld [vmem:[#allocation2 + $0xf1] sm:$0xff]
        %v2970 = vld [vmem:[#allocation2 + $0xf9] sm:$0xff]
        %v2971 = vld [vmem:[#allocation2 + $0x101] sm:$0xff]
        %v2972 = vld [vmem:[#allocation2 + $0x109] sm:$0xff]
        %v2973 = vld [vmem:[#allocation2 + $0x111] sm:$0xff]
        %v2974 = vld [vmem:[#allocation2 + $0x119] sm:$0xff]
        %v2975 = vld [vmem:[#allocation2 + $0x121] sm:$0xff]
        %v2976 = vld [vmem:[#allocation2 + $0x129] sm:$0xff]
        %v2977 = vld [vmem:[#allocation2 + $0x131] sm:$0xff]
        %v2978 = vld [vmem:[#allocation2 + $0x139] sm:$0xff]
        %v2979 = vld [vmem:[#allocation2 + $0x141] sm:$0xff]
        %v2980 = vld [vmem:[#allocation2 + $0x149] sm:$0xff]
        %v2981 = vld [vmem:[#allocation2 + $0x151] sm:$0xff]
        %v2982 = vld [vmem:[#allocation2 + $0x159] sm:$0xff]
        %v2983 = vld [vmem:[#allocation2 + $0x161] sm:$0xff]
        %v2984 = vld [vmem:[#allocation2 + $0x169] sm:$0xf]
        %v2985 = vpack.c.bf16 %v2945, %v2944
        %v2986 = vpack.c.bf16 %v2947, %v2946
        %v2987 = vpack.c.bf16 %v2949, %v2948
        %v2988 = vpack.c.bf16 %v2951, %v2950
        %v2989 = vpack.c.bf16 %v2953, %v2952
        %v2990 = vpack.c.bf16 %v2955, %v2954
        %v2991 = vpack.c.bf16 %v2957, %v2956
        %v2992 = vpack.c.bf16 %v2959, %v2958
        %v2993 = vpack.c.bf16 %v2961, %v2960
        %v2994 = vpack.c.bf16 %v2963, %v2962
        %v2995 = vpack.c.bf16 %v2965, %v2964
        %v2996 = vpack.c.bf16 %v2967, %v2966
        %v2997 = vpack.c.bf16 %v2969, %v2968
        %v2998 = vpack.c.bf16 %v2971, %v2970
        %v2999 = vpack.c.bf16 %v2973, %v2972
        %v3000 = vpack.c.bf16 %v2975, %v2974
        %v3001 = vpack.c.bf16 %v2977, %v2976
        %v3002 = vpack.c.bf16 %v2979, %v2978
        %v3003 = vpack.c.bf16 %v2981, %v2980
        %v3004 = vpack.c.bf16 %v2983, %v2982
        %v3005 = vpack.c.bf16 %v2984, %v2984
        %s3006 = scalar_lea.vmem %s1, 12
        %v3007 = vld [vmem:[%s3006] sm:$0x3]
        %v3009 = vsel %vm757, %v2985, 0
        %v3012 = vsel %vm757, %v2986, 0
        %v3015 = vsel %vm757, %v2987, 0
        %v3018 = vsel %vm757, %v2988, 0
        %v3021 = vsel %vm757, %v2989, 0
        %v3024 = vsel %vm757, %v2990, 0
        %v3027 = vsel %vm757, %v2991, 0
        %v3030 = vsel %vm757, %v2992, 0
        %v3033 = vsel %vm757, %v2993, 0
        %v3036 = vsel %vm757, %v2994, 0
        %v3039 = vsel %vm757, %v2995, 0
        %v3042 = vsel %vm757, %v2996, 0
        %v3045 = vsel %vm757, %v2997, 0
        %v3048 = vsel %vm757, %v2998, 0
        %v3051 = vsel %vm757, %v2999, 0
        %v3054 = vsel %vm757, %v3000, 0
        %v3057 = vsel %vm757, %v3001, 0
        %v3060 = vsel %vm757, %v3002, 0
        %v3063 = vsel %vm757, %v3003, 0
        %v3066 = vsel %vm757, %v3004, 0
        %v3069 = vsel %vm757, %v3005, 0
        %v3072 = vsel %vm990, %v3007, 0
        %3074 = vmatprep.subr.bf16.mxu0 0
        %3075 = vmatpush1.bf16.msra.mxu0 %v3072
        %3076 = vmatprep.subr.bf16.mxu0 0
        %3077 = vmatpush1.bf16.msra.mxu0 0
        %3078 = vmatprep.subr.bf16.mxu0 0
        %3079 = vmatpush1.bf16.msra.mxu0 0
        %3080 = vmatprep.subr.bf16.mxu0 0
        %3081 = vmatpush1.bf16.msra.mxu0 0
        %3082 = vmatprep.subr.bf16.mxu0 0
        %3083 = vmatpush1.bf16.msra.mxu0 0
        %3084 = vmatprep.subr.bf16.mxu0 0
        %3085 = vmatpush1.bf16.msra.mxu0 0
        %3086 = vmatprep.subr.bf16.mxu0 0
        %3087 = vmatpush1.bf16.msra.mxu0 0
        %3088 = vmatprep.subr.bf16.mxu0 0
        %3089 = vmatpush1.bf16.msra.mxu0 0
        %3090 = vmatprep.subr.bf16.mxu0 0
        %3091 = vmatpush1.bf16.msra.mxu0 0
        %3092 = vmatprep.subr.bf16.mxu0 0
        %3093 = vmatpush1.bf16.msra.mxu0 0
        %3094 = vmatprep.subr.bf16.mxu0 0
        %3095 = vmatpush1.bf16.msra.mxu0 0
        %3096 = vmatprep.subr.bf16.mxu0 0
        %3097 = vmatpush1.bf16.msra.mxu0 0
        %3098 = vmatprep.subr.bf16.mxu0 0
        %3099 = vmatpush1.bf16.msra.mxu0 0
        %3100 = vmatprep.subr.bf16.mxu0 0
        %3101 = vmatpush1.bf16.msra.mxu0 0
        %3102 = vmatprep.subr.bf16.mxu0 0
        %3103 = vmatpush1.bf16.msra.mxu0 0
        %3104 = vmatprep.subr.bf16.mxu0 0
        %3105 = vmatpush1.bf16.msra.mxu0 0
        %3106 = vmatprep.mubr.bf16.mxu0 0
        %3107 = vmatmul.mubr.bf16.gmra.mrb[0].mxu0 %v3009
        %v3108 = vpop.f32.mrb[0].mxu0
        %v3109 = vadd.f32 0.0, %v3108
        %v3110 = vpop.f32.mrb[0].mxu0
        %v3111 = vpop.f32.mrb[0].mxu0
        %v3112 = vadd.f32 0.0, %v3111
        %v3113 = vpop.f32.mrb[0].mxu0
        %3114 = vmatprep.mubr.bf16.mxu0 0
        %3115 = vmatmul.mubr.bf16.gmra.mrb[0].mxu0 %v3012
        %v3116 = vpop.f32.mrb[0].mxu0
        %v3117 = vadd.f32 0.0, %v3116
        %v3118 = vpop.f32.mrb[0].mxu0
        %v3119 = vpop.f32.mrb[0].mxu0
        %v3120 = vadd.f32 0.0, %v3119
        %v3121 = vpop.f32.mrb[0].mxu0
        %3122 = vmatprep.mubr.bf16.mxu0 0
        %3123 = vmatmul.mubr.bf16.gmra.mrb[0].mxu0 %v3015
        %v3124 = vpop.f32.mrb[0].mxu0
        %v3125 = vadd.f32 0.0, %v3124
        %v3126 = vpop.f32.mrb[0].mxu0
        %v3127 = vpop.f32.mrb[0].mxu0
        %v3128 = vadd.f32 0.0, %v3127
        %v3129 = vpop.f32.mrb[0].mxu0
        %3130 = vmatprep.mubr.bf16.mxu0 0
        %3131 = vmatmul.mubr.bf16.gmra.mrb[0].mxu0 %v3018
        %v3132 = vpop.f32.mrb[0].mxu0
        %v3133 = vadd.f32 0.0, %v3132
        %v3134 = vpop.f32.mrb[0].mxu0
        %v3135 = vpop.f32.mrb[0].mxu0
        %v3136 = vadd.f32 0.0, %v3135
        %v3137 = vpop.f32.mrb[0].mxu0
        %3138 = vmatprep.mubr.bf16.mxu0 0
        %3139 = vmatmul.mubr.bf16.gmra.mrb[0].mxu0 %v3021
        %v3140 = vpop.f32.mrb[0].mxu0
        %v3141 = vadd.f32 0.0, %v3140
        %v3142 = vpop.f32.mrb[0].mxu0
        %v3143 = vpop.f32.mrb[0].mxu0
        %v3144 = vadd.f32 0.0, %v3143
        %v3145 = vpop.f32.mrb[0].mxu0
        %3146 = vmatprep.mubr.bf16.mxu0 0
        %3147 = vmatmul.mubr.bf16.gmra.mrb[0].mxu0 %v3024
        %v3148 = vpop.f32.mrb[0].mxu0
        %v3149 = vadd.f32 0.0, %v3148
        %v3150 = vpop.f32.mrb[0].mxu0
        %v3151 = vpop.f32.mrb[0].mxu0
        %v3152 = vadd.f32 0.0, %v3151
        %v3153 = vpop.f32.mrb[0].mxu0
        %3154 = vmatprep.mubr.bf16.mxu0 0
        %3155 = vmatmul.mubr.bf16.gmra.mrb[0].mxu0 %v3027
        %v3156 = vpop.f32.mrb[0].mxu0
        %v3157 = vadd.f32 0.0, %v3156
        %v3158 = vpop.f32.mrb[0].mxu0
        %v3159 = vpop.f32.mrb[0].mxu0
        %v3160 = vadd.f32 0.0, %v3159
        %v3161 = vpop.f32.mrb[0].mxu0
        %3162 = vmatprep.mubr.bf16.mxu0 0
        %3163 = vmatmul.mubr.bf16.gmra.mrb[0].mxu0 %v3030
        %v3164 = vpop.f32.mrb[0].mxu0
        %v3165 = vadd.f32 0.0, %v3164
        %v3166 = vpop.f32.mrb[0].mxu0
        %v3167 = vpop.f32.mrb[0].mxu0
        %v3168 = vadd.f32 0.0, %v3167
        %v3169 = vpop.f32.mrb[0].mxu0
        %3170 = vmatprep.mubr.bf16.mxu0 0
        %3171 = vmatmul.mubr.bf16.gmra.mrb[0].mxu0 %v3033
        %v3172 = vpop.f32.mrb[0].mxu0
        %v3173 = vadd.f32 0.0, %v3172
        %v3174 = vpop.f32.mrb[0].mxu0
        %v3175 = vpop.f32.mrb[0].mxu0
        %v3176 = vadd.f32 0.0, %v3175
        %v3177 = vpop.f32.mrb[0].mxu0
        %3178 = vmatprep.mubr.bf16.mxu0 0
        %3179 = vmatmul.mubr.bf16.gmra.mrb[0].mxu0 %v3036
        %v3180 = vpop.f32.mrb[0].mxu0
        %v3181 = vadd.f32 0.0, %v3180
        %v3182 = vpop.f32.mrb[0].mxu0
        %v3183 = vpop.f32.mrb[0].mxu0
        %v3184 = vadd.f32 0.0, %v3183
        %v3185 = vpop.f32.mrb[0].mxu0
        %3186 = vmatprep.mubr.bf16.mxu0 0
        %3187 = vmatmul.mubr.bf16.gmra.mrb[0].mxu0 %v3039
        %v3188 = vpop.f32.mrb[0].mxu0
        %v3189 = vadd.f32 0.0, %v3188
        %v3190 = vpop.f32.mrb[0].mxu0
        %v3191 = vpop.f32.mrb[0].mxu0
        %v3192 = vadd.f32 0.0, %v3191
        %v3193 = vpop.f32.mrb[0].mxu0
        %3194 = vmatprep.mubr.bf16.mxu0 0
        %3195 = vmatmul.mubr.bf16.gmra.mrb[0].mxu0 %v3042
        %v3196 = vpop.f32.mrb[0].mxu0
        %v3197 = vadd.f32 0.0, %v3196
        %v3198 = vpop.f32.mrb[0].mxu0
        %v3199 = vpop.f32.mrb[0].mxu0
        %v3200 = vadd.f32 0.0, %v3199
        %v3201 = vpop.f32.mrb[0].mxu0
        %3202 = vmatprep.mubr.bf16.mxu0 0
        %3203 = vmatmul.mubr.bf16.gmra.mrb[0].mxu0 %v3045
        %v3204 = vpop.f32.mrb[0].mxu0
        %v3205 = vadd.f32 0.0, %v3204
        %v3206 = vpop.f32.mrb[0].mxu0
        %v3207 = vpop.f32.mrb[0].mxu0
        %v3208 = vadd.f32 0.0, %v3207
        %v3209 = vpop.f32.mrb[0].mxu0
        %3210 = vmatprep.mubr.bf16.mxu0 0
        %3211 = vmatmul.mubr.bf16.gmra.mrb[0].mxu0 %v3048
        %v3212 = vpop.f32.mrb[0].mxu0
        %v3213 = vadd.f32 0.0, %v3212
        %v3214 = vpop.f32.mrb[0].mxu0
        %v3215 = vpop.f32.mrb[0].mxu0
        %v3216 = vadd.f32 0.0, %v3215
        %v3217 = vpop.f32.mrb[0].mxu0
        %3218 = vmatprep.mubr.bf16.mxu0 0
        %3219 = vmatmul.mubr.bf16.gmra.mrb[0].mxu0 %v3051
        %v3220 = vpop.f32.mrb[0].mxu0
        %v3221 = vadd.f32 0.0, %v3220
        %v3222 = vpop.f32.mrb[0].mxu0
        %v3223 = vpop.f32.mrb[0].mxu0
        %v3224 = vadd.f32 0.0, %v3223
        %v3225 = vpop.f32.mrb[0].mxu0
        %3226 = vmatprep.mubr.bf16.mxu0 0
        %3227 = vmatmul.mubr.bf16.gmra.mrb[0].mxu0 %v3054
        %v3228 = vpop.f32.mrb[0].mxu0
        %v3229 = vadd.f32 0.0, %v3228
        %v3230 = vpop.f32.mrb[0].mxu0
        %v3231 = vpop.f32.mrb[0].mxu0
        %v3232 = vadd.f32 0.0, %v3231
        %v3233 = vpop.f32.mrb[0].mxu0
        %3234 = vmatprep.mubr.bf16.mxu0 0
        %3235 = vmatmul.mubr.bf16.gmra.mrb[0].mxu0 %v3057
        %v3236 = vpop.f32.mrb[0].mxu0
        %v3237 = vadd.f32 0.0, %v3236
        %v3238 = vpop.f32.mrb[0].mxu0
        %v3239 = vpop.f32.mrb[0].mxu0
        %v3240 = vadd.f32 0.0, %v3239
        %v3241 = vpop.f32.mrb[0].mxu0
        %3242 = vmatprep.mubr.bf16.mxu0 0
        %3243 = vmatmul.mubr.bf16.gmra.mrb[0].mxu0 %v3060
        %v3244 = vpop.f32.mrb[0].mxu0
        %v3245 = vadd.f32 0.0, %v3244
        %v3246 = vpop.f32.mrb[0].mxu0
        %v3247 = vpop.f32.mrb[0].mxu0
        %v3248 = vadd.f32 0.0, %v3247
        %v3249 = vpop.f32.mrb[0].mxu0
        %3250 = vmatprep.mubr.bf16.mxu0 0
        %3251 = vmatmul.mubr.bf16.gmra.mrb[0].mxu0 %v3063
        %v3252 = vpop.f32.mrb[0].mxu0
        %v3253 = vadd.f32 0.0, %v3252
        %v3254 = vpop.f32.mrb[0].mxu0
        %v3255 = vpop.f32.mrb[0].mxu0
        %v3256 = vadd.f32 0.0, %v3255
        %v3257 = vpop.f32.mrb[0].mxu0
        %3258 = vmatprep.mubr.bf16.mxu0 0
        %3259 = vmatmul.mubr.bf16.gmra.mrb[0].mxu0 %v3066
        %v3260 = vpop.f32.mrb[0].mxu0
        %v3261 = vadd.f32 0.0, %v3260
        %v3262 = vpop.f32.mrb[0].mxu0
        %v3263 = vpop.f32.mrb[0].mxu0
        %v3264 = vadd.f32 0.0, %v3263
        %v3265 = vpop.f32.mrb[0].mxu0
        %3266 = vmatprep.mubr.bf16.mxu0 0
        %3267 = vmatmul.mubr.bf16.gmra.mrb[0].mxu0 %v3069
        %v3268 = vpop.f32.mrb[0].mxu0
        %v3269 = vadd.f32 0.0, %v3268
        %v3270 = vpop.f32.mrb[0].mxu0
        %v3271 = vpop.f32.mrb[0].mxu0
        %v3272 = vpop.f32.mrb[0].mxu0
        %3273 = vdwg.mxu0
        %v3274 = vadd.f32 %v2903, %v3109
        %v3275 = vadd.f32 %v2904, %v3112
        %v3276 = vadd.f32 %v2905, %v3117
        %v3277 = vadd.f32 %v2906, %v3120
        %v3278 = vadd.f32 %v2907, %v3125
        %v3279 = vadd.f32 %v2908, %v3128
        %v3280 = vadd.f32 %v2909, %v3133
        %v3281 = vadd.f32 %v2910, %v3136
        %v3282 = vadd.f32 %v2911, %v3141
        %v3283 = vadd.f32 %v2912, %v3144
        %v3284 = vadd.f32 %v2913, %v3149
        %v3285 = vadd.f32 %v2914, %v3152
        %v3286 = vadd.f32 %v2915, %v3157
        %v3287 = vadd.f32 %v2916, %v3160
        %v3288 = vadd.f32 %v2917, %v3165
        %v3289 = vadd.f32 %v2918, %v3168
        %v3290 = vadd.f32 %v2919, %v3173
        %v3291 = vadd.f32 %v2920, %v3176
        %v3292 = vadd.f32 %v2921, %v3181
        %v3293 = vadd.f32 %v2922, %v3184
        %v3294 = vadd.f32 %v2923, %v3189
        %v3295 = vadd.f32 %v2924, %v3192
        %v3296 = vadd.f32 %v2925, %v3197
        %v3297 = vadd.f32 %v2926, %v3200
        %v3298 = vadd.f32 %v2927, %v3205
        %v3299 = vadd.f32 %v2928, %v3208
        %v3300 = vadd.f32 %v2929, %v3213
        %v3301 = vadd.f32 %v2930, %v3216
        %v3302 = vadd.f32 %v2931, %v3221
        %v3303 = vadd.f32 %v2932, %v3224
        %v3304 = vadd.f32 %v2933, %v3229
        %v3305 = vadd.f32 %v2934, %v3232
        %v3306 = vadd.f32 %v2935, %v3237
        %v3307 = vadd.f32 %v2936, %v3240
        %v3308 = vadd.f32 %v2937, %v3245
        %v3309 = vadd.f32 %v2938, %v3248
        %v3310 = vadd.f32 %v2939, %v3253
        %v3311 = vadd.f32 %v2940, %v3256
        %v3312 = vadd.f32 %v2941, %v3261
        %v3313 = vadd.f32 %v2942, %v3264
        %v3314 = vadd.f32 %v2943, %v3269
        %v3315 = vld [vmem:[#allocation2 + $0x2a] sm:$0xff]
        %v3316 = vld [vmem:[#allocation2 + $0x32] sm:$0xff]
        %v3317 = vld [vmem:[#allocation2 + $0x3a] sm:$0xff]
        %v3318 = vld [vmem:[#allocation2 + $0x42] sm:$0xff]
        %v3319 = vld [vmem:[#allocation2 + $0x4a] sm:$0xff]
        %v3320 = vld [vmem:[#allocation2 + $0x52] sm:$0xff]
        %v3321 = vld [vmem:[#allocation2 + $0x5a] sm:$0xff]
        %v3322 = vld [vmem:[#allocation2 + $0x62] sm:$0xff]
        %v3323 = vld [vmem:[#allocation2 + $0x6a] sm:$0xff]
        %v3324 = vld [vmem:[#allocation2 + $0x72] sm:$0xff]
        %v3325 = vld [vmem:[#allocation2 + $0x7a] sm:$0xff]
        %v3326 = vld [vmem:[#allocation2 + $0x82] sm:$0xff]
        %v3327 = vld [vmem:[#allocation2 + $0x8a] sm:$0xff]
        %v3328 = vld [vmem:[#allocation2 + $0x92] sm:$0xff]
        %v3329 = vld [vmem:[#allocation2 + $0x9a] sm:$0xff]
        %v3330 = vld [vmem:[#allocation2 + $0xa2] sm:$0xff]
        %v3331 = vld [vmem:[#allocation2 + $0xaa] sm:$0xff]
        %v3332 = vld [vmem:[#allocation2 + $0xb2] sm:$0xff]
        %v3333 = vld [vmem:[#allocation2 + $0xba] sm:$0xff]
        %v3334 = vld [vmem:[#allocation2 + $0xc2] sm:$0xff]
        %v3335 = vld [vmem:[#allocation2 + $0xca] sm:$0xff]
        %v3336 = vld [vmem:[#allocation2 + $0xd2] sm:$0xff]
        %v3337 = vld [vmem:[#allocation2 + $0xda] sm:$0xff]
        %v3338 = vld [vmem:[#allocation2 + $0xe2] sm:$0xff]
        %v3339 = vld [vmem:[#allocation2 + $0xea] sm:$0xff]
        %v3340 = vld [vmem:[#allocation2 + $0xf2] sm:$0xff]
        %v3341 = vld [vmem:[#allocation2 + $0xfa] sm:$0xff]
        %v3342 = vld [vmem:[#allocation2 + $0x102] sm:$0xff]
        %v3343 = vld [vmem:[#allocation2 + $0x10a] sm:$0xff]
        %v3344 = vld [vmem:[#allocation2 + $0x112] sm:$0xff]
        %v3345 = vld [vmem:[#allocation2 + $0x11a] sm:$0xff]
        %v3346 = vld [vmem:[#allocation2 + $0x122] sm:$0xff]
        %v3347 = vld [vmem:[#allocation2 + $0x12a] sm:$0xff]
        %v3348 = vld [vmem:[#allocation2 + $0x132] sm:$0xff]
        %v3349 = vld [vmem:[#allocation2 + $0x13a] sm:$0xff]
        %v3350 = vld [vmem:[#allocation2 + $0x142] sm:$0xff]
        %v3351 = vld [vmem:[#allocation2 + $0x14a] sm:$0xff]
        %v3352 = vld [vmem:[#allocation2 + $0x152] sm:$0xff]
        %v3353 = vld [vmem:[#allocation2 + $0x15a] sm:$0xff]
        %v3354 = vld [vmem:[#allocation2 + $0x162] sm:$0xff]
        %v3355 = vld [vmem:[#allocation2 + $0x16a] sm:$0xf]
        %v3356 = vpack.c.bf16 %v3316, %v3315
        %v3357 = vpack.c.bf16 %v3318, %v3317
        %v3358 = vpack.c.bf16 %v3320, %v3319
        %v3359 = vpack.c.bf16 %v3322, %v3321
        %v3360 = vpack.c.bf16 %v3324, %v3323
        %v3361 = vpack.c.bf16 %v3326, %v3325
        %v3362 = vpack.c.bf16 %v3328, %v3327
        %v3363 = vpack.c.bf16 %v3330, %v3329
        %v3364 = vpack.c.bf16 %v3332, %v3331
        %v3365 = vpack.c.bf16 %v3334, %v3333
        %v3366 = vpack.c.bf16 %v3336, %v3335
        %v3367 = vpack.c.bf16 %v3338, %v3337
        %v3368 = vpack.c.bf16 %v3340, %v3339
        %v3369 = vpack.c.bf16 %v3342, %v3341
        %v3370 = vpack.c.bf16 %v3344, %v3343
        %v3371 = vpack.c.bf16 %v3346, %v3345
        %v3372 = vpack.c.bf16 %v3348, %v3347
        %v3373 = vpack.c.bf16 %v3350, %v3349
        %v3374 = vpack.c.bf16 %v3352, %v3351
        %v3375 = vpack.c.bf16 %v3354, %v3353
        %v3376 = vpack.c.bf16 %v3355, %v3355
        %s3377 = scalar_lea.vmem %s1, 14
        %v3378 = vld [vmem:[%s3377] sm:$0x3]
        %v3380 = vsel %vm757, %v3356, 0
        %v3383 = vsel %vm757, %v3357, 0
        %v3386 = vsel %vm757, %v3358, 0
        %v3389 = vsel %vm757, %v3359, 0
        %v3392 = vsel %vm757, %v3360, 0
        %v3395 = vsel %vm757, %v3361, 0
        %v3398 = vsel %vm757, %v3362, 0
        %v3401 = vsel %vm757, %v3363, 0
        %v3404 = vsel %vm757, %v3364, 0
        %v3407 = vsel %vm757, %v3365, 0
        %v3410 = vsel %vm757, %v3366, 0
        %v3413 = vsel %vm757, %v3367, 0
        %v3416 = vsel %vm757, %v3368, 0
        %v3419 = vsel %vm757, %v3369, 0
        %v3422 = vsel %vm757, %v3370, 0
        %v3425 = vsel %vm757, %v3371, 0
        %v3428 = vsel %vm757, %v3372, 0
        %v3431 = vsel %vm757, %v3373, 0
        %v3434 = vsel %vm757, %v3374, 0
        %v3437 = vsel %vm757, %v3375, 0
        %v3440 = vsel %vm757, %v3376, 0
        %v3443 = vsel %vm990, %v3378, 0
        %3445 = vmatprep.subr.bf16.mxu0 0
        %3446 = vmatpush1.bf16.msra.mxu0 %v3443
        %3447 = vmatprep.subr.bf16.mxu0 0
        %3448 = vmatpush1.bf16.msra.mxu0 0
        %3449 = vmatprep.subr.bf16.mxu0 0
        %3450 = vmatpush1.bf16.msra.mxu0 0
        %3451 = vmatprep.subr.bf16.mxu0 0
        %3452 = vmatpush1.bf16.msra.mxu0 0
        %3453 = vmatprep.subr.bf16.mxu0 0
        %3454 = vmatpush1.bf16.msra.mxu0 0
        %3455 = vmatprep.subr.bf16.mxu0 0
        %3456 = vmatpush1.bf16.msra.mxu0 0
        %3457 = vmatprep.subr.bf16.mxu0 0
        %3458 = vmatpush1.bf16.msra.mxu0 0
        %3459 = vmatprep.subr.bf16.mxu0 0
        %3460 = vmatpush1.bf16.msra.mxu0 0
        %3461 = vmatprep.subr.bf16.mxu0 0
        %3462 = vmatpush1.bf16.msra.mxu0 0
        %3463 = vmatprep.subr.bf16.mxu0 0
        %3464 = vmatpush1.bf16.msra.mxu0 0
        %3465 = vmatprep.subr.bf16.mxu0 0
        %3466 = vmatpush1.bf16.msra.mxu0 0
        %3467 = vmatprep.subr.bf16.mxu0 0
        %3468 = vmatpush1.bf16.msra.mxu0 0
        %3469 = vmatprep.subr.bf16.mxu0 0
        %3470 = vmatpush1.bf16.msra.mxu0 0
        %3471 = vmatprep.subr.bf16.mxu0 0
        %3472 = vmatpush1.bf16.msra.mxu0 0
        %3473 = vmatprep.subr.bf16.mxu0 0
        %3474 = vmatpush1.bf16.msra.mxu0 0
        %3475 = vmatprep.subr.bf16.mxu0 0
        %3476 = vmatpush1.bf16.msra.mxu0 0
        %3477 = vmatprep.mubr.bf16.mxu0 0
        %3478 = vmatmul.mubr.bf16.gmra.mrb[0].mxu0 %v3380
        %v3479 = vpop.f32.mrb[0].mxu0
        %v3480 = vadd.f32 0.0, %v3479
        %v3481 = vpop.f32.mrb[0].mxu0
        %v3482 = vpop.f32.mrb[0].mxu0
        %v3483 = vadd.f32 0.0, %v3482
        %v3484 = vpop.f32.mrb[0].mxu0
        %3485 = vmatprep.mubr.bf16.mxu0 0
        %3486 = vmatmul.mubr.bf16.gmra.mrb[0].mxu0 %v3383
        %v3487 = vpop.f32.mrb[0].mxu0
        %v3488 = vadd.f32 0.0, %v3487
        %v3489 = vpop.f32.mrb[0].mxu0
        %v3490 = vpop.f32.mrb[0].mxu0
        %v3491 = vadd.f32 0.0, %v3490
        %v3492 = vpop.f32.mrb[0].mxu0
        %3493 = vmatprep.mubr.bf16.mxu0 0
        %3494 = vmatmul.mubr.bf16.gmra.mrb[0].mxu0 %v3386
        %v3495 = vpop.f32.mrb[0].mxu0
        %v3496 = vadd.f32 0.0, %v3495
        %v3497 = vpop.f32.mrb[0].mxu0
        %v3498 = vpop.f32.mrb[0].mxu0
        %v3499 = vadd.f32 0.0, %v3498
        %v3500 = vpop.f32.mrb[0].mxu0
        %3501 = vmatprep.mubr.bf16.mxu0 0
        %3502 = vmatmul.mubr.bf16.gmra.mrb[0].mxu0 %v3389
        %v3503 = vpop.f32.mrb[0].mxu0
        %v3504 = vadd.f32 0.0, %v3503
        %v3505 = vpop.f32.mrb[0].mxu0
        %v3506 = vpop.f32.mrb[0].mxu0
        %v3507 = vadd.f32 0.0, %v3506
        %v3508 = vpop.f32.mrb[0].mxu0
        %3509 = vmatprep.mubr.bf16.mxu0 0
        %3510 = vmatmul.mubr.bf16.gmra.mrb[0].mxu0 %v3392
        %v3511 = vpop.f32.mrb[0].mxu0
        %v3512 = vadd.f32 0.0, %v3511
        %v3513 = vpop.f32.mrb[0].mxu0
        %v3514 = vpop.f32.mrb[0].mxu0
        %v3515 = vadd.f32 0.0, %v3514
        %v3516 = vpop.f32.mrb[0].mxu0
        %3517 = vmatprep.mubr.bf16.mxu0 0
        %3518 = vmatmul.mubr.bf16.gmra.mrb[0].mxu0 %v3395
        %v3519 = vpop.f32.mrb[0].mxu0
        %v3520 = vadd.f32 0.0, %v3519
        %v3521 = vpop.f32.mrb[0].mxu0
        %v3522 = vpop.f32.mrb[0].mxu0
        %v3523 = vadd.f32 0.0, %v3522
        %v3524 = vpop.f32.mrb[0].mxu0
        %3525 = vmatprep.mubr.bf16.mxu0 0
        %3526 = vmatmul.mubr.bf16.gmra.mrb[0].mxu0 %v3398
        %v3527 = vpop.f32.mrb[0].mxu0
        %v3528 = vadd.f32 0.0, %v3527
        %v3529 = vpop.f32.mrb[0].mxu0
        %v3530 = vpop.f32.mrb[0].mxu0
        %v3531 = vadd.f32 0.0, %v3530
        %v3532 = vpop.f32.mrb[0].mxu0
        %3533 = vmatprep.mubr.bf16.mxu0 0
        %3534 = vmatmul.mubr.bf16.gmra.mrb[0].mxu0 %v3401
        %v3535 = vpop.f32.mrb[0].mxu0
        %v3536 = vadd.f32 0.0, %v3535
        %v3537 = vpop.f32.mrb[0].mxu0
        %v3538 = vpop.f32.mrb[0].mxu0
        %v3539 = vadd.f32 0.0, %v3538
        %v3540 = vpop.f32.mrb[0].mxu0
        %3541 = vmatprep.mubr.bf16.mxu0 0
        %3542 = vmatmul.mubr.bf16.gmra.mrb[0].mxu0 %v3404
        %v3543 = vpop.f32.mrb[0].mxu0
        %v3544 = vadd.f32 0.0, %v3543
        %v3545 = vpop.f32.mrb[0].mxu0
        %v3546 = vpop.f32.mrb[0].mxu0
        %v3547 = vadd.f32 0.0, %v3546
        %v3548 = vpop.f32.mrb[0].mxu0
        %3549 = vmatprep.mubr.bf16.mxu0 0
        %3550 = vmatmul.mubr.bf16.gmra.mrb[0].mxu0 %v3407
        %v3551 = vpop.f32.mrb[0].mxu0
        %v3552 = vadd.f32 0.0, %v3551
        %v3553 = vpop.f32.mrb[0].mxu0
        %v3554 = vpop.f32.mrb[0].mxu0
        %v3555 = vadd.f32 0.0, %v3554
        %v3556 = vpop.f32.mrb[0].mxu0
        %3557 = vmatprep.mubr.bf16.mxu0 0
        %3558 = vmatmul.mubr.bf16.gmra.mrb[0].mxu0 %v3410
        %v3559 = vpop.f32.mrb[0].mxu0
        %v3560 = vadd.f32 0.0, %v3559
        %v3561 = vpop.f32.mrb[0].mxu0
        %v3562 = vpop.f32.mrb[0].mxu0
        %v3563 = vadd.f32 0.0, %v3562
        %v3564 = vpop.f32.mrb[0].mxu0
        %3565 = vmatprep.mubr.bf16.mxu0 0
        %3566 = vmatmul.mubr.bf16.gmra.mrb[0].mxu0 %v3413
        %v3567 = vpop.f32.mrb[0].mxu0
        %v3568 = vadd.f32 0.0, %v3567
        %v3569 = vpop.f32.mrb[0].mxu0
        %v3570 = vpop.f32.mrb[0].mxu0
        %v3571 = vadd.f32 0.0, %v3570
        %v3572 = vpop.f32.mrb[0].mxu0
        %3573 = vmatprep.mubr.bf16.mxu0 0
        %3574 = vmatmul.mubr.bf16.gmra.mrb[0].mxu0 %v3416
        %v3575 = vpop.f32.mrb[0].mxu0
        %v3576 = vadd.f32 0.0, %v3575
        %v3577 = vpop.f32.mrb[0].mxu0
        %v3578 = vpop.f32.mrb[0].mxu0
        %v3579 = vadd.f32 0.0, %v3578
        %v3580 = vpop.f32.mrb[0].mxu0
        %3581 = vmatprep.mubr.bf16.mxu0 0
        %3582 = vmatmul.mubr.bf16.gmra.mrb[0].mxu0 %v3419
        %v3583 = vpop.f32.mrb[0].mxu0
        %v3584 = vadd.f32 0.0, %v3583
        %v3585 = vpop.f32.mrb[0].mxu0
        %v3586 = vpop.f32.mrb[0].mxu0
        %v3587 = vadd.f32 0.0, %v3586
        %v3588 = vpop.f32.mrb[0].mxu0
        %3589 = vmatprep.mubr.bf16.mxu0 0
        %3590 = vmatmul.mubr.bf16.gmra.mrb[0].mxu0 %v3422
        %v3591 = vpop.f32.mrb[0].mxu0
        %v3592 = vadd.f32 0.0, %v3591
        %v3593 = vpop.f32.mrb[0].mxu0
        %v3594 = vpop.f32.mrb[0].mxu0
        %v3595 = vadd.f32 0.0, %v3594
        %v3596 = vpop.f32.mrb[0].mxu0
        %3597 = vmatprep.mubr.bf16.mxu0 0
        %3598 = vmatmul.mubr.bf16.gmra.mrb[0].mxu0 %v3425
        %v3599 = vpop.f32.mrb[0].mxu0
        %v3600 = vadd.f32 0.0, %v3599
        %v3601 = vpop.f32.mrb[0].mxu0
        %v3602 = vpop.f32.mrb[0].mxu0
        %v3603 = vadd.f32 0.0, %v3602
        %v3604 = vpop.f32.mrb[0].mxu0
        %3605 = vmatprep.mubr.bf16.mxu0 0
        %3606 = vmatmul.mubr.bf16.gmra.mrb[0].mxu0 %v3428
        %v3607 = vpop.f32.mrb[0].mxu0
        %v3608 = vadd.f32 0.0, %v3607
        %v3609 = vpop.f32.mrb[0].mxu0
        %v3610 = vpop.f32.mrb[0].mxu0
        %v3611 = vadd.f32 0.0, %v3610
        %v3612 = vpop.f32.mrb[0].mxu0
        %3613 = vmatprep.mubr.bf16.mxu0 0
        %3614 = vmatmul.mubr.bf16.gmra.mrb[0].mxu0 %v3431
        %v3615 = vpop.f32.mrb[0].mxu0
        %v3616 = vadd.f32 0.0, %v3615
        %v3617 = vpop.f32.mrb[0].mxu0
        %v3618 = vpop.f32.mrb[0].mxu0
        %v3619 = vadd.f32 0.0, %v3618
        %v3620 = vpop.f32.mrb[0].mxu0
        %3621 = vmatprep.mubr.bf16.mxu0 0
        %3622 = vmatmul.mubr.bf16.gmra.mrb[0].mxu0 %v3434
        %v3623 = vpop.f32.mrb[0].mxu0
        %v3624 = vadd.f32 0.0, %v3623
        %v3625 = vpop.f32.mrb[0].mxu0
        %v3626 = vpop.f32.mrb[0].mxu0
        %v3627 = vadd.f32 0.0, %v3626
        %v3628 = vpop.f32.mrb[0].mxu0
        %3629 = vmatprep.mubr.bf16.mxu0 0
        %3630 = vmatmul.mubr.bf16.gmra.mrb[0].mxu0 %v3437
        %v3631 = vpop.f32.mrb[0].mxu0
        %v3632 = vadd.f32 0.0, %v3631
        %v3633 = vpop.f32.mrb[0].mxu0
        %v3634 = vpop.f32.mrb[0].mxu0
        %v3635 = vadd.f32 0.0, %v3634
        %v3636 = vpop.f32.mrb[0].mxu0
        %3637 = vmatprep.mubr.bf16.mxu0 0
        %3638 = vmatmul.mubr.bf16.gmra.mrb[0].mxu0 %v3440
        %v3639 = vpop.f32.mrb[0].mxu0
        %v3640 = vadd.f32 0.0, %v3639
        %v3641 = vpop.f32.mrb[0].mxu0
        %v3642 = vpop.f32.mrb[0].mxu0
        %v3643 = vpop.f32.mrb[0].mxu0
        %3644 = vdwg.mxu0
        %v3645 = vadd.f32 %v3274, %v3480
        %v3646 = vadd.f32 %v3275, %v3483
        %v3647 = vadd.f32 %v3276, %v3488
        %v3648 = vadd.f32 %v3277, %v3491
        %v3649 = vadd.f32 %v3278, %v3496
        %v3650 = vadd.f32 %v3279, %v3499
        %v3651 = vadd.f32 %v3280, %v3504
        %v3652 = vadd.f32 %v3281, %v3507
        %v3653 = vadd.f32 %v3282, %v3512
        %v3654 = vadd.f32 %v3283, %v3515
        %v3655 = vadd.f32 %v3284, %v3520
        %v3656 = vadd.f32 %v3285, %v3523
        %v3657 = vadd.f32 %v3286, %v3528
        %v3658 = vadd.f32 %v3287, %v3531
        %v3659 = vadd.f32 %v3288, %v3536
        %v3660 = vadd.f32 %v3289, %v3539
        %v3661 = vadd.f32 %v3290, %v3544
        %v3662 = vadd.f32 %v3291, %v3547
        %v3663 = vadd.f32 %v3292, %v3552
        %v3664 = vadd.f32 %v3293, %v3555
        %v3665 = vadd.f32 %v3294, %v3560
        %v3666 = vadd.f32 %v3295, %v3563
        %v3667 = vadd.f32 %v3296, %v3568
        %v3668 = vadd.f32 %v3297, %v3571
        %v3669 = vadd.f32 %v3298, %v3576
        %v3670 = vadd.f32 %v3299, %v3579
        %v3671 = vadd.f32 %v3300, %v3584
        %v3672 = vadd.f32 %v3301, %v3587
        %v3673 = vadd.f32 %v3302, %v3592
        %v3674 = vadd.f32 %v3303, %v3595
        %v3675 = vadd.f32 %v3304, %v3600
        %v3676 = vadd.f32 %v3305, %v3603
        %v3677 = vadd.f32 %v3306, %v3608
        %v3678 = vadd.f32 %v3307, %v3611
        %v3679 = vadd.f32 %v3308, %v3616
        %v3680 = vadd.f32 %v3309, %v3619
        %v3681 = vadd.f32 %v3310, %v3624
        %v3682 = vadd.f32 %v3311, %v3627
        %v3683 = vadd.f32 %v3312, %v3632
        %v3684 = vadd.f32 %v3313, %v3635
        %v3685 = vadd.f32 %v3314, %v3640
        %v3686 = vld [vmem:[#allocation2 + $0x2b] sm:$0xff]
        %v3687 = vld [vmem:[#allocation2 + $0x33] sm:$0xff]
        %v3688 = vld [vmem:[#allocation2 + $0x3b] sm:$0xff]
        %v3689 = vld [vmem:[#allocation2 + $0x43] sm:$0xff]
        %v3690 = vld [vmem:[#allocation2 + $0x4b] sm:$0xff]
        %v3691 = vld [vmem:[#allocation2 + $0x53] sm:$0xff]
        %v3692 = vld [vmem:[#allocation2 + $0x5b] sm:$0xff]
        %v3693 = vld [vmem:[#allocation2 + $0x63] sm:$0xff]
        %v3694 = vld [vmem:[#allocation2 + $0x6b] sm:$0xff]
        %v3695 = vld [vmem:[#allocation2 + $0x73] sm:$0xff]
        %v3696 = vld [vmem:[#allocation2 + $0x7b] sm:$0xff]
        %v3697 = vld [vmem:[#allocation2 + $0x83] sm:$0xff]
        %v3698 = vld [vmem:[#allocation2 + $0x8b] sm:$0xff]
        %v3699 = vld [vmem:[#allocation2 + $0x93] sm:$0xff]
        %v3700 = vld [vmem:[#allocation2 + $0x9b] sm:$0xff]
        %v3701 = vld [vmem:[#allocation2 + $0xa3] sm:$0xff]
        %v3702 = vld [vmem:[#allocation2 + $0xab] sm:$0xff]
        %v3703 = vld [vmem:[#allocation2 + $0xb3] sm:$0xff]
        %v3704 = vld [vmem:[#allocation2 + $0xbb] sm:$0xff]
        %v3705 = vld [vmem:[#allocation2 + $0xc3] sm:$0xff]
        %v3706 = vld [vmem:[#allocation2 + $0xcb] sm:$0xff]
        %v3707 = vld [vmem:[#allocation2 + $0xd3] sm:$0xff]
        %v3708 = vld [vmem:[#allocation2 + $0xdb] sm:$0xff]
        %v3709 = vld [vmem:[#allocation2 + $0xe3] sm:$0xff]
        %v3710 = vld [vmem:[#allocation2 + $0xeb] sm:$0xff]
        %v3711 = vld [vmem:[#allocation2 + $0xf3] sm:$0xff]
        %v3712 = vld [vmem:[#allocation2 + $0xfb] sm:$0xff]
        %v3713 = vld [vmem:[#allocation2 + $0x103] sm:$0xff]
        %v3714 = vld [vmem:[#allocation2 + $0x10b] sm:$0xff]
        %v3715 = vld [vmem:[#allocation2 + $0x113] sm:$0xff]
        %v3716 = vld [vmem:[#allocation2 + $0x11b] sm:$0xff]
        %v3717 = vld [vmem:[#allocation2 + $0x123] sm:$0xff]
        %v3718 = vld [vmem:[#allocation2 + $0x12b] sm:$0xff]
        %v3719 = vld [vmem:[#allocation2 + $0x133] sm:$0xff]
        %v3720 = vld [vmem:[#allocation2 + $0x13b] sm:$0xff]
        %v3721 = vld [vmem:[#allocation2 + $0x143] sm:$0xff]
        %v3722 = vld [vmem:[#allocation2 + $0x14b] sm:$0xff]
        %v3723 = vld [vmem:[#allocation2 + $0x153] sm:$0xff]
        %v3724 = vld [vmem:[#allocation2 + $0x15b] sm:$0xff]
        %v3725 = vld [vmem:[#allocation2 + $0x163] sm:$0xff]
        %v3726 = vld [vmem:[#allocation2 + $0x16b] sm:$0xf]
        %v3727 = vpack.c.bf16 %v3687, %v3686
        %v3728 = vpack.c.bf16 %v3689, %v3688
        %v3729 = vpack.c.bf16 %v3691, %v3690
        %v3730 = vpack.c.bf16 %v3693, %v3692
        %v3731 = vpack.c.bf16 %v3695, %v3694
        %v3732 = vpack.c.bf16 %v3697, %v3696
        %v3733 = vpack.c.bf16 %v3699, %v3698
        %v3734 = vpack.c.bf16 %v3701, %v3700
        %v3735 = vpack.c.bf16 %v3703, %v3702
        %v3736 = vpack.c.bf16 %v3705, %v3704
        %v3737 = vpack.c.bf16 %v3707, %v3706
        %v3738 = vpack.c.bf16 %v3709, %v3708
        %v3739 = vpack.c.bf16 %v3711, %v3710
        %v3740 = vpack.c.bf16 %v3713, %v3712
        %v3741 = vpack.c.bf16 %v3715, %v3714
        %v3742 = vpack.c.bf16 %v3717, %v3716
        %v3743 = vpack.c.bf16 %v3719, %v3718
        %v3744 = vpack.c.bf16 %v3721, %v3720
        %v3745 = vpack.c.bf16 %v3723, %v3722
        %v3746 = vpack.c.bf16 %v3725, %v3724
        %v3747 = vpack.c.bf16 %v3726, %v3726
        %s3748 = scalar_lea.vmem %s1, 16
        %v3749 = vld [vmem:[%s3748] sm:$0x3]
        %v3751 = vsel %vm757, %v3727, 0
        %v3754 = vsel %vm757, %v3728, 0
        %v3757 = vsel %vm757, %v3729, 0
        %v3760 = vsel %vm757, %v3730, 0
        %v3763 = vsel %vm757, %v3731, 0
        %v3766 = vsel %vm757, %v3732, 0
        %v3769 = vsel %vm757, %v3733, 0
        %v3772 = vsel %vm757, %v3734, 0
        %v3775 = vsel %vm757, %v3735, 0
        %v3778 = vsel %vm757, %v3736, 0
        %v3781 = vsel %vm757, %v3737, 0
        %v3784 = vsel %vm757, %v3738, 0
        %v3787 = vsel %vm757, %v3739, 0
        %v3790 = vsel %vm757, %v3740, 0
        %v3793 = vsel %vm757, %v3741, 0
        %v3796 = vsel %vm757, %v3742, 0
        %v3799 = vsel %vm757, %v3743, 0
        %v3802 = vsel %vm757, %v3744, 0
        %v3805 = vsel %vm757, %v3745, 0
        %v3808 = vsel %vm757, %v3746, 0
        %v3811 = vsel %vm757, %v3747, 0
        %v3814 = vsel %vm990, %v3749, 0
        %3816 = vmatprep.subr.bf16.mxu0 0
        %3817 = vmatpush1.bf16.msra.mxu0 %v3814
        %3818 = vmatprep.subr.bf16.mxu0 0
        %3819 = vmatpush1.bf16.msra.mxu0 0
        %3820 = vmatprep.subr.bf16.mxu0 0
        %3821 = vmatpush1.bf16.msra.mxu0 0
        %3822 = vmatprep.subr.bf16.mxu0 0
        %3823 = vmatpush1.bf16.msra.mxu0 0
        %3824 = vmatprep.subr.bf16.mxu0 0
        %3825 = vmatpush1.bf16.msra.mxu0 0
        %3826 = vmatprep.subr.bf16.mxu0 0
        %3827 = vmatpush1.bf16.msra.mxu0 0
        %3828 = vmatprep.subr.bf16.mxu0 0
        %3829 = vmatpush1.bf16.msra.mxu0 0
        %3830 = vmatprep.subr.bf16.mxu0 0
        %3831 = vmatpush1.bf16.msra.mxu0 0
        %3832 = vmatprep.subr.bf16.mxu0 0
        %3833 = vmatpush1.bf16.msra.mxu0 0
        %3834 = vmatprep.subr.bf16.mxu0 0
        %3835 = vmatpush1.bf16.msra.mxu0 0
        %3836 = vmatprep.subr.bf16.mxu0 0
        %3837 = vmatpush1.bf16.msra.mxu0 0
        %3838 = vmatprep.subr.bf16.mxu0 0
        %3839 = vmatpush1.bf16.msra.mxu0 0
        %3840 = vmatprep.subr.bf16.mxu0 0
        %3841 = vmatpush1.bf16.msra.mxu0 0
        %3842 = vmatprep.subr.bf16.mxu0 0
        %3843 = vmatpush1.bf16.msra.mxu0 0
        %3844 = vmatprep.subr.bf16.mxu0 0
        %3845 = vmatpush1.bf16.msra.mxu0 0
        %3846 = vmatprep.subr.bf16.mxu0 0
        %3847 = vmatpush1.bf16.msra.mxu0 0
        %3848 = vmatprep.mubr.bf16.mxu0 0
        %3849 = vmatmul.mubr.bf16.gmra.mrb[0].mxu0 %v3751
        %v3850 = vpop.f32.mrb[0].mxu0
        %v3851 = vadd.f32 0.0, %v3850
        %v3852 = vpop.f32.mrb[0].mxu0
        %v3853 = vpop.f32.mrb[0].mxu0
        %v3854 = vadd.f32 0.0, %v3853
        %v3855 = vpop.f32.mrb[0].mxu0
        %3856 = vmatprep.mubr.bf16.mxu0 0
        %3857 = vmatmul.mubr.bf16.gmra.mrb[0].mxu0 %v3754
        %v3858 = vpop.f32.mrb[0].mxu0
        %v3859 = vadd.f32 0.0, %v3858
        %v3860 = vpop.f32.mrb[0].mxu0
        %v3861 = vpop.f32.mrb[0].mxu0
        %v3862 = vadd.f32 0.0, %v3861
        %v3863 = vpop.f32.mrb[0].mxu0
        %3864 = vmatprep.mubr.bf16.mxu0 0
        %3865 = vmatmul.mubr.bf16.gmra.mrb[0].mxu0 %v3757
        %v3866 = vpop.f32.mrb[0].mxu0
        %v3867 = vadd.f32 0.0, %v3866
        %v3868 = vpop.f32.mrb[0].mxu0
        %v3869 = vpop.f32.mrb[0].mxu0
        %v3870 = vadd.f32 0.0, %v3869
        %v3871 = vpop.f32.mrb[0].mxu0
        %3872 = vmatprep.mubr.bf16.mxu0 0
        %3873 = vmatmul.mubr.bf16.gmra.mrb[0].mxu0 %v3760
        %v3874 = vpop.f32.mrb[0].mxu0
        %v3875 = vadd.f32 0.0, %v3874
        %v3876 = vpop.f32.mrb[0].mxu0
        %v3877 = vpop.f32.mrb[0].mxu0
        %v3878 = vadd.f32 0.0, %v3877
        %v3879 = vpop.f32.mrb[0].mxu0
        %3880 = vmatprep.mubr.bf16.mxu0 0
        %3881 = vmatmul.mubr.bf16.gmra.mrb[0].mxu0 %v3763
        %v3882 = vpop.f32.mrb[0].mxu0
        %v3883 = vadd.f32 0.0, %v3882
        %v3884 = vpop.f32.mrb[0].mxu0
        %v3885 = vpop.f32.mrb[0].mxu0
        %v3886 = vadd.f32 0.0, %v3885
        %v3887 = vpop.f32.mrb[0].mxu0
        %3888 = vmatprep.mubr.bf16.mxu0 0
        %3889 = vmatmul.mubr.bf16.gmra.mrb[0].mxu0 %v3766
        %v3890 = vpop.f32.mrb[0].mxu0
        %v3891 = vadd.f32 0.0, %v3890
        %v3892 = vpop.f32.mrb[0].mxu0
        %v3893 = vpop.f32.mrb[0].mxu0
        %v3894 = vadd.f32 0.0, %v3893
        %v3895 = vpop.f32.mrb[0].mxu0
        %3896 = vmatprep.mubr.bf16.mxu0 0
        %3897 = vmatmul.mubr.bf16.gmra.mrb[0].mxu0 %v3769
        %v3898 = vpop.f32.mrb[0].mxu0
        %v3899 = vadd.f32 0.0, %v3898
        %v3900 = vpop.f32.mrb[0].mxu0
        %v3901 = vpop.f32.mrb[0].mxu0
        %v3902 = vadd.f32 0.0, %v3901
        %v3903 = vpop.f32.mrb[0].mxu0
        %3904 = vmatprep.mubr.bf16.mxu0 0
        %3905 = vmatmul.mubr.bf16.gmra.mrb[0].mxu0 %v3772
        %v3906 = vpop.f32.mrb[0].mxu0
        %v3907 = vadd.f32 0.0, %v3906
        %v3908 = vpop.f32.mrb[0].mxu0
        %v3909 = vpop.f32.mrb[0].mxu0
        %v3910 = vadd.f32 0.0, %v3909
        %v3911 = vpop.f32.mrb[0].mxu0
        %3912 = vmatprep.mubr.bf16.mxu0 0
        %3913 = vmatmul.mubr.bf16.gmra.mrb[0].mxu0 %v3775
        %v3914 = vpop.f32.mrb[0].mxu0
        %v3915 = vadd.f32 0.0, %v3914
        %v3916 = vpop.f32.mrb[0].mxu0
        %v3917 = vpop.f32.mrb[0].mxu0
        %v3918 = vadd.f32 0.0, %v3917
        %v3919 = vpop.f32.mrb[0].mxu0
        %3920 = vmatprep.mubr.bf16.mxu0 0
        %3921 = vmatmul.mubr.bf16.gmra.mrb[0].mxu0 %v3778
        %v3922 = vpop.f32.mrb[0].mxu0
        %v3923 = vadd.f32 0.0, %v3922
        %v3924 = vpop.f32.mrb[0].mxu0
        %v3925 = vpop.f32.mrb[0].mxu0
        %v3926 = vadd.f32 0.0, %v3925
        %v3927 = vpop.f32.mrb[0].mxu0
        %3928 = vmatprep.mubr.bf16.mxu0 0
        %3929 = vmatmul.mubr.bf16.gmra.mrb[0].mxu0 %v3781
        %v3930 = vpop.f32.mrb[0].mxu0
        %v3931 = vadd.f32 0.0, %v3930
        %v3932 = vpop.f32.mrb[0].mxu0
        %v3933 = vpop.f32.mrb[0].mxu0
        %v3934 = vadd.f32 0.0, %v3933
        %v3935 = vpop.f32.mrb[0].mxu0
        %3936 = vmatprep.mubr.bf16.mxu0 0
        %3937 = vmatmul.mubr.bf16.gmra.mrb[0].mxu0 %v3784
        %v3938 = vpop.f32.mrb[0].mxu0
        %v3939 = vadd.f32 0.0, %v3938
        %v3940 = vpop.f32.mrb[0].mxu0
        %v3941 = vpop.f32.mrb[0].mxu0
        %v3942 = vadd.f32 0.0, %v3941
        %v3943 = vpop.f32.mrb[0].mxu0
        %3944 = vmatprep.mubr.bf16.mxu0 0
        %3945 = vmatmul.mubr.bf16.gmra.mrb[0].mxu0 %v3787
        %v3946 = vpop.f32.mrb[0].mxu0
        %v3947 = vadd.f32 0.0, %v3946
        %v3948 = vpop.f32.mrb[0].mxu0
        %v3949 = vpop.f32.mrb[0].mxu0
        %v3950 = vadd.f32 0.0, %v3949
        %v3951 = vpop.f32.mrb[0].mxu0
        %3952 = vmatprep.mubr.bf16.mxu0 0
        %3953 = vmatmul.mubr.bf16.gmra.mrb[0].mxu0 %v3790
        %v3954 = vpop.f32.mrb[0].mxu0
        %v3955 = vadd.f32 0.0, %v3954
        %v3956 = vpop.f32.mrb[0].mxu0
        %v3957 = vpop.f32.mrb[0].mxu0
        %v3958 = vadd.f32 0.0, %v3957
        %v3959 = vpop.f32.mrb[0].mxu0
        %3960 = vmatprep.mubr.bf16.mxu0 0
        %3961 = vmatmul.mubr.bf16.gmra.mrb[0].mxu0 %v3793
        %v3962 = vpop.f32.mrb[0].mxu0
        %v3963 = vadd.f32 0.0, %v3962
        %v3964 = vpop.f32.mrb[0].mxu0
        %v3965 = vpop.f32.mrb[0].mxu0
        %v3966 = vadd.f32 0.0, %v3965
        %v3967 = vpop.f32.mrb[0].mxu0
        %3968 = vmatprep.mubr.bf16.mxu0 0
        %3969 = vmatmul.mubr.bf16.gmra.mrb[0].mxu0 %v3796
        %v3970 = vpop.f32.mrb[0].mxu0
        %v3971 = vadd.f32 0.0, %v3970
        %v3972 = vpop.f32.mrb[0].mxu0
        %v3973 = vpop.f32.mrb[0].mxu0
        %v3974 = vadd.f32 0.0, %v3973
        %v3975 = vpop.f32.mrb[0].mxu0
        %3976 = vmatprep.mubr.bf16.mxu0 0
        %3977 = vmatmul.mubr.bf16.gmra.mrb[0].mxu0 %v3799
        %v3978 = vpop.f32.mrb[0].mxu0
        %v3979 = vadd.f32 0.0, %v3978
        %v3980 = vpop.f32.mrb[0].mxu0
        %v3981 = vpop.f32.mrb[0].mxu0
        %v3982 = vadd.f32 0.0, %v3981
        %v3983 = vpop.f32.mrb[0].mxu0
        %3984 = vmatprep.mubr.bf16.mxu0 0
        %3985 = vmatmul.mubr.bf16.gmra.mrb[0].mxu0 %v3802
        %v3986 = vpop.f32.mrb[0].mxu0
        %v3987 = vadd.f32 0.0, %v3986
        %v3988 = vpop.f32.mrb[0].mxu0
        %v3989 = vpop.f32.mrb[0].mxu0
        %v3990 = vadd.f32 0.0, %v3989
        %v3991 = vpop.f32.mrb[0].mxu0
        %3992 = vmatprep.mubr.bf16.mxu0 0
        %3993 = vmatmul.mubr.bf16.gmra.mrb[0].mxu0 %v3805
        %v3994 = vpop.f32.mrb[0].mxu0
        %v3995 = vadd.f32 0.0, %v3994
        %v3996 = vpop.f32.mrb[0].mxu0
        %v3997 = vpop.f32.mrb[0].mxu0
        %v3998 = vadd.f32 0.0, %v3997
        %v3999 = vpop.f32.mrb[0].mxu0
        %4000 = vmatprep.mubr.bf16.mxu0 0
        %4001 = vmatmul.mubr.bf16.gmra.mrb[0].mxu0 %v3808
        %v4002 = vpop.f32.mrb[0].mxu0
        %v4003 = vadd.f32 0.0, %v4002
        %v4004 = vpop.f32.mrb[0].mxu0
        %v4005 = vpop.f32.mrb[0].mxu0
        %v4006 = vadd.f32 0.0, %v4005
        %v4007 = vpop.f32.mrb[0].mxu0
        %4008 = vmatprep.mubr.bf16.mxu0 0
        %4009 = vmatmul.mubr.bf16.gmra.mrb[0].mxu0 %v3811
        %v4010 = vpop.f32.mrb[0].mxu0
        %v4011 = vadd.f32 0.0, %v4010
        %v4012 = vpop.f32.mrb[0].mxu0
        %v4013 = vpop.f32.mrb[0].mxu0
        %v4014 = vpop.f32.mrb[0].mxu0
        %4015 = vdwg.mxu0
        %v4016 = vadd.f32 %v3645, %v3851
        %v4017 = vadd.f32 %v3646, %v3854
        %v4018 = vadd.f32 %v3647, %v3859
        %v4019 = vadd.f32 %v3648, %v3862
        %v4020 = vadd.f32 %v3649, %v3867
        %v4021 = vadd.f32 %v3650, %v3870
        %v4022 = vadd.f32 %v3651, %v3875
        %v4023 = vadd.f32 %v3652, %v3878
        %v4024 = vadd.f32 %v3653, %v3883
        %v4025 = vadd.f32 %v3654, %v3886
        %v4026 = vadd.f32 %v3655, %v3891
        %v4027 = vadd.f32 %v3656, %v3894
        %v4028 = vadd.f32 %v3657, %v3899
        %v4029 = vadd.f32 %v3658, %v3902
        %v4030 = vadd.f32 %v3659, %v3907
        %v4031 = vadd.f32 %v3660, %v3910
        %v4032 = vadd.f32 %v3661, %v3915
        %v4033 = vadd.f32 %v3662, %v3918
        %v4034 = vadd.f32 %v3663, %v3923
        %v4035 = vadd.f32 %v3664, %v3926
        %v4036 = vadd.f32 %v3665, %v3931
        %v4037 = vadd.f32 %v3666, %v3934
        %v4038 = vadd.f32 %v3667, %v3939
        %v4039 = vadd.f32 %v3668, %v3942
        %v4040 = vadd.f32 %v3669, %v3947
        %v4041 = vadd.f32 %v3670, %v3950
        %v4042 = vadd.f32 %v3671, %v3955
        %v4043 = vadd.f32 %v3672, %v3958
        %v4044 = vadd.f32 %v3673, %v3963
        %v4045 = vadd.f32 %v3674, %v3966
        %v4046 = vadd.f32 %v3675, %v3971
        %v4047 = vadd.f32 %v3676, %v3974
        %v4048 = vadd.f32 %v3677, %v3979
        %v4049 = vadd.f32 %v3678, %v3982
        %v4050 = vadd.f32 %v3679, %v3987
        %v4051 = vadd.f32 %v3680, %v3990
        %v4052 = vadd.f32 %v3681, %v3995
        %v4053 = vadd.f32 %v3682, %v3998
        %v4054 = vadd.f32 %v3683, %v4003
        %v4055 = vadd.f32 %v3684, %v4006
        %v4056 = vadd.f32 %v3685, %v4011
        %v4057 = vmul.f32 %v4016, %v458
        %v4058 = vmul.f32 %v4017, %v463
        %v4059 = vmul.f32 %v4018, %v468
        %v4060 = vmul.f32 %v4019, %v473
        %v4061 = vmul.f32 %v4020, %v478
        %v4062 = vmul.f32 %v4021, %v483
        %v4063 = vmul.f32 %v4022, %v488
        %v4064 = vmul.f32 %v4023, %v493
        %v4065 = vmul.f32 %v4024, %v498
        %v4066 = vmul.f32 %v4025, %v503
        %v4067 = vmul.f32 %v4026, %v508
        %v4068 = vmul.f32 %v4027, %v513
        %v4069 = vmul.f32 %v4028, %v518
        %v4070 = vmul.f32 %v4029, %v523
        %v4071 = vmul.f32 %v4030, %v528
        %v4072 = vmul.f32 %v4031, %v533
        %v4073 = vmul.f32 %v4032, %v538
        %v4074 = vmul.f32 %v4033, %v543
        %v4075 = vmul.f32 %v4034, %v548
        %v4076 = vmul.f32 %v4035, %v553
        %v4077 = vmul.f32 %v4036, %v558
        %v4078 = vmul.f32 %v4037, %v563
        %v4079 = vmul.f32 %v4038, %v568
        %v4080 = vmul.f32 %v4039, %v573
        %v4081 = vmul.f32 %v4040, %v578
        %v4082 = vmul.f32 %v4041, %v583
        %v4083 = vmul.f32 %v4042, %v588
        %v4084 = vmul.f32 %v4043, %v593
        %v4085 = vmul.f32 %v4044, %v598
        %v4086 = vmul.f32 %v4045, %v603
        %v4087 = vmul.f32 %v4046, %v608
        %v4088 = vmul.f32 %v4047, %v613
        %v4089 = vmul.f32 %v4048, %v618
        %v4090 = vmul.f32 %v4049, %v623
        %v4091 = vmul.f32 %v4050, %v628
        %v4092 = vmul.f32 %v4051, %v633
        %v4093 = vmul.f32 %v4052, %v638
        %v4094 = vmul.f32 %v4053, %v643
        %v4095 = vmul.f32 %v4054, %v648
        %v4096 = vmul.f32 %v4055, %v653
        %v4097 = vmul.f32 %v4056, %v658
        %4098 = vst.msk [vmem:[%s275] sm:$0xff] %vm757, %v4057
        %4099 = vst.msk [vmem:[%s275 + $0x8] sm:$0xff] %vm757, %v4058
        %4100 = vst.msk [vmem:[%s275 + $0x10] sm:$0xff] %vm757, %v4059
        %4101 = vst.msk [vmem:[%s275 + $0x18] sm:$0xff] %vm757, %v4060
        %4102 = vst.msk [vmem:[%s275 + $0x20] sm:$0xff] %vm757, %v4061
        %4103 = vst.msk [vmem:[%s275 + $0x28] sm:$0xff] %vm757, %v4062
        %4104 = vst.msk [vmem:[%s275 + $0x30] sm:$0xff] %vm757, %v4063
        %4105 = vst.msk [vmem:[%s275 + $0x38] sm:$0xff] %vm757, %v4064
        %4106 = vst.msk [vmem:[%s275 + $0x40] sm:$0xff] %vm757, %v4065
        %4107 = vst.msk [vmem:[%s275 + $0x48] sm:$0xff] %vm757, %v4066
        %4108 = vst.msk [vmem:[%s275 + $0x50] sm:$0xff] %vm757, %v4067
        %4109 = vst.msk [vmem:[%s275 + $0x58] sm:$0xff] %vm757, %v4068
        %4110 = vst.msk [vmem:[%s275 + $0x60] sm:$0xff] %vm757, %v4069
        %4111 = vst.msk [vmem:[%s275 + $0x68] sm:$0xff] %vm757, %v4070
        %4112 = vst.msk [vmem:[%s275 + $0x70] sm:$0xff] %vm757, %v4071
        %4113 = vst.msk [vmem:[%s275 + $0x78] sm:$0xff] %vm757, %v4072
        %4114 = vst.msk [vmem:[%s275 + $0x80] sm:$0xff] %vm757, %v4073
        %4115 = vst.msk [vmem:[%s275 + $0x88] sm:$0xff] %vm757, %v4074
        %4116 = vst.msk [vmem:[%s275 + $0x90] sm:$0xff] %vm757, %v4075
        %4117 = vst.msk [vmem:[%s275 + $0x98] sm:$0xff] %vm757, %v4076
        %4118 = vst.msk [vmem:[%s275 + $0xa0] sm:$0xff] %vm757, %v4077
        %4119 = vst.msk [vmem:[%s275 + $0xa8] sm:$0xff] %vm757, %v4078
        %4120 = vst.msk [vmem:[%s275 + $0xb0] sm:$0xff] %vm757, %v4079
        %4121 = vst.msk [vmem:[%s275 + $0xb8] sm:$0xff] %vm757, %v4080
        %4122 = vst.msk [vmem:[%s275 + $0xc0] sm:$0xff] %vm757, %v4081
        %4123 = vst.msk [vmem:[%s275 + $0xc8] sm:$0xff] %vm757, %v4082
        %4124 = vst.msk [vmem:[%s275 + $0xd0] sm:$0xff] %vm757, %v4083
        %4125 = vst.msk [vmem:[%s275 + $0xd8] sm:$0xff] %vm757, %v4084
        %4126 = vst.msk [vmem:[%s275 + $0xe0] sm:$0xff] %vm757, %v4085
        %4127 = vst.msk [vmem:[%s275 + $0xe8] sm:$0xff] %vm757, %v4086
        %4128 = vst.msk [vmem:[%s275 + $0xf0] sm:$0xff] %vm757, %v4087
        %4129 = vst.msk [vmem:[%s275 + $0xf8] sm:$0xff] %vm757, %v4088
        %4130 = vst.msk [vmem:[%s275 + $0x100] sm:$0xff] %vm757, %v4089
        %4131 = vst.msk [vmem:[%s275 + $0x108] sm:$0xff] %vm757, %v4090
        %4132 = vst.msk [vmem:[%s275 + $0x110] sm:$0xff] %vm757, %v4091
        %4133 = vst.msk [vmem:[%s275 + $0x118] sm:$0xff] %vm757, %v4092
        %4134 = vst.msk [vmem:[%s275 + $0x120] sm:$0xff] %vm757, %v4093
        %4135 = vst.msk [vmem:[%s275 + $0x128] sm:$0xff] %vm757, %v4094
        %4136 = vst.msk [vmem:[%s275 + $0x130] sm:$0xff] %vm757, %v4095
        %4137 = vst.msk [vmem:[%s275 + $0x138] sm:$0xff] %vm757, %v4096
        %4138 = vst.msk [vmem:[%s275 + $0x140] sm:$0xf] %vm798, %v4097
        %v4139 = vld [vmem:[#allocation3] sm:$0x1]
        %v4140 = vsel %vm757, %v4057, 0.0
        %v4141 = vsel %vm757, %v4058, 0.0
        %v4142 = vadd.f32 %v4140, %v4141
        %v4143 = vsel %vm757, %v4059, 0.0
        %v4144 = vadd.f32 %v4142, %v4143
        %v4145 = vsel %vm757, %v4060, 0.0
        %v4146 = vadd.f32 %v4144, %v4145
        %v4147 = vsel %vm757, %v4061, 0.0
        %v4148 = vadd.f32 %v4146, %v4147
        %v4149 = vsel %vm757, %v4062, 0.0
        %v4150 = vadd.f32 %v4148, %v4149
        %v4151 = vsel %vm757, %v4063, 0.0
        %v4152 = vadd.f32 %v4150, %v4151
        %v4153 = vsel %vm757, %v4064, 0.0
        %v4154 = vadd.f32 %v4152, %v4153
        %v4155 = vsel %vm757, %v4065, 0.0
        %v4156 = vadd.f32 %v4154, %v4155
        %v4157 = vsel %vm757, %v4066, 0.0
        %v4158 = vadd.f32 %v4156, %v4157
        %v4159 = vsel %vm757, %v4067, 0.0
        %v4160 = vadd.f32 %v4158, %v4159
        %v4161 = vsel %vm757, %v4068, 0.0
        %v4162 = vadd.f32 %v4160, %v4161
        %v4163 = vsel %vm757, %v4069, 0.0
        %v4164 = vadd.f32 %v4162, %v4163
        %v4165 = vsel %vm757, %v4070, 0.0
        %v4166 = vadd.f32 %v4164, %v4165
        %v4167 = vsel %vm757, %v4071, 0.0
        %v4168 = vadd.f32 %v4166, %v4167
        %v4169 = vsel %vm757, %v4072, 0.0
        %v4170 = vadd.f32 %v4168, %v4169
        %v4171 = vsel %vm757, %v4073, 0.0
        %v4172 = vadd.f32 %v4170, %v4171
        %v4173 = vsel %vm757, %v4074, 0.0
        %v4174 = vadd.f32 %v4172, %v4173
        %v4175 = vsel %vm757, %v4075, 0.0
        %v4176 = vadd.f32 %v4174, %v4175
        %v4177 = vsel %vm757, %v4076, 0.0
        %v4178 = vadd.f32 %v4176, %v4177
        %v4179 = vsel %vm757, %v4077, 0.0
        %v4180 = vadd.f32 %v4178, %v4179
        %v4181 = vsel %vm757, %v4078, 0.0
        %v4182 = vadd.f32 %v4180, %v4181
        %v4183 = vsel %vm757, %v4079, 0.0
        %v4184 = vadd.f32 %v4182, %v4183
        %v4185 = vsel %vm757, %v4080, 0.0
        %v4186 = vadd.f32 %v4184, %v4185
        %v4187 = vsel %vm757, %v4081, 0.0
        %v4188 = vadd.f32 %v4186, %v4187
        %v4189 = vsel %vm757, %v4082, 0.0
        %v4190 = vadd.f32 %v4188, %v4189
        %v4191 = vsel %vm757, %v4083, 0.0
        %v4192 = vadd.f32 %v4190, %v4191
        %v4193 = vsel %vm757, %v4084, 0.0
        %v4194 = vadd.f32 %v4192, %v4193
        %v4195 = vsel %vm757, %v4085, 0.0
        %v4196 = vadd.f32 %v4194, %v4195
        %v4197 = vsel %vm757, %v4086, 0.0
        %v4198 = vadd.f32 %v4196, %v4197
        %v4199 = vsel %vm757, %v4087, 0.0
        %v4200 = vadd.f32 %v4198, %v4199
        %v4201 = vsel %vm757, %v4088, 0.0
        %v4202 = vadd.f32 %v4200, %v4201
        %v4203 = vsel %vm757, %v4089, 0.0
        %v4204 = vadd.f32 %v4202, %v4203
        %v4205 = vsel %vm757, %v4090, 0.0
        %v4206 = vadd.f32 %v4204, %v4205
        %v4207 = vsel %vm757, %v4091, 0.0
        %v4208 = vadd.f32 %v4206, %v4207
        %v4209 = vsel %vm757, %v4092, 0.0
        %v4210 = vadd.f32 %v4208, %v4209
        %v4211 = vsel %vm757, %v4093, 0.0
        %v4212 = vadd.f32 %v4210, %v4211
        %v4213 = vsel %vm757, %v4094, 0.0
        %v4214 = vadd.f32 %v4212, %v4213
        %v4215 = vsel %vm757, %v4095, 0.0
        %v4216 = vadd.f32 %v4214, %v4215
        %v4217 = vsel %vm757, %v4096, 0.0
        %v4218 = vadd.f32 %v4216, %v4217
        %v4219 = vsel %vm798, %v4097, 0.0
        %v4220 = vadd.f32 %v4218, %v4219
        %v4221 = vrot.slane %v4220, 4
        %v4222 = vadd.f32 %v4220, %v4221
        %v4223 = vrot.slane %v4222, 2
        %v4224 = vadd.f32 %v4222, %v4223
        %v4225 = vrot.slane %v4224, 1
        %v4226 = vadd.f32 %v4224, %v4225
        %v4227 = vadd.f32 %v4139, %v4226
        %vm4228 = vcmask 24576
        %4229 = vst.msk [vmem:[#allocation3] sm:$0x1] %vm4228, %v4227
        %v4230 = vld [vmem:[#allocation5] sm:$0x1]
        %v4231 = vmul.f32 %v4057, %v4057
        %v4232 = vmul.f32 %v4058, %v4058
        %v4233 = vmul.f32 %v4059, %v4059
        %v4234 = vmul.f32 %v4060, %v4060
        %v4235 = vmul.f32 %v4061, %v4061
        %v4236 = vmul.f32 %v4062, %v4062
        %v4237 = vmul.f32 %v4063, %v4063
        %v4238 = vmul.f32 %v4064, %v4064
        %v4239 = vmul.f32 %v4065, %v4065
        %v4240 = vmul.f32 %v4066, %v4066
        %v4241 = vmul.f32 %v4067, %v4067
        %v4242 = vmul.f32 %v4068, %v4068
        %v4243 = vmul.f32 %v4069, %v4069
        %v4244 = vmul.f32 %v4070, %v4070
        %v4245 = vmul.f32 %v4071, %v4071
        %v4246 = vmul.f32 %v4072, %v4072
        %v4247 = vmul.f32 %v4073, %v4073
        %v4248 = vmul.f32 %v4074, %v4074
        %v4249 = vmul.f32 %v4075, %v4075
        %v4250 = vmul.f32 %v4076, %v4076
        %v4251 = vmul.f32 %v4077, %v4077
        %v4252 = vmul.f32 %v4078, %v4078
        %v4253 = vmul.f32 %v4079, %v4079
        %v4254 = vmul.f32 %v4080, %v4080
        %v4255 = vmul.f32 %v4081, %v4081
        %v4256 = vmul.f32 %v4082, %v4082
        %v4257 = vmul.f32 %v4083, %v4083
        %v4258 = vmul.f32 %v4084, %v4084
        %v4259 = vmul.f32 %v4085, %v4085
        %v4260 = vmul.f32 %v4086, %v4086
        %v4261 = vmul.f32 %v4087, %v4087
        %v4262 = vmul.f32 %v4088, %v4088
        %v4263 = vmul.f32 %v4089, %v4089
        %v4264 = vmul.f32 %v4090, %v4090
        %v4265 = vmul.f32 %v4091, %v4091
        %v4266 = vmul.f32 %v4092, %v4092
        %v4267 = vmul.f32 %v4093, %v4093
        %v4268 = vmul.f32 %v4094, %v4094
        %v4269 = vmul.f32 %v4095, %v4095
        %v4270 = vmul.f32 %v4096, %v4096
        %v4271 = vmul.f32 %v4097, %v4097
        %v4272 = vsel %vm757, %v4231, 0.0
        %v4273 = vsel %vm757, %v4232, 0.0
        %v4274 = vadd.f32 %v4272, %v4273
        %v4275 = vsel %vm757, %v4233, 0.0
        %v4276 = vadd.f32 %v4274, %v4275
        %v4277 = vsel %vm757, %v4234, 0.0
        %v4278 = vadd.f32 %v4276, %v4277
        %v4279 = vsel %vm757, %v4235, 0.0
        %v4280 = vadd.f32 %v4278, %v4279
        %v4281 = vsel %vm757, %v4236, 0.0
        %v4282 = vadd.f32 %v4280, %v4281
        %v4283 = vsel %vm757, %v4237, 0.0
        %v4284 = vadd.f32 %v4282, %v4283
        %v4285 = vsel %vm757, %v4238, 0.0
        %v4286 = vadd.f32 %v4284, %v4285
        %v4287 = vsel %vm757, %v4239, 0.0
        %v4288 = vadd.f32 %v4286, %v4287
        %v4289 = vsel %vm757, %v4240, 0.0
        %v4290 = vadd.f32 %v4288, %v4289
        %v4291 = vsel %vm757, %v4241, 0.0
        %v4292 = vadd.f32 %v4290, %v4291
        %v4293 = vsel %vm757, %v4242, 0.0
        %v4294 = vadd.f32 %v4292, %v4293
        %v4295 = vsel %vm757, %v4243, 0.0
        %v4296 = vadd.f32 %v4294, %v4295
        %v4297 = vsel %vm757, %v4244, 0.0
        %v4298 = vadd.f32 %v4296, %v4297
        %v4299 = vsel %vm757, %v4245, 0.0
        %v4300 = vadd.f32 %v4298, %v4299
        %v4301 = vsel %vm757, %v4246, 0.0
        %v4302 = vadd.f32 %v4300, %v4301
        %v4303 = vsel %vm757, %v4247, 0.0
        %v4304 = vadd.f32 %v4302, %v4303
        %v4305 = vsel %vm757, %v4248, 0.0
        %v4306 = vadd.f32 %v4304, %v4305
        %v4307 = vsel %vm757, %v4249, 0.0
        %v4308 = vadd.f32 %v4306, %v4307
        %v4309 = vsel %vm757, %v4250, 0.0
        %v4310 = vadd.f32 %v4308, %v4309
        %v4311 = vsel %vm757, %v4251, 0.0
        %v4312 = vadd.f32 %v4310, %v4311
        %v4313 = vsel %vm757, %v4252, 0.0
        %v4314 = vadd.f32 %v4312, %v4313
        %v4315 = vsel %vm757, %v4253, 0.0
        %v4316 = vadd.f32 %v4314, %v4315
        %v4317 = vsel %vm757, %v4254, 0.0
        %v4318 = vadd.f32 %v4316, %v4317
        %v4319 = vsel %vm757, %v4255, 0.0
        %v4320 = vadd.f32 %v4318, %v4319
        %v4321 = vsel %vm757, %v4256, 0.0
        %v4322 = vadd.f32 %v4320, %v4321
        %v4323 = vsel %vm757, %v4257, 0.0
        %v4324 = vadd.f32 %v4322, %v4323
        %v4325 = vsel %vm757, %v4258, 0.0
        %v4326 = vadd.f32 %v4324, %v4325
        %v4327 = vsel %vm757, %v4259, 0.0
        %v4328 = vadd.f32 %v4326, %v4327
        %v4329 = vsel %vm757, %v4260, 0.0
        %v4330 = vadd.f32 %v4328, %v4329
        %v4331 = vsel %vm757, %v4261, 0.0
        %v4332 = vadd.f32 %v4330, %v4331
        %v4333 = vsel %vm757, %v4262, 0.0
        %v4334 = vadd.f32 %v4332, %v4333
        %v4335 = vsel %vm757, %v4263, 0.0
        %v4336 = vadd.f32 %v4334, %v4335
        %v4337 = vsel %vm757, %v4264, 0.0
        %v4338 = vadd.f32 %v4336, %v4337
        %v4339 = vsel %vm757, %v4265, 0.0
        %v4340 = vadd.f32 %v4338, %v4339
        %v4341 = vsel %vm757, %v4266, 0.0
        %v4342 = vadd.f32 %v4340, %v4341
        %v4343 = vsel %vm757, %v4267, 0.0
        %v4344 = vadd.f32 %v4342, %v4343
        %v4345 = vsel %vm757, %v4268, 0.0
        %v4346 = vadd.f32 %v4344, %v4345
        %v4347 = vsel %vm757, %v4269, 0.0
        %v4348 = vadd.f32 %v4346, %v4347
        %v4349 = vsel %vm757, %v4270, 0.0
        %v4350 = vadd.f32 %v4348, %v4349
        %v4351 = vsel %vm798, %v4271, 0.0
        %v4352 = vadd.f32 %v4350, %v4351
        %v4353 = vrot.slane %v4352, 4
        %v4354 = vadd.f32 %v4352, %v4353
        %v4355 = vrot.slane %v4354, 2
        %v4356 = vadd.f32 %v4354, %v4355
        %v4357 = vrot.slane %v4356, 1
        %v4358 = vadd.f32 %v4356, %v4357
        %v4359 = vadd.f32 %v4230, %v4358
        %4360 = vst.msk [vmem:[#allocation5] sm:$0x1] %vm4228, %v4359
        %p4361 = scmp.lt.s32.totalorder %s21, 1
        %s4362 = scalar_select %p4361, %s21, 1
        %s4363 = smul.addr %s4362, 41
        %s4364 = smul.addr %s4363, 8
        %s4365 = scalar_lea.vmem %s5, %s4364
        // Predicated region
        $region45: #{tpu_custom_call.1} parent=39 // pred_check
          %p4366 = pneg %p149
        $region46: #{tpu_custom_call.1} parent=39 // pred_check_branch
          %4368 = sbr.rel (%p4366) target = $region48
        $region47: #{tpu_custom_call.1} parent=39 // pred_region
          _
        $region48: #{tpu_custom_call.1} parent=39 // pred_fallthru
          _
        // Predicated region
        $region49: #{tpu_custom_call.1} parent=39 // pred_check
          %p4369 = pneg %p170
        $region50: #{tpu_custom_call.1} parent=39 // pred_check_branch
          %4371 = sbr.rel (%p4369) target = $region52
        $region51: #{tpu_custom_call.1} parent=39 // pred_region
          %s4373 = ssub.s32 16, 16
          %4374 = vsyncadd [#allocation4], %s4373
          %s4376 = sshll.u32 [#allocation3], 4
          %s4377 = int_to_ptr.vmem [resolvable:$true] %s4376
          %4379 = dma.vmem_to_hbm [thread:$0]  %s4377, 16, %s6, [#allocation4]
        $region52: #{tpu_custom_call.1} parent=39 // pred_fallthru
          _
        // Predicated region
        $region53: #{tpu_custom_call.1} parent=39 // pred_check
          %p4380 = pneg %p191
        $region54: #{tpu_custom_call.1} parent=39 // pred_check_branch
          %4382 = sbr.rel (%p4380) target = $region56
        $region55: #{tpu_custom_call.1} parent=39 // pred_region
          %s4384 = ssub.s32 16, 16
          %4385 = vsyncadd [#allocation6], %s4384
          %s4387 = sshll.u32 [#allocation5], 4
          %s4388 = int_to_ptr.vmem [resolvable:$true] %s4387
          %4390 = dma.vmem_to_hbm [thread:$0]  %s4388, 16, %s7, [#allocation6]
        $region56: #{tpu_custom_call.1} parent=39 // pred_fallthru
          _
        // Predicated region
        $region57: #{tpu_custom_call.1} parent=39 // pred_check
          %p4391 = pneg %p170
        $region58: #{tpu_custom_call.1} parent=39 // pred_check_branch
          %4393 = sbr.rel (%p4391) target = $region60
        $region59: #{tpu_custom_call.1} parent=39 // pred_region
          %4394 = dma.done [#allocation4], 16
        $region60: #{tpu_custom_call.1} parent=39 // pred_fallthru
          _
        // Predicated region
        $region61: #{tpu_custom_call.1} parent=39 // pred_check
          %p4395 = pneg %p191
        $region62: #{tpu_custom_call.1} parent=39 // pred_check_branch
          %4397 = sbr.rel (%p4395) target = $region64
        $region63: #{tpu_custom_call.1} parent=39 // pred_region
          %4398 = dma.done [#allocation6], 16
        $region64: #{tpu_custom_call.1} parent=39 // pred_fallthru
          _
      $region40: #{tpu_custom_call.1} parent=5 // pred_fallthru
        _
      %p4399 = scmp.le.s32.totalorder 2, %s16
      // Predicated region
      $region65: #{tpu_custom_call.1} parent=5 // pred_check
        %p4400 = pneg %p4399
      $region66: #{tpu_custom_call.1} parent=5 // pred_check_branch
        %4402 = sbr.rel (%p4400) target = $region68
      $region67: #{tpu_custom_call.1} parent=5 // pred_region
        %s4403 = ssub.s32 %s16, 2
        // Predicated region
        $region69: #{tpu_custom_call.1} parent=67 // pred_check
          %p4404 = pneg %p155
        $region70: #{tpu_custom_call.1} parent=67 // pred_check_branch
          %4406 = sbr.rel (%p4404) target = $region72
        $region71: #{tpu_custom_call.1} parent=67 // pred_region
          %p4407 = scmp.lt.s32.totalorder %s22, 1
          %s4408 = scalar_select %p4407, %s22, 1
          %s4409 = smul.addr %s4408, 41
          %s4410 = smul.addr %s4409, 8
          %s4411 = scalar_lea.vmem %s5, %s4410
        $region72: #{tpu_custom_call.1} parent=67 // pred_fallthru
          _
      $region68: #{tpu_custom_call.1} parent=5 // pred_fallthru
        _
    $region6: #{tpu_custom_call.1} parent=1 // loop_footer
      %s20 = sadd.s32 1, %s16
    $region7: #{tpu_custom_call.1} parent=1 // loop_footer_branch
      %15 = sbr.rel target = $region3
    $region8: #{tpu_custom_call.1} parent=1 // loop_exit
      _
    %4412 = vsyncpa [#allocation4], 1
    %s4413 = scalar_lea.sflag [#allocation4], 1
    %4414 = vsyncpa %s4413, 1
    %4415 = vsyncpa [#allocation6], 1

</llo_original>
